<compile_context>
chip_gen: v7x
topology: tpu7x:2x2x1
jax: 0.10.0
libtpu: 0.0.40
codegen_flags: <defaults>
</compile_context>

<pallas_src>
import jax
import jax.numpy as jnp
from jax import lax
from jax.experimental import pallas as pl
from jax.experimental.pallas import tpu as pltpu

EPS = 1e-5
LANE = 128


def _pad128(n):
    return ((n + LANE - 1) // LANE) * LANE


# ---------------------------------------------------------------------------
# Fused ConvBlock kernel
# ---------------------------------------------------------------------------

def _make_convblock_kernel(has_ds):
    def kernel(x_ref, bnin_ref, bnmid_ref, w1_ref, w2_ref, w3_ref, wd_ref, o_ref):
        H, W = x_ref.shape[1], x_ref.shape[2]
        CinP = x_ref.shape[3]
        CoutP = o_ref.shape[3]

        def conv3x3(act_bf16, w_mat):
            # act_bf16: (H, W, C) bf16 activation (post BN+ReLU, pre padding)
            # w_mat:    (9*C, CoutP) bf16 weight matrix (tap-major, kh*3+kw)
            C = act_bf16.shape[-1]
            zrow = jnp.zeros((1, W, C), jnp.bfloat16)
            zcol = jnp.zeros((H + 2, 1, C), jnp.bfloat16)
            ap = jnp.concatenate([zrow, act_bf16, zrow], axis=0)   # (H+2, W,   C)
            ap = jnp.concatenate([zcol, ap, zcol], axis=1)         # (H+2, W+2, C)
            taps = [ap[kh:kh + H, kw:kw + W, :]
                    for kh in range(3) for kw in range(3)]
            patches = jnp.concatenate(taps, axis=-1).reshape(H * W, 9 * C)
            # Single fused MXU matmul, bf16 x bf16 -> f32 accumulate.
            return jnp.dot(patches, w_mat, preferred_element_type=jnp.float32)

        x = x_ref[0].astype(jnp.float32)                                  # (H, W, CinP)

        # BN1 + ReLU + conv1  (output lands in channels [0:c1) of CoutP space)
        act0 = jnp.maximum(x * bnin_ref[0] + bnin_ref[1], 0.0)
        out1 = conv3x3(act0.astype(jnp.bfloat16), w1_ref[...])            # (H*W, CoutP)

        # BN2 + ReLU + conv2  (output lands in channels [c1:c1+c2))
        act1 = jnp.maximum(out1 * bnmid_ref[0] + bnmid_ref[1], 0.0)
        out2 = conv3x3(act1.astype(jnp.bfloat16).reshape(H, W, CoutP), w2_ref[...])

        # BN3 + ReLU + conv3  (output lands in channels [c1+c2:out_planes))
        act2 = jnp.maximum(out2 * bnmid_ref[2] + bnmid_ref[3], 0.0)
        out3 = conv3x3(act2.astype(jnp.bfloat16).reshape(H, W, CoutP), w3_ref[...])

        if has_ds:
            # Downsample path: BN + ReLU + 1x1 conv.
            actd = jnp.maximum(x * bnin_ref[2] + bnin_ref[3], 0.0)
            residual = jnp.dot(actd.astype(jnp.bfloat16).reshape(H * W, CinP),
                               wd_ref[...], preferred_element_type=jnp.float32)
        else:
            # Identity residual (in_planes == out_planes -> CinP == CoutP).
            residual = x.reshape(H * W, CoutP)

        # out1/out2/out3 have disjoint (real) channel supports -> "concat" is a
        # plain add; residual add fused in the same store.
        out = out1 + out2 + out3 + residual
        o_ref[0] = out.reshape(H, W, CoutP).astype(o_ref.dtype)

    return kernel


# ---------------------------------------------------------------------------
# Parameter packing (channel padding / embedding) + forward
# ---------------------------------------------------------------------------

def _bn_scale_shift(gamma, beta, mean, var):
    scale = gamma / jnp.sqrt(var + EPS)
    shift = beta - mean * scale
    return scale, shift


def _embed_conv3x3(w_oihw, cin_off, cin_p, cout_off, cout_p):
    """(Cout, Cin, 3, 3) -> (9*cin_p, cout_p) bf16 with rows/cols at offsets."""
    cout, cin = w_oihw.shape[0], w_oihw.shape[1]
    w = jnp.transpose(w_oihw, (2, 3, 1, 0)).astype(jnp.float32)   # (3, 3, Cin, Cout)
    wm = jnp.zeros((3, 3, cin_p, cout_p), jnp.float32)
    wm = wm.at[:, :, cin_off:cin_off + cin, cout_off:cout_off + cout].set(w)
    return wm.reshape(9 * cin_p, cout_p).astype(jnp.bfloat16)


@jax.jit
def convblock_forward(params, x_nchw):
    """ConvBlock forward.  Input/output in NCHW (PyTorch convention)."""
    N, in_planes, H, W = x_nchw.shape
    c1 = params["conv1"].shape[0]
    c2 = params["conv2"].shape[0]
    c3 = params["conv3"].shape[0]
    out_planes = c1 + c2 + c3
    has_ds = "ds_conv" in params

    CinP = _pad128(in_planes)
    CoutP = _pad128(out_planes)

    # NCHW -> NHWC, pad channels to lane width.
    x = jnp.transpose(x_nchw, (0, 2, 3, 1))
    x = jnp.pad(x, ((0, 0), (0, 0), (0, 0), (0, CinP - in_planes)))

    s1, b1 = _bn_scale_shift(*params["bn1"])
    s2, b2 = _bn_scale_shift(*params["bn2"])
    s3, b3 = _bn_scale_shift(*params["bn3"])

    # BN vectors acting in input-channel space: [scale1, shift1, scale_ds, shift_ds]
    bn_in = jnp.zeros((4, CinP), jnp.float32)
    bn_in = bn_in.at[0, :in_planes].set(s1).at[1, :in_planes].set(b1)
    if has_ds:
        sd, bd = _bn_scale_shift(*params["ds_bn"])
        bn_in = bn_in.at[2, :in_planes].set(sd).at[3, :in_planes].set(bd)

    # BN vectors acting in output-channel space: [scale2, shift2, scale3, shift3]
    bn_mid = jnp.zeros((4, CoutP), jnp.float32)
    bn_mid = bn_mid.at[0, :c1].set(s2).at[1, :c1].set(b2)
    bn_mid = bn_mid.at[2, c1:c1 + c2].set(s3).at[3, c1:c1 + c2].set(b3)

    # Weight matrices with channel offsets baked in (fuses the concat).
    w1 = _embed_conv3x3(params["conv1"], 0, CinP, 0, CoutP)
    w2 = _embed_conv3x3(params["conv2"], 0, CoutP, c1, CoutP)
    w3 = _embed_conv3x3(params["conv3"], c1, CoutP, c1 + c2, CoutP)

    if has_ds:
        wd_oi = params["ds_conv"][:, :, 0, 0]                 # (out, in)
        wd = jnp.zeros((CinP, CoutP), jnp.float32)
        wd = wd.at[:in_planes, :out_planes].set(jnp.transpose(wd_oi))
        wd = wd.astype(jnp.bfloat16)
    else:
        wd = jnp.zeros((CinP, CoutP), jnp.bfloat16)           # unused

    out_p = pl.pallas_call(
        _make_convblock_kernel(has_ds),
        out_shape=jax.ShapeDtypeStruct((N, H, W, CoutP), x_nchw.dtype),
        grid_spec=pltpu.PrefetchScalarGridSpec(
            num_scalar_prefetch=0,
            grid=(N,),
            in_specs=[
                pl.BlockSpec((1, H, W, CinP), lambda n: (n, 0, 0, 0)),
                pl.BlockSpec((4, CinP), lambda n: (0, 0)),
                pl.BlockSpec((4, CoutP), lambda n: (0, 0)),
                pl.BlockSpec((9 * CinP, CoutP), lambda n: (0, 0)),
                pl.BlockSpec((9 * CoutP, CoutP), lambda n: (0, 0)),
                pl.BlockSpec((9 * CoutP, CoutP), lambda n: (0, 0)),
                pl.BlockSpec((CinP, CoutP), lambda n: (0, 0)),
            ],
            out_specs=pl.BlockSpec((1, H, W, CoutP), lambda n: (n, 0, 0, 0)),
        ),
        compiler_params=pltpu.CompilerParams(
            dimension_semantics=("parallel",)),
    )(x, bn_in, bn_mid, w1, w2, w3, wd)

    out = out_p[..., :out_planes]
    return jnp.transpose(out, (0, 3, 1, 2))  # -> NCHW


# ---------------------------------------------------------------------------
# Parameter init (PyTorch-style shapes, inference-mode BN stats)
# ---------------------------------------------------------------------------

def init_convblock_params(key, in_planes, out_planes):
    c1 = out_planes // 2
    c2 = out_planes // 4
    c3 = out_planes // 4
    ks = jax.random.split(key, 10)

    def bn_params(k, c):
        k1, k2, k3, k4 = jax.random.split(k, 4)
        gamma = 1.0 + 0.1 * jax.random.normal(k1, (c,), jnp.float32)
        beta = 0.1 * jax.random.normal(k2, (c,), jnp.float32)
        mean = 0.1 * jax.random.normal(k3, (c,), jnp.float32)
        var = 1.0 + 0.1 * jnp.abs(jax.random.normal(k4, (c,), jnp.float32))
        return gamma, beta, mean, var

    params = {
        "bn1": bn_params(ks[0], in_planes),
        "conv1": 0.1 * jax.random.normal(ks[1], (c1, in_planes, 3, 3), jnp.float32),
        "bn2": bn_params(ks[2], c1),
        "conv2": 0.1 * jax.random.normal(ks[3], (c2, c1, 3, 3), jnp.float32),
        "bn3": bn_params(ks[4], c2),
        "conv3": 0.1 * jax.random.normal(ks[5], (c3, c2, 3, 3), jnp.float32),
    }
    if in_planes != out_planes:
        params["ds_bn"] = bn_params(ks[6], in_planes)
        params["ds_conv"] = 0.1 * jax.random.normal(
            ks[7], (out_planes, in_planes, 1, 1), jnp.float32)
    return params


# ---------------------------------------------------------------------------
# Pure-JAX reference (f32, for correctness checking only)
# ---------------------------------------------------------------------------

def _ref_bn_relu_conv(x_nhwc, scale, shift, w_oihw, pad):
    act = jnp.maximum(x_nhwc * scale + shift, 0.0)
    w_hwio = jnp.transpose(w_oihw, (2, 3, 1, 0))
    return lax.conv_general_dilated(
        act, w_hwio, window_strides=(1, 1), padding=[(pad, pad), (pad, pad)],
        dimension_numbers=("NHWC", "HWIO", "NHWC"),
        precision=lax.Precision.HIGHEST)


def convblock_reference(params, x_nchw):
    x = jnp.transpose(x_nchw, (0, 2, 3, 1))
    s1, b1 = _bn_scale_shift(*params["bn1"])
    out1 = _ref_bn_relu_conv(x, s1, b1, params["conv1"], 1)
    s2, b2 = _bn_scale_shift(*params["bn2"])
    out2 = _ref_bn_relu_conv(out1, s2, b2, params["conv2"], 1)
    s3, b3 = _bn_scale_shift(*params["bn3"])
    out3 = _ref_bn_relu_conv(out2, s3, b3, params["conv3"], 1)
    out_cat = jnp.concatenate([out1, out2, out3], axis=-1)
    if "ds_conv" in params:
        sd, bd = _bn_scale_shift(*params["ds_bn"])
        residual = _ref_bn_relu_conv(x, sd, bd, params["ds_conv"], 0)
    else:
        residual = x
    return jnp.transpose(out_cat + residual, (0, 3, 1, 2))


# ---------------------------------------------------------------------------

if __name__ == "__main__":
    key = jax.random.PRNGKey(0)
    k_params, k_x, k_params2 = jax.random.split(key, 3)

    # Case 1: in_planes != out_planes (downsample path), NCHW like PyTorch.
    N, in_planes, out_planes, H, W = 2, 4, 8, 16, 16
    params = init_convblock_params(k_params, in_planes, out_planes)
    x = jax.random.normal(k_x, (N, in_planes, H, W), jnp.float32)

    out = jax.block_until_ready(convblock_forward(params, x))
    ref = jax.block_until_ready(convblock_reference(params, x))
    assert out.shape == (N, out_planes, H, W), out.shape
    # bf16 MXU inputs with f32 accumulation -> slightly looser tolerance.
    assert jnp.allclose(out, ref, rtol=3e-2, atol=3e-2), \
        float(jnp.max(jnp.abs(out - ref)))

    # Case 2: in_planes == out_planes (identity residual path).
    params2 = init_convblock_params(k_params2, out_planes, out_planes)
    x2 = jax.random.normal(k_x, (N, out_planes, H, W), jnp.float32)
    out2 = jax.block_until_ready(convblock_forward(params2, x2))
    ref2 = jax.block_until_ready(convblock_reference(params2, x2))
    assert out2.shape == (N, out_planes, H, W), out2.shape
    assert jnp.allclose(out2, ref2, rtol=3e-2, atol=3e-2), \
        float(jnp.max(jnp.abs(out2 - ref2)))

    print("KERNEL_OK")
</pallas_src>

<mosaic_0001>
module attributes {stable_mosaic.version = 11 : i64} {
  func.func @kernel(%arg0: i32, %arg1: memref<1x16x16x128xf32, #tpu.memory_space<vmem>>, %arg2: memref<4x128xf32, #tpu.memory_space<vmem>>, %arg3: memref<4x128xf32, #tpu.memory_space<vmem>>, %arg4: memref<1152x128xbf16, #tpu.memory_space<vmem>>, %arg5: memref<1152x128xbf16, #tpu.memory_space<vmem>>, %arg6: memref<1152x128xbf16, #tpu.memory_space<vmem>>, %arg7: memref<128x128xbf16, #tpu.memory_space<vmem>>, %arg8: memref<1x16x16x128xf32, #tpu.memory_space<vmem>>) attributes {dimension_semantics = [#tpu.dimension_semantics<parallel>], iteration_bounds = array<i64: 2>, scalar_prefetch = 0 : i64, scratch_operands = 0 : i64, tpu.core_type = #tpu.core_type<tc>, window_params = [{transform_indices = @transform_0, window_bounds = array<i64: 1, 16, 16, 128>}, {pipeline_mode = #tpu.pipeline_mode<synchronous>, transform_indices = @transform_1, window_bounds = array<i64: 4, 128>}, {pipeline_mode = #tpu.pipeline_mode<synchronous>, transform_indices = @transform_2, window_bounds = array<i64: 4, 128>}, {pipeline_mode = #tpu.pipeline_mode<synchronous>, transform_indices = @transform_3, window_bounds = array<i64: 1152, 128>}, {pipeline_mode = #tpu.pipeline_mode<synchronous>, transform_indices = @transform_4, window_bounds = array<i64: 1152, 128>}, {pipeline_mode = #tpu.pipeline_mode<synchronous>, transform_indices = @transform_5, window_bounds = array<i64: 1152, 128>}, {pipeline_mode = #tpu.pipeline_mode<synchronous>, transform_indices = @transform_6, window_bounds = array<i64: 128, 128>}, {transform_indices = @transform_7, window_bounds = array<i64: 1, 16, 16, 128>}]} {
    %c0 = arith.constant 0 : index
    %c0_0 = arith.constant 0 : index
    %c0_1 = arith.constant 0 : index
    %c0_2 = arith.constant 0 : index
    %0 = vector.load %arg1[%c0, %c0_0, %c0_1, %c0_2] : memref<1x16x16x128xf32, #tpu.memory_space<vmem>>, vector<1x16x16x128xf32>
    %1 = vector.shape_cast %0 : vector<1x16x16x128xf32> to vector<16x16x128xf32>
    %c0_3 = arith.constant 0 : index
    %c0_4 = arith.constant 0 : index
    %2 = vector.load %arg2[%c0_3, %c0_4] : memref<4x128xf32, #tpu.memory_space<vmem>>, vector<1x128xf32>
    %3 = vector.shape_cast %2 : vector<1x128xf32> to vector<128xf32>
    %4 = vector.shape_cast %3 : vector<128xf32> to vector<1x1x128xf32>
    %5 = vector.broadcast %4 : vector<1x1x128xf32> to vector<16x16x128xf32>
    %6 = arith.mulf %1, %5 : vector<16x16x128xf32>
    %c1 = arith.constant 1 : index
    %c0_5 = arith.constant 0 : index
    %7 = vector.load %arg2[%c1, %c0_5] : memref<4x128xf32, #tpu.memory_space<vmem>>, vector<1x128xf32>
    %8 = vector.shape_cast %7 : vector<1x128xf32> to vector<128xf32>
    %9 = vector.shape_cast %8 : vector<128xf32> to vector<1x1x128xf32>
    %10 = vector.broadcast %9 : vector<1x1x128xf32> to vector<16x16x128xf32>
    %11 = arith.addf %6, %10 : vector<16x16x128xf32>
    %cst = arith.constant 0.000000e+00 : f32
    %12 = vector.broadcast %cst : f32 to vector<16x16x128xf32>
    %13 = arith.maximumf %11, %12 : vector<16x16x128xf32>
    %14 = arith.truncf %13 : vector<16x16x128xf32> to vector<16x16x128xbf16>
    %c0_6 = arith.constant 0 : index
    %c0_7 = arith.constant 0 : index
    %15 = vector.load %arg4[%c0_6, %c0_7] : memref<1152x128xbf16, #tpu.memory_space<vmem>>, vector<1152x128xbf16>
    %cst_8 = arith.constant 0.000000e+00 : bf16
    %16 = vector.broadcast %cst_8 : bf16 to vector<1x16x128xbf16>
    %cst_9 = arith.constant 0.000000e+00 : bf16
    %17 = vector.broadcast %cst_9 : bf16 to vector<18x1x128xbf16>
    %18 = tpu.concatenate %16, %14, %16 in 0 : vector<1x16x128xbf16>, vector<16x16x128xbf16>, vector<1x16x128xbf16> -> vector<18x16x128xbf16>
    %19 = tpu.concatenate %17, %18, %17 in 1 : vector<18x1x128xbf16>, vector<18x16x128xbf16>, vector<18x1x128xbf16> -> vector<18x18x128xbf16>
    %20 = vector.extract_strided_slice %19 {offsets = [0, 0, 0], sizes = [16, 16, 128], strides = [1, 1, 1]} : vector<18x18x128xbf16> to vector<16x16x128xbf16>
    %21 = vector.extract_strided_slice %19 {offsets = [0, 1, 0], sizes = [16, 16, 128], strides = [1, 1, 1]} : vector<18x18x128xbf16> to vector<16x16x128xbf16>
    %22 = vector.extract_strided_slice %19 {offsets = [0, 2, 0], sizes = [16, 16, 128], strides = [1, 1, 1]} : vector<18x18x128xbf16> to vector<16x16x128xbf16>
    %23 = vector.extract_strided_slice %19 {offsets = [1, 0, 0], sizes = [16, 16, 128], strides = [1, 1, 1]} : vector<18x18x128xbf16> to vector<16x16x128xbf16>
    %24 = vector.extract_strided_slice %19 {offsets = [1, 1, 0], sizes = [16, 16, 128], strides = [1, 1, 1]} : vector<18x18x128xbf16> to vector<16x16x128xbf16>
    %25 = vector.extract_strided_slice %19 {offsets = [1, 2, 0], sizes = [16, 16, 128], strides = [1, 1, 1]} : vector<18x18x128xbf16> to vector<16x16x128xbf16>
    %26 = vector.extract_strided_slice %19 {offsets = [2, 0, 0], sizes = [16, 16, 128], strides = [1, 1, 1]} : vector<18x18x128xbf16> to vector<16x16x128xbf16>
    %27 = vector.extract_strided_slice %19 {offsets = [2, 1, 0], sizes = [16, 16, 128], strides = [1, 1, 1]} : vector<18x18x128xbf16> to vector<16x16x128xbf16>
    %28 = vector.extract_strided_slice %19 {offsets = [2, 2, 0], sizes = [16, 16, 128], strides = [1, 1, 1]} : vector<18x18x128xbf16> to vector<16x16x128xbf16>
    %29 = tpu.concatenate %20, %21, %22, %23, %24, %25, %26, %27, %28 in 2 : vector<16x16x128xbf16>, vector<16x16x128xbf16>, vector<16x16x128xbf16>, vector<16x16x128xbf16>, vector<16x16x128xbf16>, vector<16x16x128xbf16>, vector<16x16x128xbf16>, vector<16x16x128xbf16>, vector<16x16x128xbf16> -> vector<16x16x1152xbf16>
    %30 = vector.shape_cast %29 : vector<16x16x1152xbf16> to vector<256x1152xbf16>
    %cst_10 = arith.constant dense<0.000000e+00> : vector<256x128xf32>
    %31 = tpu.matmul %30, %15, %cst_10 {dimension_numbers = #tpu.dot_dimension_numbers<[1], [0], [0], [1], [0, 0, 1, 1], [], []>} : vector<256x1152xbf16>, vector<1152x128xbf16>, vector<256x128xf32> -> vector<256x128xf32>
    %c0_11 = arith.constant 0 : index
    %c0_12 = arith.constant 0 : index
    %32 = vector.load %arg3[%c0_11, %c0_12] : memref<4x128xf32, #tpu.memory_space<vmem>>, vector<1x128xf32>
    %33 = vector.shape_cast %32 : vector<1x128xf32> to vector<128xf32>
    %34 = vector.shape_cast %33 : vector<128xf32> to vector<1x128xf32>
    %35 = vector.broadcast %34 : vector<1x128xf32> to vector<256x128xf32>
    %36 = arith.mulf %31, %35 : vector<256x128xf32>
    %c1_13 = arith.constant 1 : index
    %c0_14 = arith.constant 0 : index
    %37 = vector.load %arg3[%c1_13, %c0_14] : memref<4x128xf32, #tpu.memory_space<vmem>>, vector<1x128xf32>
    %38 = vector.shape_cast %37 : vector<1x128xf32> to vector<128xf32>
    %39 = vector.shape_cast %38 : vector<128xf32> to vector<1x128xf32>
    %40 = vector.broadcast %39 : vector<1x128xf32> to vector<256x128xf32>
    %41 = arith.addf %36, %40 : vector<256x128xf32>
    %cst_15 = arith.constant 0.000000e+00 : f32
    %42 = vector.broadcast %cst_15 : f32 to vector<256x128xf32>
    %43 = arith.maximumf %41, %42 : vector<256x128xf32>
    %44 = arith.truncf %43 : vector<256x128xf32> to vector<256x128xbf16>
    %45 = vector.shape_cast %44 : vector<256x128xbf16> to vector<16x16x128xbf16>
    %c0_16 = arith.constant 0 : index
    %c0_17 = arith.constant 0 : index
    %46 = vector.load %arg5[%c0_16, %c0_17] : memref<1152x128xbf16, #tpu.memory_space<vmem>>, vector<1152x128xbf16>
    %cst_18 = arith.constant 0.000000e+00 : bf16
    %47 = vector.broadcast %cst_18 : bf16 to vector<1x16x128xbf16>
    %cst_19 = arith.constant 0.000000e+00 : bf16
    %48 = vector.broadcast %cst_19 : bf16 to vector<18x1x128xbf16>
    %49 = tpu.concatenate %47, %45, %47 in 0 : vector<1x16x128xbf16>, vector<16x16x128xbf16>, vector<1x16x128xbf16> -> vector<18x16x128xbf16>
    %50 = tpu.concatenate %48, %49, %48 in 1 : vector<18x1x128xbf16>, vector<18x16x128xbf16>, vector<18x1x128xbf16> -> vector<18x18x128xbf16>
    %51 = vector.extract_strided_slice %50 {offsets = [0, 0, 0], sizes = [16, 16, 128], strides = [1, 1, 1]} : vector<18x18x128xbf16> to vector<16x16x128xbf16>
    %52 = vector.extract_strided_slice %50 {offsets = [0, 1, 0], sizes = [16, 16, 128], strides = [1, 1, 1]} : vector<18x18x128xbf16> to vector<16x16x128xbf16>
    %53 = vector.extract_strided_slice %50 {offsets = [0, 2, 0], sizes = [16, 16, 128], strides = [1, 1, 1]} : vector<18x18x128xbf16> to vector<16x16x128xbf16>
    %54 = vector.extract_strided_slice %50 {offsets = [1, 0, 0], sizes = [16, 16, 128], strides = [1, 1, 1]} : vector<18x18x128xbf16> to vector<16x16x128xbf16>
    %55 = vector.extract_strided_slice %50 {offsets = [1, 1, 0], sizes = [16, 16, 128], strides = [1, 1, 1]} : vector<18x18x128xbf16> to vector<16x16x128xbf16>
    %56 = vector.extract_strided_slice %50 {offsets = [1, 2, 0], sizes = [16, 16, 128], strides = [1, 1, 1]} : vector<18x18x128xbf16> to vector<16x16x128xbf16>
    %57 = vector.extract_strided_slice %50 {offsets = [2, 0, 0], sizes = [16, 16, 128], strides = [1, 1, 1]} : vector<18x18x128xbf16> to vector<16x16x128xbf16>
    %58 = vector.extract_strided_slice %50 {offsets = [2, 1, 0], sizes = [16, 16, 128], strides = [1, 1, 1]} : vector<18x18x128xbf16> to vector<16x16x128xbf16>
    %59 = vector.extract_strided_slice %50 {offsets = [2, 2, 0], sizes = [16, 16, 128], strides = [1, 1, 1]} : vector<18x18x128xbf16> to vector<16x16x128xbf16>
    %60 = tpu.concatenate %51, %52, %53, %54, %55, %56, %57, %58, %59 in 2 : vector<16x16x128xbf16>, vector<16x16x128xbf16>, vector<16x16x128xbf16>, vector<16x16x128xbf16>, vector<16x16x128xbf16>, vector<16x16x128xbf16>, vector<16x16x128xbf16>, vector<16x16x128xbf16>, vector<16x16x128xbf16> -> vector<16x16x1152xbf16>
    %61 = vector.shape_cast %60 : vector<16x16x1152xbf16> to vector<256x1152xbf16>
    %cst_20 = arith.constant dense<0.000000e+00> : vector<256x128xf32>
    %62 = tpu.matmul %61, %46, %cst_20 {dimension_numbers = #tpu.dot_dimension_numbers<[1], [0], [0], [1], [0, 0, 1, 1], [], []>} : vector<256x1152xbf16>, vector<1152x128xbf16>, vector<256x128xf32> -> vector<256x128xf32>
    %c2 = arith.constant 2 : index
    %c0_21 = arith.constant 0 : index
    %63 = vector.load %arg3[%c2, %c0_21] : memref<4x128xf32, #tpu.memory_space<vmem>>, vector<1x128xf32>
    %64 = vector.shape_cast %63 : vector<1x128xf32> to vector<128xf32>
    %65 = vector.shape_cast %64 : vector<128xf32> to vector<1x128xf32>
    %66 = vector.broadcast %65 : vector<1x128xf32> to vector<256x128xf32>
    %67 = arith.mulf %62, %66 : vector<256x128xf32>
    %c3 = arith.constant 3 : index
    %c0_22 = arith.constant 0 : index
    %68 = vector.load %arg3[%c3, %c0_22] : memref<4x128xf32, #tpu.memory_space<vmem>>, vector<1x128xf32>
    %69 = vector.shape_cast %68 : vector<1x128xf32> to vector<128xf32>
    %70 = vector.shape_cast %69 : vector<128xf32> to vector<1x128xf32>
    %71 = vector.broadcast %70 : vector<1x128xf32> to vector<256x128xf32>
    %72 = arith.addf %67, %71 : vector<256x128xf32>
    %cst_23 = arith.constant 0.000000e+00 : f32
    %73 = vector.broadcast %cst_23 : f32 to vector<256x128xf32>
    %74 = arith.maximumf %72, %73 : vector<256x128xf32>
    %75 = arith.truncf %74 : vector<256x128xf32> to vector<256x128xbf16>
    %76 = vector.shape_cast %75 : vector<256x128xbf16> to vector<16x16x128xbf16>
    %c0_24 = arith.constant 0 : index
    %c0_25 = arith.constant 0 : index
    %77 = vector.load %arg6[%c0_24, %c0_25] : memref<1152x128xbf16, #tpu.memory_space<vmem>>, vector<1152x128xbf16>
    %cst_26 = arith.constant 0.000000e+00 : bf16
    %78 = vector.broadcast %cst_26 : bf16 to vector<1x16x128xbf16>
    %cst_27 = arith.constant 0.000000e+00 : bf16
    %79 = vector.broadcast %cst_27 : bf16 to vector<18x1x128xbf16>
    %80 = tpu.concatenate %78, %76, %78 in 0 : vector<1x16x128xbf16>, vector<16x16x128xbf16>, vector<1x16x128xbf16> -> vector<18x16x128xbf16>
    %81 = tpu.concatenate %79, %80, %79 in 1 : vector<18x1x128xbf16>, vector<18x16x128xbf16>, vector<18x1x128xbf16> -> vector<18x18x128xbf16>
    %82 = vector.extract_strided_slice %81 {offsets = [0, 0, 0], sizes = [16, 16, 128], strides = [1, 1, 1]} : vector<18x18x128xbf16> to vector<16x16x128xbf16>
    %83 = vector.extract_strided_slice %81 {offsets = [0, 1, 0], sizes = [16, 16, 128], strides = [1, 1, 1]} : vector<18x18x128xbf16> to vector<16x16x128xbf16>
    %84 = vector.extract_strided_slice %81 {offsets = [0, 2, 0], sizes = [16, 16, 128], strides = [1, 1, 1]} : vector<18x18x128xbf16> to vector<16x16x128xbf16>
    %85 = vector.extract_strided_slice %81 {offsets = [1, 0, 0], sizes = [16, 16, 128], strides = [1, 1, 1]} : vector<18x18x128xbf16> to vector<16x16x128xbf16>
    %86 = vector.extract_strided_slice %81 {offsets = [1, 1, 0], sizes = [16, 16, 128], strides = [1, 1, 1]} : vector<18x18x128xbf16> to vector<16x16x128xbf16>
    %87 = vector.extract_strided_slice %81 {offsets = [1, 2, 0], sizes = [16, 16, 128], strides = [1, 1, 1]} : vector<18x18x128xbf16> to vector<16x16x128xbf16>
    %88 = vector.extract_strided_slice %81 {offsets = [2, 0, 0], sizes = [16, 16, 128], strides = [1, 1, 1]} : vector<18x18x128xbf16> to vector<16x16x128xbf16>
    %89 = vector.extract_strided_slice %81 {offsets = [2, 1, 0], sizes = [16, 16, 128], strides = [1, 1, 1]} : vector<18x18x128xbf16> to vector<16x16x128xbf16>
    %90 = vector.extract_strided_slice %81 {offsets = [2, 2, 0], sizes = [16, 16, 128], strides = [1, 1, 1]} : vector<18x18x128xbf16> to vector<16x16x128xbf16>
    %91 = tpu.concatenate %82, %83, %84, %85, %86, %87, %88, %89, %90 in 2 : vector<16x16x128xbf16>, vector<16x16x128xbf16>, vector<16x16x128xbf16>, vector<16x16x128xbf16>, vector<16x16x128xbf16>, vector<16x16x128xbf16>, vector<16x16x128xbf16>, vector<16x16x128xbf16>, vector<16x16x128xbf16> -> vector<16x16x1152xbf16>
    %92 = vector.shape_cast %91 : vector<16x16x1152xbf16> to vector<256x1152xbf16>
    %cst_28 = arith.constant dense<0.000000e+00> : vector<256x128xf32>
    %93 = tpu.matmul %92, %77, %cst_28 {dimension_numbers = #tpu.dot_dimension_numbers<[1], [0], [0], [1], [0, 0, 1, 1], [], []>} : vector<256x1152xbf16>, vector<1152x128xbf16>, vector<256x128xf32> -> vector<256x128xf32>
    %c2_29 = arith.constant 2 : index
    %c0_30 = arith.constant 0 : index
    %94 = vector.load %arg2[%c2_29, %c0_30] : memref<4x128xf32, #tpu.memory_space<vmem>>, vector<1x128xf32>
    %95 = vector.shape_cast %94 : vector<1x128xf32> to vector<128xf32>
    %96 = vector.shape_cast %95 : vector<128xf32> to vector<1x1x128xf32>
    %97 = vector.broadcast %96 : vector<1x1x128xf32> to vector<16x16x128xf32>
    %98 = arith.mulf %1, %97 : vector<16x16x128xf32>
    %c3_31 = arith.constant 3 : index
    %c0_32 = arith.constant 0 : index
    %99 = vector.load %arg2[%c3_31, %c0_32] : memref<4x128xf32, #tpu.memory_space<vmem>>, vector<1x128xf32>
    %100 = vector.shape_cast %99 : vector<1x128xf32> to vector<128xf32>
    %101 = vector.shape_cast %100 : vector<128xf32> to vector<1x1x128xf32>
    %102 = vector.broadcast %101 : vector<1x1x128xf32> to vector<16x16x128xf32>
    %103 = arith.addf %98, %102 : vector<16x16x128xf32>
    %cst_33 = arith.constant 0.000000e+00 : f32
    %104 = vector.broadcast %cst_33 : f32 to vector<16x16x128xf32>
    %105 = arith.maximumf %103, %104 : vector<16x16x128xf32>
    %106 = arith.truncf %105 : vector<16x16x128xf32> to vector<16x16x128xbf16>
    %107 = vector.shape_cast %106 : vector<16x16x128xbf16> to vector<256x128xbf16>
    %c0_34 = arith.constant 0 : index
    %c0_35 = arith.constant 0 : index
    %108 = vector.load %arg7[%c0_34, %c0_35] : memref<128x128xbf16, #tpu.memory_space<vmem>>, vector<128x128xbf16>
    %cst_36 = arith.constant dense<0.000000e+00> : vector<256x128xf32>
    %109 = tpu.matmul %107, %108, %cst_36 {dimension_numbers = #tpu.dot_dimension_numbers<[1], [0], [0], [1], [0, 0, 1, 1], [], []>} : vector<256x128xbf16>, vector<128x128xbf16>, vector<256x128xf32> -> vector<256x128xf32>
    %110 = arith.addf %31, %62 : vector<256x128xf32>
    %111 = arith.addf %110, %93 : vector<256x128xf32>
    %112 = arith.addf %111, %109 : vector<256x128xf32>
    %113 = vector.shape_cast %112 : vector<256x128xf32> to vector<16x16x128xf32>
    %c0_37 = arith.constant 0 : index
    %c0_38 = arith.constant 0 : index
    %c0_39 = arith.constant 0 : index
    %c0_40 = arith.constant 0 : index
    %114 = vector.load %arg8[%c0_37, %c0_38, %c0_39, %c0_40] : memref<1x16x16x128xf32, #tpu.memory_space<vmem>>, vector<1x16x16x128xf32>
    %115 = vector.shape_cast %114 : vector<1x16x16x128xf32> to vector<16x16x128xf32>
    %116 = vector.shape_cast %113 : vector<16x16x128xf32> to vector<1x16x16x128xf32>
    tpu.vector_store %arg8[%c0_37, %c0_38, %c0_39, %c0_40], %116 {strides = array<i32>} : memref<1x16x16x128xf32, #tpu.memory_space<vmem>>, vector<1x16x16x128xf32>,
    return
  }
  func.func @transform_0(%arg0: i32) -> (i32, i32, i32, i32) {
    %c0_i32 = arith.constant 0 : i32
    %c0_i32_0 = arith.constant 0 : i32
    %c0_i32_1 = arith.constant 0 : i32
    %c0_i32_2 = arith.constant 0 : i32
    return %arg0, %c0_i32, %c0_i32_0, %c0_i32_1 : i32, i32, i32, i32
  }
  func.func @transform_1(%arg0: i32) -> (i32, i32) {
    %c0_i32 = arith.constant 0 : i32
    %c0_i32_0 = arith.constant 0 : i32
    %c0_i32_1 = arith.constant 0 : i32
    return %c0_i32, %c0_i32_0 : i32, i32
  }
  func.func @transform_2(%arg0: i32) -> (i32, i32) {
    %c0_i32 = arith.constant 0 : i32
    %c0_i32_0 = arith.constant 0 : i32
    %c0_i32_1 = arith.constant 0 : i32
    return %c0_i32, %c0_i32_0 : i32, i32
  }
  func.func @transform_3(%arg0: i32) -> (i32, i32) {
    %c0_i32 = arith.constant 0 : i32
    %c0_i32_0 = arith.constant 0 : i32
    %c0_i32_1 = arith.constant 0 : i32
    return %c0_i32, %c0_i32_0 : i32, i32
  }
  func.func @transform_4(%arg0: i32) -> (i32, i32) {
    %c0_i32 = arith.constant 0 : i32
    %c0_i32_0 = arith.constant 0 : i32
    %c0_i32_1 = arith.constant 0 : i32
    return %c0_i32, %c0_i32_0 : i32, i32
  }
  func.func @transform_5(%arg0: i32) -> (i32, i32) {
    %c0_i32 = arith.constant 0 : i32
    %c0_i32_0 = arith.constant 0 : i32
    %c0_i32_1 = arith.constant 0 : i32
    return %c0_i32, %c0_i32_0 : i32, i32
  }
  func.func @transform_6(%arg0: i32) -> (i32, i32) {
    %c0_i32 = arith.constant 0 : i32
    %c0_i32_0 = arith.constant 0 : i32
    %c0_i32_1 = arith.constant 0 : i32
    return %c0_i32, %c0_i32_0 : i32, i32
  }
  func.func @transform_7(%arg0: i32) -> (i32, i32, i32, i32) {
    %c0_i32 = arith.constant 0 : i32
    %c0_i32_0 = arith.constant 0 : i32
    %c0_i32_1 = arith.constant 0 : i32
    %c0_i32_2 = arith.constant 0 : i32
    return %arg0, %c0_i32, %c0_i32_0, %c0_i32_1 : i32, i32, i32, i32
  }
}

</mosaic_0001>

<llo_original>
// kernel: convblock_forward.1
$region0: #{convblock_forward.1}
  #allocation0 [shape = 'u32[]', space=smem, size = 0x4, offset = 0x4, fixed_abs, tag = 'smem constant byte address 0x4 - core index']
  #allocation1 [shape = 'u32[144,128]{1,0:T(1,128)}', space=vmem, size = 0x12000, scoped, tag = 'internal scratch']
  %s0 = inlined_call_operand.vmem [shape: f32[2,16,16,128], index: 0, kind: input, shape index: {}]
  %s1 = inlined_call_operand.vmem [shape: f32[4,128], index: 1, kind: input, shape index: {}]
  %s2 = inlined_call_operand.vmem [shape: f32[4,128], index: 2, kind: input, shape index: {}]
  %s3 = inlined_call_operand.vmem [shape: bf16[1152,128], index: 3, kind: input, shape index: {}]
  %s4 = inlined_call_operand.vmem [shape: bf16[1152,128], index: 4, kind: input, shape index: {}]
  %s5 = inlined_call_operand.vmem [shape: bf16[1152,128], index: 5, kind: input, shape index: {}]
  %s6 = inlined_call_operand.vmem [shape: bf16[128,128], index: 6, kind: input, shape index: {}]
  %s7 = inlined_call_operand.vmem [shape: f32[2,16,16,128], index: 7, kind: output, shape index: {}]
  %s8 = sld [smem:[#allocation0]]
  $region61: #{convblock_forward.1} parent=0
    _
  %s10 = ssub.s32 1, %s8
  %s11 = scalar_select 0, %s10, %s8
  loop: start=0, step=1, limit=4
  $region2: #{convblock_forward.1} parent=0 // loop_pre_header
    _
  $region3: #{convblock_forward.1} parent=0 // loop_header
    %s13 = sphi 0, %s17
    %p14 = scmp.ge.s32.totalorder %s13, 4
    %s23 = sphi 0, %s25
    %s26 = sphi 0, %s23
    %s27 = sphi 0, %s26
    %s43 = sphi 0, %s27
    %s47 = sphi 0, %s47
    %s49 = sphi 0, %s47
    %s50 = sphi 0, %s49
    %s64 = sphi 0, %s50
    %s68 = sphi 0, %s68
    %s70 = sphi 0, %s68
    %s71 = sphi 0, %s70
    %s85 = sphi 0, %s71
    %s89 = sphi 0, %s89
    %s91 = sphi 0, %s89
    %s92 = sphi 0, %s91
    %s106 = sphi 0, %s92
    %s110 = sphi 0, %s110
    %s112 = sphi 0, %s110
    %s113 = sphi 0, %s112
    %s127 = sphi 0, %s113
    %s131 = sphi 0, %s131
    %s133 = sphi 0, %s131
    %s134 = sphi 0, %s133
    %s148 = sphi 0, %s134
    %s152 = sphi 0, %s152
    %s154 = sphi 0, %s152
    %s155 = sphi 0, %s154
    %s169 = sphi 0, %s155
    %s175 = sphi 0, %s177
    %s178 = sphi 0, %s175
    %s179 = sphi 0, %s178
    %s195 = sphi 0, %s179
  $region4: #{convblock_forward.1} parent=0 // loop_header_branch
    %16 = sbr.rel (%p14) target = $region8
  $region5: #{convblock_forward.1} parent=0 // loop_body
    %s18 = ssub.s32 %s13, 1
    %s19 = ssub.s32 %s13, 2
    %s20 = sadd.s32 %s13, 1
    %s21 = ssub.s32 %s13, %s20
    %p22 = scmp.eq.s32.totalorder %s21, 0
    %s24 = sadd.s32 %s23, 1
    %s25 = scalar_select %p22, %s23, %s24
    %p28 = pneg %p22
    %p29 = scmp.eq.s32.totalorder %s13, 1
    %p30 = por %p28, %p29
    %p31 = scmp.ne.s32.totalorder %s23, %s26
    %p32 = scmp.eq.s32.totalorder %s13, 0
    %p33 = por %p31, %p32
    %p34 = scmp.ne.s32.totalorder %s23, %s26
    %p35 = scmp.eq.s32.totalorder %s18, 1
    %p36 = por %p34, %p35
    %p37 = scmp.ne.s32.totalorder %s26, %s27
    %p38 = scmp.eq.s32.totalorder %s18, 0
    %p39 = por %p37, %p38
    %p40 = scmp.ne.s32.totalorder %s26, %s27
    %p41 = scmp.eq.s32.totalorder %s19, 1
    %p42 = por %p40, %p41
    %p44 = scmp.ne.s32.totalorder %s27, %s43
    %p45 = scmp.eq.s32.totalorder %s19, 0
    %p46 = por %p44, %p45
    %s48 = sadd.s32 %s47, 1
    %p51 = scmp.eq.s32.totalorder %s13, 1
    %p52 = scmp.ne.s32.totalorder %s47, %s49
    %p53 = scmp.eq.s32.totalorder %s13, 0
    %p54 = por %p52, %p53
    %p55 = scmp.ne.s32.totalorder %s47, %s49
    %p56 = scmp.eq.s32.totalorder %s18, 1
    %p57 = por %p55, %p56
    %p58 = scmp.ne.s32.totalorder %s49, %s50
    %p59 = scmp.eq.s32.totalorder %s18, 0
    %p60 = por %p58, %p59
    %p61 = scmp.ne.s32.totalorder %s49, %s50
    %p62 = scmp.eq.s32.totalorder %s19, 1
    %p63 = por %p61, %p62
    %p65 = scmp.ne.s32.totalorder %s50, %s64
    %p66 = scmp.eq.s32.totalorder %s19, 0
    %p67 = por %p65, %p66
    %s69 = sadd.s32 %s68, 1
    %p72 = scmp.eq.s32.totalorder %s13, 1
    %p73 = scmp.ne.s32.totalorder %s68, %s70
    %p74 = scmp.eq.s32.totalorder %s13, 0
    %p75 = por %p73, %p74
    %p76 = scmp.ne.s32.totalorder %s68, %s70
    %p77 = scmp.eq.s32.totalorder %s18, 1
    %p78 = por %p76, %p77
    %p79 = scmp.ne.s32.totalorder %s70, %s71
    %p80 = scmp.eq.s32.totalorder %s18, 0
    %p81 = por %p79, %p80
    %p82 = scmp.ne.s32.totalorder %s70, %s71
    %p83 = scmp.eq.s32.totalorder %s19, 1
    %p84 = por %p82, %p83
    %p86 = scmp.ne.s32.totalorder %s71, %s85
    %p87 = scmp.eq.s32.totalorder %s19, 0
    %p88 = por %p86, %p87
    %s90 = sadd.s32 %s89, 1
    %p93 = scmp.eq.s32.totalorder %s13, 1
    %p94 = scmp.ne.s32.totalorder %s89, %s91
    %p95 = scmp.eq.s32.totalorder %s13, 0
    %p96 = por %p94, %p95
    %p97 = scmp.ne.s32.totalorder %s89, %s91
    %p98 = scmp.eq.s32.totalorder %s18, 1
    %p99 = por %p97, %p98
    %p100 = scmp.ne.s32.totalorder %s91, %s92
    %p101 = scmp.eq.s32.totalorder %s18, 0
    %p102 = por %p100, %p101
    %p103 = scmp.ne.s32.totalorder %s91, %s92
    %p104 = scmp.eq.s32.totalorder %s19, 1
    %p105 = por %p103, %p104
    %p107 = scmp.ne.s32.totalorder %s92, %s106
    %p108 = scmp.eq.s32.totalorder %s19, 0
    %p109 = por %p107, %p108
    %s111 = sadd.s32 %s110, 1
    %p114 = scmp.eq.s32.totalorder %s13, 1
    %p115 = scmp.ne.s32.totalorder %s110, %s112
    %p116 = scmp.eq.s32.totalorder %s13, 0
    %p117 = por %p115, %p116
    %p118 = scmp.ne.s32.totalorder %s110, %s112
    %p119 = scmp.eq.s32.totalorder %s18, 1
    %p120 = por %p118, %p119
    %p121 = scmp.ne.s32.totalorder %s112, %s113
    %p122 = scmp.eq.s32.totalorder %s18, 0
    %p123 = por %p121, %p122
    %p124 = scmp.ne.s32.totalorder %s112, %s113
    %p125 = scmp.eq.s32.totalorder %s19, 1
    %p126 = por %p124, %p125
    %p128 = scmp.ne.s32.totalorder %s113, %s127
    %p129 = scmp.eq.s32.totalorder %s19, 0
    %p130 = por %p128, %p129
    %s132 = sadd.s32 %s131, 1
    %p135 = scmp.eq.s32.totalorder %s13, 1
    %p136 = scmp.ne.s32.totalorder %s131, %s133
    %p137 = scmp.eq.s32.totalorder %s13, 0
    %p138 = por %p136, %p137
    %p139 = scmp.ne.s32.totalorder %s131, %s133
    %p140 = scmp.eq.s32.totalorder %s18, 1
    %p141 = por %p139, %p140
    %p142 = scmp.ne.s32.totalorder %s133, %s134
    %p143 = scmp.eq.s32.totalorder %s18, 0
    %p144 = por %p142, %p143
    %p145 = scmp.ne.s32.totalorder %s133, %s134
    %p146 = scmp.eq.s32.totalorder %s19, 1
    %p147 = por %p145, %p146
    %p149 = scmp.ne.s32.totalorder %s134, %s148
    %p150 = scmp.eq.s32.totalorder %s19, 0
    %p151 = por %p149, %p150
    %s153 = sadd.s32 %s152, 1
    %p156 = scmp.eq.s32.totalorder %s13, 1
    %p157 = scmp.ne.s32.totalorder %s152, %s154
    %p158 = scmp.eq.s32.totalorder %s13, 0
    %p159 = por %p157, %p158
    %p160 = scmp.ne.s32.totalorder %s152, %s154
    %p161 = scmp.eq.s32.totalorder %s18, 1
    %p162 = por %p160, %p161
    %p163 = scmp.ne.s32.totalorder %s154, %s155
    %p164 = scmp.eq.s32.totalorder %s18, 0
    %p165 = por %p163, %p164
    %p166 = scmp.ne.s32.totalorder %s154, %s155
    %p167 = scmp.eq.s32.totalorder %s19, 1
    %p168 = por %p166, %p167
    %p170 = scmp.ne.s32.totalorder %s155, %s169
    %p171 = scmp.eq.s32.totalorder %s19, 0
    %p172 = por %p170, %p171
    %s173 = ssub.s32 %s13, %s20
    %p174 = scmp.eq.s32.totalorder %s173, 0
    %s176 = sadd.s32 %s175, 1
    %s177 = scalar_select %p174, %s175, %s176
    %p180 = pneg %p174
    %p181 = scmp.eq.s32.totalorder %s13, 1
    %p182 = por %p180, %p181
    %p183 = scmp.ne.s32.totalorder %s175, %s178
    %p184 = scmp.eq.s32.totalorder %s13, 0
    %p185 = por %p183, %p184
    %p186 = scmp.ne.s32.totalorder %s175, %s178
    %p187 = scmp.eq.s32.totalorder %s18, 1
    %p188 = por %p186, %p187
    %p189 = scmp.ne.s32.totalorder %s178, %s179
    %p190 = scmp.eq.s32.totalorder %s18, 0
    %p191 = por %p189, %p190
    %p192 = scmp.ne.s32.totalorder %s178, %s179
    %p193 = scmp.eq.s32.totalorder %s19, 1
    %p194 = por %p192, %p193
    %p196 = scmp.ne.s32.totalorder %s179, %s195
    %p197 = scmp.eq.s32.totalorder %s19, 0
    %p198 = por %p196, %p197
    %p199 = scmp.le.s32.totalorder 1, %s13
    %p200 = scmp.lt.s32.totalorder %s13, 3
    %p201 = pnand %p199, %p200
    %p202 = pneg %p201
    // Predicated region
    $region9: #{convblock_forward.1} parent=5 // pred_check
      _
    $region10: #{convblock_forward.1} parent=5 // pred_check_branch
      %204 = sbr.rel (%p201) target = $region12
    $region11: #{convblock_forward.1} parent=5 // pred_region
      %s205 = ssub.s32 %s13, 1
      // Predicated region
      $region13: #{convblock_forward.1} parent=11 // pred_check
        %p206 = pneg %p60
      $region14: #{convblock_forward.1} parent=11 // pred_check_branch
        %208 = sbr.rel (%p206) target = $region16
      $region15: #{convblock_forward.1} parent=11 // pred_region
        _
      $region16: #{convblock_forward.1} parent=11 // pred_fallthru
        _
      // Predicated region
      $region17: #{convblock_forward.1} parent=11 // pred_check
        %p209 = pneg %p81
      $region18: #{convblock_forward.1} parent=11 // pred_check_branch
        %211 = sbr.rel (%p209) target = $region20
      $region19: #{convblock_forward.1} parent=11 // pred_region
        _
      $region20: #{convblock_forward.1} parent=11 // pred_fallthru
        _
      // Predicated region
      $region21: #{convblock_forward.1} parent=11 // pred_check
        %p212 = pneg %p102
      $region22: #{convblock_forward.1} parent=11 // pred_check_branch
        %214 = sbr.rel (%p212) target = $region24
      $region23: #{convblock_forward.1} parent=11 // pred_region
        _
      $region24: #{convblock_forward.1} parent=11 // pred_fallthru
        _
      // Predicated region
      $region25: #{convblock_forward.1} parent=11 // pred_check
        %p215 = pneg %p123
      $region26: #{convblock_forward.1} parent=11 // pred_check_branch
        %217 = sbr.rel (%p215) target = $region28
      $region27: #{convblock_forward.1} parent=11 // pred_region
        _
      $region28: #{convblock_forward.1} parent=11 // pred_fallthru
        _
      // Predicated region
      $region29: #{convblock_forward.1} parent=11 // pred_check
        %p218 = pneg %p144
      $region30: #{convblock_forward.1} parent=11 // pred_check_branch
        %220 = sbr.rel (%p218) target = $region32
      $region31: #{convblock_forward.1} parent=11 // pred_region
        _
      $region32: #{convblock_forward.1} parent=11 // pred_fallthru
        _
      // Predicated region
      $region33: #{convblock_forward.1} parent=11 // pred_check
        %p221 = pneg %p165
      $region34: #{convblock_forward.1} parent=11 // pred_check_branch
        %223 = sbr.rel (%p221) target = $region36
      $region35: #{convblock_forward.1} parent=11 // pred_region
        _
      $region36: #{convblock_forward.1} parent=11 // pred_fallthru
        _
    $region12: #{convblock_forward.1} parent=5 // pred_fallthru
      _
    %p224 = scmp.lt.s32.totalorder %s13, 2
    // Predicated region
    $region37: #{convblock_forward.1} parent=5 // pred_check
      %p225 = pneg %p224
    $region38: #{convblock_forward.1} parent=5 // pred_check_branch
      %227 = sbr.rel (%p225) target = $region40
    $region39: #{convblock_forward.1} parent=5 // pred_region
      // Predicated region
      $region41: #{convblock_forward.1} parent=39 // pred_check
        %p228 = pneg %p33
      $region42: #{convblock_forward.1} parent=39 // pred_check_branch
        %230 = sbr.rel (%p228) target = $region44
      $region43: #{convblock_forward.1} parent=39 // pred_region
        %p231 = scmp.lt.s32.totalorder %s13, 1
        %s232 = scalar_select %p231, %s13, 1
        %s233 = smul.addr %s232, 32
        %s234 = smul.addr %s233, 8
        %s235 = scalar_lea.vmem %s0, %s234
      $region44: #{convblock_forward.1} parent=39 // pred_fallthru
        _
    $region40: #{convblock_forward.1} parent=5 // pred_fallthru
      _
    %p236 = scmp.le.s32.totalorder 1, %s13
    %p237 = scmp.lt.s32.totalorder %s13, 3
    %p238 = pnand %p236, %p237
    %p239 = pneg %p238
    // Predicated region
    $region45: #{convblock_forward.1} parent=5 // pred_check
      _
    $region46: #{convblock_forward.1} parent=5 // pred_check_branch
      %241 = sbr.rel (%p238) target = $region48
    $region47: #{convblock_forward.1} parent=5 // pred_region
      %s242 = ssub.s32 %s13, 1
      %p243 = scmp.lt.s32.totalorder %s18, 1
      %s244 = scalar_select %p243, %s18, 1
      %s245 = smul.addr %s244, 32
      %s246 = smul.addr %s245, 8
      %s247 = scalar_lea.vmem %s0, %s246
      %p248 = pneg %p39
      %p249 = pneg %p36
      %p250 = pneg %p60
      %p251 = pneg %p57
      %p252 = pneg %p81
      %p253 = pneg %p78
      %p254 = pneg %p102
      %p255 = pneg %p99
      %p256 = pneg %p123
      %p257 = pneg %p120
      %p258 = pneg %p144
      %p259 = pneg %p141
      %p260 = pneg %p165
      %p261 = pneg %p162
      %p262 = pneg %p191
      %p263 = pneg %p188
      %p264 = scmp.lt.s32.totalorder %s18, 1
      %s265 = scalar_select %p264, %s18, 1
      %s266 = smul.addr %s265, 32
      %s267 = smul.addr %s266, 8
      %s268 = scalar_lea.vmem %s7, %s267
      %p269 = scmp.lt.s32.totalorder %s18, 1
      %s270 = scalar_select %p269, %s18, 1
      %s271 = smul.addr %s270, 32
      %s272 = smul.addr %s271, 8
      %s273 = scalar_lea.vmem %s0, %s272
      %p274 = scmp.lt.s32.totalorder %s18, 1
      %s275 = scalar_select %p274, %s18, 1
      %s276 = smul.addr %s275, 32
      %s277 = smul.addr %s276, 8
      %s278 = scalar_lea.vmem %s7, %s277
      %v280 = vld [vmem:[%s273] sm:$0xff]
      %v281 = vld [vmem:[%s273 + $0x8] sm:$0xff]
      %v282 = vld [vmem:[%s273 + $0x10] sm:$0xff]
      %v283 = vld [vmem:[%s273 + $0x18] sm:$0xff]
      %v284 = vld [vmem:[%s273 + $0x20] sm:$0xff]
      %v285 = vld [vmem:[%s273 + $0x28] sm:$0xff]
      %v286 = vld [vmem:[%s273 + $0x30] sm:$0xff]
      %v287 = vld [vmem:[%s273 + $0x38] sm:$0xff]
      %v288 = vld [vmem:[%s273 + $0x40] sm:$0xff]
      %v289 = vld [vmem:[%s273 + $0x48] sm:$0xff]
      %v290 = vld [vmem:[%s273 + $0x50] sm:$0xff]
      %v291 = vld [vmem:[%s273 + $0x58] sm:$0xff]
      %v292 = vld [vmem:[%s273 + $0x60] sm:$0xff]
      %v293 = vld [vmem:[%s273 + $0x68] sm:$0xff]
      %v294 = vld [vmem:[%s273 + $0x70] sm:$0xff]
      %v295 = vld [vmem:[%s273 + $0x78] sm:$0xff]
      %v296 = vld [vmem:[%s273 + $0x80] sm:$0xff]
      %v297 = vld [vmem:[%s273 + $0x88] sm:$0xff]
      %v298 = vld [vmem:[%s273 + $0x90] sm:$0xff]
      %v299 = vld [vmem:[%s273 + $0x98] sm:$0xff]
      %v300 = vld [vmem:[%s273 + $0xa0] sm:$0xff]
      %v301 = vld [vmem:[%s273 + $0xa8] sm:$0xff]
      %v302 = vld [vmem:[%s273 + $0xb0] sm:$0xff]
      %v303 = vld [vmem:[%s273 + $0xb8] sm:$0xff]
      %v304 = vld [vmem:[%s273 + $0xc0] sm:$0xff]
      %v305 = vld [vmem:[%s273 + $0xc8] sm:$0xff]
      %v306 = vld [vmem:[%s273 + $0xd0] sm:$0xff]
      %v307 = vld [vmem:[%s273 + $0xd8] sm:$0xff]
      %v308 = vld [vmem:[%s273 + $0xe0] sm:$0xff]
      %v309 = vld [vmem:[%s273 + $0xe8] sm:$0xff]
      %v310 = vld [vmem:[%s273 + $0xf0] sm:$0xff]
      %v311 = vld [vmem:[%s273 + $0xf8] sm:$0xff]
      %v312 = vld [vmem:[%s1] sm:$0x1]
      %v313 = vlaneseq
      %v314 = vshrl.u32 %v313, 7
      %v315 = vsub.s32 0, %v314
      %v316 = vrot.slane %v312, %v315
      %v317 = vmul.f32 %v280, %v316
      %v318 = vmul.f32 %v281, %v316
      %v319 = vmul.f32 %v282, %v316
      %v320 = vmul.f32 %v283, %v316
      %v321 = vmul.f32 %v284, %v316
      %v322 = vmul.f32 %v285, %v316
      %v323 = vmul.f32 %v286, %v316
      %v324 = vmul.f32 %v287, %v316
      %v325 = vmul.f32 %v288, %v316
      %v326 = vmul.f32 %v289, %v316
      %v327 = vmul.f32 %v290, %v316
      %v328 = vmul.f32 %v291, %v316
      %v329 = vmul.f32 %v292, %v316
      %v330 = vmul.f32 %v293, %v316
      %v331 = vmul.f32 %v294, %v316
      %v332 = vmul.f32 %v295, %v316
      %v333 = vmul.f32 %v296, %v316
      %v334 = vmul.f32 %v297, %v316
      %v335 = vmul.f32 %v298, %v316
      %v336 = vmul.f32 %v299, %v316
      %v337 = vmul.f32 %v300, %v316
      %v338 = vmul.f32 %v301, %v316
      %v339 = vmul.f32 %v302, %v316
      %v340 = vmul.f32 %v303, %v316
      %v341 = vmul.f32 %v304, %v316
      %v342 = vmul.f32 %v305, %v316
      %v343 = vmul.f32 %v306, %v316
      %v344 = vmul.f32 %v307, %v316
      %v345 = vmul.f32 %v308, %v316
      %v346 = vmul.f32 %v309, %v316
      %v347 = vmul.f32 %v310, %v316
      %v348 = vmul.f32 %v311, %v316
      %v349 = vld [vmem:[%s1 + $0x1] sm:$0x1]
      %v350 = vlaneseq
      %v351 = vshrl.u32 %v350, 7
      %v352 = vsub.s32 0, %v351
      %v353 = vrot.slane %v349, %v352
      %v354 = vadd.f32 %v317, %v353
      %v355 = vadd.f32 %v318, %v353
      %v356 = vadd.f32 %v319, %v353
      %v357 = vadd.f32 %v320, %v353
      %v358 = vadd.f32 %v321, %v353
      %v359 = vadd.f32 %v322, %v353
      %v360 = vadd.f32 %v323, %v353
      %v361 = vadd.f32 %v324, %v353
      %v362 = vadd.f32 %v325, %v353
      %v363 = vadd.f32 %v326, %v353
      %v364 = vadd.f32 %v327, %v353
      %v365 = vadd.f32 %v328, %v353
      %v366 = vadd.f32 %v329, %v353
      %v367 = vadd.f32 %v330, %v353
      %v368 = vadd.f32 %v331, %v353
      %v369 = vadd.f32 %v332, %v353
      %v370 = vadd.f32 %v333, %v353
      %v371 = vadd.f32 %v334, %v353
      %v372 = vadd.f32 %v335, %v353
      %v373 = vadd.f32 %v336, %v353
      %v374 = vadd.f32 %v337, %v353
      %v375 = vadd.f32 %v338, %v353
      %v376 = vadd.f32 %v339, %v353
      %v377 = vadd.f32 %v340, %v353
      %v378 = vadd.f32 %v341, %v353
      %v379 = vadd.f32 %v342, %v353
      %v380 = vadd.f32 %v343, %v353
      %v381 = vadd.f32 %v344, %v353
      %v382 = vadd.f32 %v345, %v353
      %v383 = vadd.f32 %v346, %v353
      %v384 = vadd.f32 %v347, %v353
      %v385 = vadd.f32 %v348, %v353
      %v386 = vmax.f32 %v354, 0.0
      %v387 = vmax.f32 %v355, 0.0
      %v388 = vmax.f32 %v356, 0.0
      %v389 = vmax.f32 %v357, 0.0
      %v390 = vmax.f32 %v358, 0.0
      %v391 = vmax.f32 %v359, 0.0
      %v392 = vmax.f32 %v360, 0.0
      %v393 = vmax.f32 %v361, 0.0
      %v394 = vmax.f32 %v362, 0.0
      %v395 = vmax.f32 %v363, 0.0
      %v396 = vmax.f32 %v364, 0.0
      %v397 = vmax.f32 %v365, 0.0
      %v398 = vmax.f32 %v366, 0.0
      %v399 = vmax.f32 %v367, 0.0
      %v400 = vmax.f32 %v368, 0.0
      %v401 = vmax.f32 %v369, 0.0
      %v402 = vmax.f32 %v370, 0.0
      %v403 = vmax.f32 %v371, 0.0
      %v404 = vmax.f32 %v372, 0.0
      %v405 = vmax.f32 %v373, 0.0
      %v406 = vmax.f32 %v374, 0.0
      %v407 = vmax.f32 %v375, 0.0
      %v408 = vmax.f32 %v376, 0.0
      %v409 = vmax.f32 %v377, 0.0
      %v410 = vmax.f32 %v378, 0.0
      %v411 = vmax.f32 %v379, 0.0
      %v412 = vmax.f32 %v380, 0.0
      %v413 = vmax.f32 %v381, 0.0
      %v414 = vmax.f32 %v382, 0.0
      %v415 = vmax.f32 %v383, 0.0
      %v416 = vmax.f32 %v384, 0.0
      %v417 = vmax.f32 %v385, 0.0
      %v418 = vpack.c.bf16 %v387, %v386
      %v419 = vpack.c.bf16 %v389, %v388
      %v420 = vpack.c.bf16 %v391, %v390
      %v421 = vpack.c.bf16 %v393, %v392
      %v422 = vpack.c.bf16 %v395, %v394
      %v423 = vpack.c.bf16 %v397, %v396
      %v424 = vpack.c.bf16 %v399, %v398
      %v425 = vpack.c.bf16 %v401, %v400
      %v426 = vpack.c.bf16 %v403, %v402
      %v427 = vpack.c.bf16 %v405, %v404
      %v428 = vpack.c.bf16 %v407, %v406
      %v429 = vpack.c.bf16 %v409, %v408
      %v430 = vpack.c.bf16 %v411, %v410
      %v431 = vpack.c.bf16 %v413, %v412
      %v432 = vpack.c.bf16 %v415, %v414
      %v433 = vpack.c.bf16 %v417, %v416
      %v434 = vld [vmem:[%s3] sm:$0xf]
      %v435 = vld [vmem:[%s3 + $0x4] sm:$0xf]
      %v436 = vld [vmem:[%s3 + $0x8] sm:$0xf]
      %v437 = vld [vmem:[%s3 + $0xc] sm:$0xf]
      %v438 = vld [vmem:[%s3 + $0x10] sm:$0xf]
      %v439 = vld [vmem:[%s3 + $0x14] sm:$0xf]
      %v440 = vld [vmem:[%s3 + $0x18] sm:$0xf]
      %v441 = vld [vmem:[%s3 + $0x1c] sm:$0xf]
      %v442 = vld [vmem:[%s3 + $0x20] sm:$0xf]
      %v443 = vld [vmem:[%s3 + $0x24] sm:$0xf]
      %v444 = vld [vmem:[%s3 + $0x28] sm:$0xf]
      %v445 = vld [vmem:[%s3 + $0x2c] sm:$0xf]
      %v446 = vld [vmem:[%s3 + $0x30] sm:$0xf]
      %v447 = vld [vmem:[%s3 + $0x34] sm:$0xf]
      %v448 = vld [vmem:[%s3 + $0x38] sm:$0xf]
      %v449 = vld [vmem:[%s3 + $0x3c] sm:$0xf]
      %v450 = vld [vmem:[%s3 + $0x40] sm:$0xf]
      %v451 = vld [vmem:[%s3 + $0x44] sm:$0xf]
      %v452 = vld [vmem:[%s3 + $0x48] sm:$0xf]
      %v453 = vld [vmem:[%s3 + $0x4c] sm:$0xf]
      %v454 = vld [vmem:[%s3 + $0x50] sm:$0xf]
      %v455 = vld [vmem:[%s3 + $0x54] sm:$0xf]
      %v456 = vld [vmem:[%s3 + $0x58] sm:$0xf]
      %v457 = vld [vmem:[%s3 + $0x5c] sm:$0xf]
      %v458 = vld [vmem:[%s3 + $0x60] sm:$0xf]
      %v459 = vld [vmem:[%s3 + $0x64] sm:$0xf]
      %v460 = vld [vmem:[%s3 + $0x68] sm:$0xf]
      %v461 = vld [vmem:[%s3 + $0x6c] sm:$0xf]
      %v462 = vld [vmem:[%s3 + $0x70] sm:$0xf]
      %v463 = vld [vmem:[%s3 + $0x74] sm:$0xf]
      %v464 = vld [vmem:[%s3 + $0x78] sm:$0xf]
      %v465 = vld [vmem:[%s3 + $0x7c] sm:$0xf]
      %v466 = vld [vmem:[%s3 + $0x80] sm:$0xf]
      %v467 = vld [vmem:[%s3 + $0x84] sm:$0xf]
      %v468 = vld [vmem:[%s3 + $0x88] sm:$0xf]
      %v469 = vld [vmem:[%s3 + $0x8c] sm:$0xf]
      %v470 = vld [vmem:[%s3 + $0x90] sm:$0xf]
      %v471 = vld [vmem:[%s3 + $0x94] sm:$0xf]
      %v472 = vld [vmem:[%s3 + $0x98] sm:$0xf]
      %v473 = vld [vmem:[%s3 + $0x9c] sm:$0xf]
      %v474 = vld [vmem:[%s3 + $0xa0] sm:$0xf]
      %v475 = vld [vmem:[%s3 + $0xa4] sm:$0xf]
      %v476 = vld [vmem:[%s3 + $0xa8] sm:$0xf]
      %v477 = vld [vmem:[%s3 + $0xac] sm:$0xf]
      %v478 = vld [vmem:[%s3 + $0xb0] sm:$0xf]
      %v479 = vld [vmem:[%s3 + $0xb4] sm:$0xf]
      %v480 = vld [vmem:[%s3 + $0xb8] sm:$0xf]
      %v481 = vld [vmem:[%s3 + $0xbc] sm:$0xf]
      %v482 = vld [vmem:[%s3 + $0xc0] sm:$0xf]
      %v483 = vld [vmem:[%s3 + $0xc4] sm:$0xf]
      %v484 = vld [vmem:[%s3 + $0xc8] sm:$0xf]
      %v485 = vld [vmem:[%s3 + $0xcc] sm:$0xf]
      %v486 = vld [vmem:[%s3 + $0xd0] sm:$0xf]
      %v487 = vld [vmem:[%s3 + $0xd4] sm:$0xf]
      %v488 = vld [vmem:[%s3 + $0xd8] sm:$0xf]
      %v489 = vld [vmem:[%s3 + $0xdc] sm:$0xf]
      %v490 = vld [vmem:[%s3 + $0xe0] sm:$0xf]
      %v491 = vld [vmem:[%s3 + $0xe4] sm:$0xf]
      %v492 = vld [vmem:[%s3 + $0xe8] sm:$0xf]
      %v493 = vld [vmem:[%s3 + $0xec] sm:$0xf]
      %v494 = vld [vmem:[%s3 + $0xf0] sm:$0xf]
      %v495 = vld [vmem:[%s3 + $0xf4] sm:$0xf]
      %v496 = vld [vmem:[%s3 + $0xf8] sm:$0xf]
      %v497 = vld [vmem:[%s3 + $0xfc] sm:$0xf]
      %v498 = vld [vmem:[%s3 + $0x100] sm:$0xf]
      %v499 = vld [vmem:[%s3 + $0x104] sm:$0xf]
      %v500 = vld [vmem:[%s3 + $0x108] sm:$0xf]
      %v501 = vld [vmem:[%s3 + $0x10c] sm:$0xf]
      %v502 = vld [vmem:[%s3 + $0x110] sm:$0xf]
      %v503 = vld [vmem:[%s3 + $0x114] sm:$0xf]
      %v504 = vld [vmem:[%s3 + $0x118] sm:$0xf]
      %v505 = vld [vmem:[%s3 + $0x11c] sm:$0xf]
      %v506 = vld [vmem:[%s3 + $0x120] sm:$0xf]
      %v507 = vld [vmem:[%s3 + $0x124] sm:$0xf]
      %v508 = vld [vmem:[%s3 + $0x128] sm:$0xf]
      %v509 = vld [vmem:[%s3 + $0x12c] sm:$0xf]
      %v510 = vld [vmem:[%s3 + $0x130] sm:$0xf]
      %v511 = vld [vmem:[%s3 + $0x134] sm:$0xf]
      %v512 = vld [vmem:[%s3 + $0x138] sm:$0xf]
      %v513 = vld [vmem:[%s3 + $0x13c] sm:$0xf]
      %v514 = vld [vmem:[%s3 + $0x140] sm:$0xf]
      %v515 = vld [vmem:[%s3 + $0x144] sm:$0xf]
      %v516 = vld [vmem:[%s3 + $0x148] sm:$0xf]
      %v517 = vld [vmem:[%s3 + $0x14c] sm:$0xf]
      %v518 = vld [vmem:[%s3 + $0x150] sm:$0xf]
      %v519 = vld [vmem:[%s3 + $0x154] sm:$0xf]
      %v520 = vld [vmem:[%s3 + $0x158] sm:$0xf]
      %v521 = vld [vmem:[%s3 + $0x15c] sm:$0xf]
      %v522 = vld [vmem:[%s3 + $0x160] sm:$0xf]
      %v523 = vld [vmem:[%s3 + $0x164] sm:$0xf]
      %v524 = vld [vmem:[%s3 + $0x168] sm:$0xf]
      %v525 = vld [vmem:[%s3 + $0x16c] sm:$0xf]
      %v526 = vld [vmem:[%s3 + $0x170] sm:$0xf]
      %v527 = vld [vmem:[%s3 + $0x174] sm:$0xf]
      %v528 = vld [vmem:[%s3 + $0x178] sm:$0xf]
      %v529 = vld [vmem:[%s3 + $0x17c] sm:$0xf]
      %v530 = vld [vmem:[%s3 + $0x180] sm:$0xf]
      %v531 = vld [vmem:[%s3 + $0x184] sm:$0xf]
      %v532 = vld [vmem:[%s3 + $0x188] sm:$0xf]
      %v533 = vld [vmem:[%s3 + $0x18c] sm:$0xf]
      %v534 = vld [vmem:[%s3 + $0x190] sm:$0xf]
      %v535 = vld [vmem:[%s3 + $0x194] sm:$0xf]
      %v536 = vld [vmem:[%s3 + $0x198] sm:$0xf]
      %v537 = vld [vmem:[%s3 + $0x19c] sm:$0xf]
      %v538 = vld [vmem:[%s3 + $0x1a0] sm:$0xf]
      %v539 = vld [vmem:[%s3 + $0x1a4] sm:$0xf]
      %v540 = vld [vmem:[%s3 + $0x1a8] sm:$0xf]
      %v541 = vld [vmem:[%s3 + $0x1ac] sm:$0xf]
      %v542 = vld [vmem:[%s3 + $0x1b0] sm:$0xf]
      %v543 = vld [vmem:[%s3 + $0x1b4] sm:$0xf]
      %v544 = vld [vmem:[%s3 + $0x1b8] sm:$0xf]
      %v545 = vld [vmem:[%s3 + $0x1bc] sm:$0xf]
      %v546 = vld [vmem:[%s3 + $0x1c0] sm:$0xf]
      %v547 = vld [vmem:[%s3 + $0x1c4] sm:$0xf]
      %v548 = vld [vmem:[%s3 + $0x1c8] sm:$0xf]
      %v549 = vld [vmem:[%s3 + $0x1cc] sm:$0xf]
      %v550 = vld [vmem:[%s3 + $0x1d0] sm:$0xf]
      %v551 = vld [vmem:[%s3 + $0x1d4] sm:$0xf]
      %v552 = vld [vmem:[%s3 + $0x1d8] sm:$0xf]
      %v553 = vld [vmem:[%s3 + $0x1dc] sm:$0xf]
      %v554 = vld [vmem:[%s3 + $0x1e0] sm:$0xf]
      %v555 = vld [vmem:[%s3 + $0x1e4] sm:$0xf]
      %v556 = vld [vmem:[%s3 + $0x1e8] sm:$0xf]
      %v557 = vld [vmem:[%s3 + $0x1ec] sm:$0xf]
      %v558 = vld [vmem:[%s3 + $0x1f0] sm:$0xf]
      %v559 = vld [vmem:[%s3 + $0x1f4] sm:$0xf]
      %v560 = vld [vmem:[%s3 + $0x1f8] sm:$0xf]
      %v561 = vld [vmem:[%s3 + $0x1fc] sm:$0xf]
      %v562 = vld [vmem:[%s3 + $0x200] sm:$0xf]
      %v563 = vld [vmem:[%s3 + $0x204] sm:$0xf]
      %v564 = vld [vmem:[%s3 + $0x208] sm:$0xf]
      %v565 = vld [vmem:[%s3 + $0x20c] sm:$0xf]
      %v566 = vld [vmem:[%s3 + $0x210] sm:$0xf]
      %v567 = vld [vmem:[%s3 + $0x214] sm:$0xf]
      %v568 = vld [vmem:[%s3 + $0x218] sm:$0xf]
      %v569 = vld [vmem:[%s3 + $0x21c] sm:$0xf]
      %v570 = vld [vmem:[%s3 + $0x220] sm:$0xf]
      %v571 = vld [vmem:[%s3 + $0x224] sm:$0xf]
      %v572 = vld [vmem:[%s3 + $0x228] sm:$0xf]
      %v573 = vld [vmem:[%s3 + $0x22c] sm:$0xf]
      %v574 = vld [vmem:[%s3 + $0x230] sm:$0xf]
      %v575 = vld [vmem:[%s3 + $0x234] sm:$0xf]
      %v576 = vld [vmem:[%s3 + $0x238] sm:$0xf]
      %v577 = vld [vmem:[%s3 + $0x23c] sm:$0xf]
      %v579 = vshrl.u32 0, 16
      %v581 = vrot.slane %v579, 7
      %v582 = vshll.u32 0, 16
      %v584 = vor.u32 %v581, %v582
      %v586 = vshrl.u32 %v418, 16
      %v588 = vrot.slane %v586, 7
      %v589 = vshll.u32 %v418, 16
      %v591 = vor.u32 %v588, %v589
      %v593 = vshrl.u32 %v419, 16
      %v595 = vrot.slane %v593, 7
      %v596 = vshll.u32 %v419, 16
      %v598 = vor.u32 %v595, %v596
      %v600 = vshrl.u32 %v420, 16
      %v602 = vrot.slane %v600, 7
      %v603 = vshll.u32 %v420, 16
      %v605 = vor.u32 %v602, %v603
      %v607 = vshrl.u32 %v421, 16
      %v609 = vrot.slane %v607, 7
      %v610 = vshll.u32 %v421, 16
      %v612 = vor.u32 %v609, %v610
      %v614 = vshrl.u32 %v422, 16
      %v616 = vrot.slane %v614, 7
      %v617 = vshll.u32 %v422, 16
      %v619 = vor.u32 %v616, %v617
      %v621 = vshrl.u32 %v423, 16
      %v623 = vrot.slane %v621, 7
      %v624 = vshll.u32 %v423, 16
      %v626 = vor.u32 %v623, %v624
      %v628 = vshrl.u32 %v424, 16
      %v630 = vrot.slane %v628, 7
      %v631 = vshll.u32 %v424, 16
      %v633 = vor.u32 %v630, %v631
      %v635 = vshrl.u32 %v425, 16
      %v637 = vrot.slane %v635, 7
      %v638 = vshll.u32 %v425, 16
      %v640 = vor.u32 %v637, %v638
      %v642 = vshrl.u32 %v426, 16
      %v644 = vrot.slane %v642, 7
      %v645 = vshll.u32 %v426, 16
      %v647 = vor.u32 %v644, %v645
      %v649 = vshrl.u32 %v427, 16
      %v651 = vrot.slane %v649, 7
      %v652 = vshll.u32 %v427, 16
      %v654 = vor.u32 %v651, %v652
      %v656 = vshrl.u32 %v428, 16
      %v658 = vrot.slane %v656, 7
      %v659 = vshll.u32 %v428, 16
      %v661 = vor.u32 %v658, %v659
      %v663 = vshrl.u32 %v429, 16
      %v665 = vrot.slane %v663, 7
      %v666 = vshll.u32 %v429, 16
      %v668 = vor.u32 %v665, %v666
      %v670 = vshrl.u32 %v430, 16
      %v672 = vrot.slane %v670, 7
      %v673 = vshll.u32 %v430, 16
      %v675 = vor.u32 %v672, %v673
      %v677 = vshrl.u32 %v431, 16
      %v679 = vrot.slane %v677, 7
      %v680 = vshll.u32 %v431, 16
      %v682 = vor.u32 %v679, %v680
      %v684 = vshrl.u32 %v432, 16
      %v686 = vrot.slane %v684, 7
      %v687 = vshll.u32 %v432, 16
      %v689 = vor.u32 %v686, %v687
      %v691 = vshrl.u32 %v433, 16
      %v693 = vrot.slane %v691, 7
      %v694 = vshll.u32 %v433, 16
      %v696 = vor.u32 %v693, %v694
      %vm731 = vcmask 1040384
      %vm732 = vsmask.f32 256
      %vm733 = vmand %vm731, %vm732
      %v734 = vsel %vm733, 0, %v584
      %v735 = vsel %vm733, 0, %v591
      %v736 = vsel %vm733, 0, %v598
      %v737 = vsel %vm733, 0, %v605
      %v738 = vsel %vm733, 0, %v612
      %v739 = vsel %vm733, 0, %v619
      %v740 = vsel %vm733, 0, %v626
      %v741 = vsel %vm733, 0, %v633
      %v742 = vsel %vm733, 0, %v640
      %v743 = vsel %vm733, 0, %v647
      %v744 = vsel %vm733, 0, %v654
      %v745 = vsel %vm733, 0, %v661
      %v746 = vsel %vm733, 0, %v668
      %v747 = vsel %vm733, 0, %v675
      %v748 = vsel %vm733, 0, %v682
      %v749 = vsel %vm733, 0, %v689
      %v750 = vsel %vm733, 0, %v696
      %v751 = vsel %vm733, %v581, 0
      %v752 = vsel %vm733, %v588, 0
      %v753 = vsel %vm733, %v595, 0
      %v754 = vsel %vm733, %v602, 0
      %v755 = vsel %vm733, %v609, 0
      %v756 = vsel %vm733, %v616, 0
      %v757 = vsel %vm733, %v623, 0
      %v758 = vsel %vm733, %v630, 0
      %v759 = vsel %vm733, %v637, 0
      %v760 = vsel %vm733, %v644, 0
      %v761 = vsel %vm733, %v651, 0
      %v762 = vsel %vm733, %v658, 0
      %v763 = vsel %vm733, %v665, 0
      %v764 = vsel %vm733, %v672, 0
      %v765 = vsel %vm733, %v679, 0
      %v766 = vsel %vm733, %v686, 0
      %v767 = vsel %vm733, %v693, 0
      %vm768 = vsmask.f32 7424
      %v770 = vshrl.u32 %v734, 16
      %v772 = vshll.u32 %v734, 16
      %v774 = vrot.slane %v772, 1
      %v775 = vor.u32 %v770, %v774
      %v777 = vshll.u32 %v751, 16
      %v779 = vrot.slane %v777, 1
      %v780 = vsel %vm768, %v775, %v779
      %v782 = vshrl.u32 %v735, 16
      %v784 = vshll.u32 %v735, 16
      %v786 = vrot.slane %v784, 1
      %v787 = vor.u32 %v782, %v786
      %v789 = vshll.u32 %v752, 16
      %v791 = vrot.slane %v789, 1
      %v792 = vsel %vm768, %v787, %v791
      %v794 = vshrl.u32 %v736, 16
      %v796 = vshll.u32 %v736, 16
      %v798 = vrot.slane %v796, 1
      %v799 = vor.u32 %v794, %v798
      %v801 = vshll.u32 %v753, 16
      %v803 = vrot.slane %v801, 1
      %v804 = vsel %vm768, %v799, %v803
      %v806 = vshrl.u32 %v737, 16
      %v808 = vshll.u32 %v737, 16
      %v810 = vrot.slane %v808, 1
      %v811 = vor.u32 %v806, %v810
      %v813 = vshll.u32 %v754, 16
      %v815 = vrot.slane %v813, 1
      %v816 = vsel %vm768, %v811, %v815
      %v818 = vshrl.u32 %v738, 16
      %v820 = vshll.u32 %v738, 16
      %v822 = vrot.slane %v820, 1
      %v823 = vor.u32 %v818, %v822
      %v825 = vshll.u32 %v755, 16
      %v827 = vrot.slane %v825, 1
      %v828 = vsel %vm768, %v823, %v827
      %v830 = vshrl.u32 %v739, 16
      %v832 = vshll.u32 %v739, 16
      %v834 = vrot.slane %v832, 1
      %v835 = vor.u32 %v830, %v834
      %v837 = vshll.u32 %v756, 16
      %v839 = vrot.slane %v837, 1
      %v840 = vsel %vm768, %v835, %v839
      %v842 = vshrl.u32 %v740, 16
      %v844 = vshll.u32 %v740, 16
      %v846 = vrot.slane %v844, 1
      %v847 = vor.u32 %v842, %v846
      %v849 = vshll.u32 %v757, 16
      %v851 = vrot.slane %v849, 1
      %v852 = vsel %vm768, %v847, %v851
      %v854 = vshrl.u32 %v741, 16
      %v856 = vshll.u32 %v741, 16
      %v858 = vrot.slane %v856, 1
      %v859 = vor.u32 %v854, %v858
      %v861 = vshll.u32 %v758, 16
      %v863 = vrot.slane %v861, 1
      %v864 = vsel %vm768, %v859, %v863
      %v866 = vshrl.u32 %v742, 16
      %v868 = vshll.u32 %v742, 16
      %v870 = vrot.slane %v868, 1
      %v871 = vor.u32 %v866, %v870
      %v873 = vshll.u32 %v759, 16
      %v875 = vrot.slane %v873, 1
      %v876 = vsel %vm768, %v871, %v875
      %v878 = vshrl.u32 %v743, 16
      %v880 = vshll.u32 %v743, 16
      %v882 = vrot.slane %v880, 1
      %v883 = vor.u32 %v878, %v882
      %v885 = vshll.u32 %v760, 16
      %v887 = vrot.slane %v885, 1
      %v888 = vsel %vm768, %v883, %v887
      %v890 = vshrl.u32 %v744, 16
      %v892 = vshll.u32 %v744, 16
      %v894 = vrot.slane %v892, 1
      %v895 = vor.u32 %v890, %v894
      %v897 = vshll.u32 %v761, 16
      %v899 = vrot.slane %v897, 1
      %v900 = vsel %vm768, %v895, %v899
      %v902 = vshrl.u32 %v745, 16
      %v904 = vshll.u32 %v745, 16
      %v906 = vrot.slane %v904, 1
      %v907 = vor.u32 %v902, %v906
      %v909 = vshll.u32 %v762, 16
      %v911 = vrot.slane %v909, 1
      %v912 = vsel %vm768, %v907, %v911
      %v914 = vshrl.u32 %v746, 16
      %v916 = vshll.u32 %v746, 16
      %v918 = vrot.slane %v916, 1
      %v919 = vor.u32 %v914, %v918
      %v921 = vshll.u32 %v763, 16
      %v923 = vrot.slane %v921, 1
      %v924 = vsel %vm768, %v919, %v923
      %v926 = vshrl.u32 %v747, 16
      %v928 = vshll.u32 %v747, 16
      %v930 = vrot.slane %v928, 1
      %v931 = vor.u32 %v926, %v930
      %v933 = vshll.u32 %v764, 16
      %v935 = vrot.slane %v933, 1
      %v936 = vsel %vm768, %v931, %v935
      %v938 = vshrl.u32 %v748, 16
      %v940 = vshll.u32 %v748, 16
      %v942 = vrot.slane %v940, 1
      %v943 = vor.u32 %v938, %v942
      %v945 = vshll.u32 %v765, 16
      %v947 = vrot.slane %v945, 1
      %v948 = vsel %vm768, %v943, %v947
      %v950 = vshrl.u32 %v749, 16
      %v952 = vshll.u32 %v749, 16
      %v954 = vrot.slane %v952, 1
      %v955 = vor.u32 %v950, %v954
      %v957 = vshll.u32 %v766, 16
      %v959 = vrot.slane %v957, 1
      %v960 = vsel %vm768, %v955, %v959
      %vm1009 = vcmask 1046528
      %v1010 = vrot.slane %v734, 1
      %v1011 = vrot.slane %v751, 1
      %v1012 = vsel %vm1009, %v1010, %v1011
      %v1013 = vrot.slane %v735, 1
      %v1014 = vrot.slane %v752, 1
      %v1015 = vsel %vm1009, %v1013, %v1014
      %v1016 = vrot.slane %v736, 1
      %v1017 = vrot.slane %v753, 1
      %v1018 = vsel %vm1009, %v1016, %v1017
      %v1019 = vrot.slane %v737, 1
      %v1020 = vrot.slane %v754, 1
      %v1021 = vsel %vm1009, %v1019, %v1020
      %v1022 = vrot.slane %v738, 1
      %v1023 = vrot.slane %v755, 1
      %v1024 = vsel %vm1009, %v1022, %v1023
      %v1025 = vrot.slane %v739, 1
      %v1026 = vrot.slane %v756, 1
      %v1027 = vsel %vm1009, %v1025, %v1026
      %v1028 = vrot.slane %v740, 1
      %v1029 = vrot.slane %v757, 1
      %v1030 = vsel %vm1009, %v1028, %v1029
      %v1031 = vrot.slane %v741, 1
      %v1032 = vrot.slane %v758, 1
      %v1033 = vsel %vm1009, %v1031, %v1032
      %v1034 = vrot.slane %v742, 1
      %v1035 = vrot.slane %v759, 1
      %v1036 = vsel %vm1009, %v1034, %v1035
      %v1037 = vrot.slane %v743, 1
      %v1038 = vrot.slane %v760, 1
      %v1039 = vsel %vm1009, %v1037, %v1038
      %v1040 = vrot.slane %v744, 1
      %v1041 = vrot.slane %v761, 1
      %v1042 = vsel %vm1009, %v1040, %v1041
      %v1043 = vrot.slane %v745, 1
      %v1044 = vrot.slane %v762, 1
      %v1045 = vsel %vm1009, %v1043, %v1044
      %v1046 = vrot.slane %v746, 1
      %v1047 = vrot.slane %v763, 1
      %v1048 = vsel %vm1009, %v1046, %v1047
      %v1049 = vrot.slane %v747, 1
      %v1050 = vrot.slane %v764, 1
      %v1051 = vsel %vm1009, %v1049, %v1050
      %v1052 = vrot.slane %v748, 1
      %v1053 = vrot.slane %v765, 1
      %v1054 = vsel %vm1009, %v1052, %v1053
      %v1055 = vrot.slane %v749, 1
      %v1056 = vrot.slane %v766, 1
      %v1057 = vsel %vm1009, %v1055, %v1056
      %v1075 = vshrl.u32 %v750, 16
      %v1077 = vshll.u32 %v750, 16
      %v1079 = vrot.slane %v1077, 1
      %v1080 = vor.u32 %v1075, %v1079
      %v1082 = vshll.u32 %v767, 16
      %v1084 = vrot.slane %v1082, 1
      %v1085 = vsel %vm768, %v1080, %v1084
      %v1089 = vrot.slane %v750, 1
      %v1090 = vrot.slane %v767, 1
      %v1091 = vsel %vm1009, %v1089, %v1090
      %v1237 = vunpack.c.l.b16 %v434
      %v1238 = vunpack.c.l.b16 %v435
      %v1239 = vunpack.c.l.b16 %v436
      %v1240 = vunpack.c.l.b16 %v437
      %v1241 = vunpack.c.l.b16 %v438
      %v1242 = vunpack.c.l.b16 %v439
      %v1243 = vunpack.c.l.b16 %v440
      %v1244 = vunpack.c.l.b16 %v441
      %v1245 = vunpack.c.l.b16 %v442
      %v1246 = vunpack.c.l.b16 %v443
      %v1247 = vunpack.c.l.b16 %v444
      %v1248 = vunpack.c.l.b16 %v445
      %v1249 = vunpack.c.l.b16 %v446
      %v1250 = vunpack.c.l.b16 %v447
      %v1251 = vunpack.c.l.b16 %v448
      %v1252 = vunpack.c.l.b16 %v449
      %v1253 = vunpack.c.l.b16 %v450
      %v1254 = vunpack.c.l.b16 %v451
      %v1255 = vunpack.c.l.b16 %v452
      %v1256 = vunpack.c.l.b16 %v453
      %v1257 = vunpack.c.l.b16 %v454
      %v1258 = vunpack.c.l.b16 %v455
      %v1259 = vunpack.c.l.b16 %v456
      %v1260 = vunpack.c.l.b16 %v457
      %v1261 = vunpack.c.l.b16 %v458
      %v1262 = vunpack.c.l.b16 %v459
      %v1263 = vunpack.c.l.b16 %v460
      %v1264 = vunpack.c.l.b16 %v461
      %v1265 = vunpack.c.l.b16 %v462
      %v1266 = vunpack.c.l.b16 %v463
      %v1267 = vunpack.c.l.b16 %v464
      %v1268 = vunpack.c.l.b16 %v465
      %v1269 = vunpack.c.l.b16 %v466
      %v1270 = vunpack.c.l.b16 %v467
      %v1271 = vunpack.c.l.b16 %v468
      %v1272 = vunpack.c.l.b16 %v469
      %v1273 = vunpack.c.l.b16 %v470
      %v1274 = vunpack.c.l.b16 %v471
      %v1275 = vunpack.c.l.b16 %v472
      %v1276 = vunpack.c.l.b16 %v473
      %v1277 = vunpack.c.l.b16 %v474
      %v1278 = vunpack.c.l.b16 %v475
      %v1279 = vunpack.c.l.b16 %v476
      %v1280 = vunpack.c.l.b16 %v477
      %v1281 = vunpack.c.l.b16 %v478
      %v1282 = vunpack.c.l.b16 %v479
      %v1283 = vunpack.c.l.b16 %v480
      %v1284 = vunpack.c.l.b16 %v481
      %v1285 = vunpack.c.l.b16 %v482
      %v1286 = vunpack.c.l.b16 %v483
      %v1287 = vunpack.c.l.b16 %v484
      %v1288 = vunpack.c.l.b16 %v485
      %v1289 = vunpack.c.l.b16 %v486
      %v1290 = vunpack.c.l.b16 %v487
      %v1291 = vunpack.c.l.b16 %v488
      %v1292 = vunpack.c.l.b16 %v489
      %v1293 = vunpack.c.l.b16 %v490
      %v1294 = vunpack.c.l.b16 %v491
      %v1295 = vunpack.c.l.b16 %v492
      %v1296 = vunpack.c.l.b16 %v493
      %v1297 = vunpack.c.l.b16 %v494
      %v1298 = vunpack.c.l.b16 %v495
      %v1299 = vunpack.c.l.b16 %v496
      %v1300 = vunpack.c.l.b16 %v497
      %v1301 = vunpack.c.l.b16 %v498
      %v1302 = vunpack.c.l.b16 %v499
      %v1303 = vunpack.c.l.b16 %v500
      %v1304 = vunpack.c.l.b16 %v501
      %v1305 = vunpack.c.l.b16 %v502
      %v1306 = vunpack.c.l.b16 %v503
      %v1307 = vunpack.c.l.b16 %v504
      %v1308 = vunpack.c.l.b16 %v505
      %v1309 = vunpack.c.l.b16 %v506
      %v1310 = vunpack.c.l.b16 %v507
      %v1311 = vunpack.c.l.b16 %v508
      %v1312 = vunpack.c.l.b16 %v509
      %v1313 = vunpack.c.l.b16 %v510
      %v1314 = vunpack.c.l.b16 %v511
      %v1315 = vunpack.c.l.b16 %v512
      %v1316 = vunpack.c.l.b16 %v513
      %v1317 = vunpack.c.l.b16 %v514
      %v1318 = vunpack.c.l.b16 %v515
      %v1319 = vunpack.c.l.b16 %v516
      %v1320 = vunpack.c.l.b16 %v517
      %v1321 = vunpack.c.l.b16 %v518
      %v1322 = vunpack.c.l.b16 %v519
      %v1323 = vunpack.c.l.b16 %v520
      %v1324 = vunpack.c.l.b16 %v521
      %v1325 = vunpack.c.l.b16 %v522
      %v1326 = vunpack.c.l.b16 %v523
      %v1327 = vunpack.c.l.b16 %v524
      %v1328 = vunpack.c.l.b16 %v525
      %v1329 = vunpack.c.l.b16 %v526
      %v1330 = vunpack.c.l.b16 %v527
      %v1331 = vunpack.c.l.b16 %v528
      %v1332 = vunpack.c.l.b16 %v529
      %v1333 = vunpack.c.l.b16 %v530
      %v1334 = vunpack.c.l.b16 %v531
      %v1335 = vunpack.c.l.b16 %v532
      %v1336 = vunpack.c.l.b16 %v533
      %v1337 = vunpack.c.l.b16 %v534
      %v1338 = vunpack.c.l.b16 %v535
      %v1339 = vunpack.c.l.b16 %v536
      %v1340 = vunpack.c.l.b16 %v537
      %v1341 = vunpack.c.l.b16 %v538
      %v1342 = vunpack.c.l.b16 %v539
      %v1343 = vunpack.c.l.b16 %v540
      %v1344 = vunpack.c.l.b16 %v541
      %v1345 = vunpack.c.l.b16 %v542
      %v1346 = vunpack.c.l.b16 %v543
      %v1347 = vunpack.c.l.b16 %v544
      %v1348 = vunpack.c.l.b16 %v545
      %v1349 = vunpack.c.l.b16 %v546
      %v1350 = vunpack.c.l.b16 %v547
      %v1351 = vunpack.c.l.b16 %v548
      %v1352 = vunpack.c.l.b16 %v549
      %v1353 = vunpack.c.l.b16 %v550
      %v1354 = vunpack.c.l.b16 %v551
      %v1355 = vunpack.c.l.b16 %v552
      %v1356 = vunpack.c.l.b16 %v553
      %v1357 = vunpack.c.l.b16 %v554
      %v1358 = vunpack.c.l.b16 %v555
      %v1359 = vunpack.c.l.b16 %v556
      %v1360 = vunpack.c.l.b16 %v557
      %v1361 = vunpack.c.l.b16 %v558
      %v1362 = vunpack.c.l.b16 %v559
      %v1363 = vunpack.c.l.b16 %v560
      %v1364 = vunpack.c.l.b16 %v561
      %v1365 = vunpack.c.l.b16 %v562
      %v1366 = vunpack.c.l.b16 %v563
      %v1367 = vunpack.c.l.b16 %v564
      %v1368 = vunpack.c.l.b16 %v565
      %v1369 = vunpack.c.l.b16 %v566
      %v1370 = vunpack.c.l.b16 %v567
      %v1371 = vunpack.c.l.b16 %v568
      %v1372 = vunpack.c.l.b16 %v569
      %v1373 = vunpack.c.l.b16 %v570
      %v1374 = vunpack.c.l.b16 %v571
      %v1375 = vunpack.c.l.b16 %v572
      %v1376 = vunpack.c.l.b16 %v573
      %v1377 = vunpack.c.l.b16 %v574
      %v1378 = vunpack.c.l.b16 %v575
      %v1379 = vunpack.c.l.b16 %v576
      %v1380 = vunpack.c.l.b16 %v577
      %v1381 = vpack.c.b16 %v1238, %v1237
      %v1382 = vpack.c.b16 %v1240, %v1239
      %v1383 = vpack.c.b16 %v1242, %v1241
      %v1384 = vpack.c.b16 %v1244, %v1243
      %v1385 = vpack.c.b16 %v1246, %v1245
      %v1386 = vpack.c.b16 %v1248, %v1247
      %v1387 = vpack.c.b16 %v1250, %v1249
      %v1388 = vpack.c.b16 %v1252, %v1251
      %v1389 = vpack.c.b16 %v1254, %v1253
      %v1390 = vpack.c.b16 %v1256, %v1255
      %v1391 = vpack.c.b16 %v1258, %v1257
      %v1392 = vpack.c.b16 %v1260, %v1259
      %v1393 = vpack.c.b16 %v1262, %v1261
      %v1394 = vpack.c.b16 %v1264, %v1263
      %v1395 = vpack.c.b16 %v1266, %v1265
      %v1396 = vpack.c.b16 %v1268, %v1267
      %v1397 = vpack.c.b16 %v1270, %v1269
      %v1398 = vpack.c.b16 %v1272, %v1271
      %v1399 = vpack.c.b16 %v1274, %v1273
      %v1400 = vpack.c.b16 %v1276, %v1275
      %v1401 = vpack.c.b16 %v1278, %v1277
      %v1402 = vpack.c.b16 %v1280, %v1279
      %v1403 = vpack.c.b16 %v1282, %v1281
      %v1404 = vpack.c.b16 %v1284, %v1283
      %v1405 = vpack.c.b16 %v1286, %v1285
      %v1406 = vpack.c.b16 %v1288, %v1287
      %v1407 = vpack.c.b16 %v1290, %v1289
      %v1408 = vpack.c.b16 %v1292, %v1291
      %v1409 = vpack.c.b16 %v1294, %v1293
      %v1410 = vpack.c.b16 %v1296, %v1295
      %v1411 = vpack.c.b16 %v1298, %v1297
      %v1412 = vpack.c.b16 %v1300, %v1299
      %v1413 = vpack.c.b16 %v1302, %v1301
      %v1414 = vpack.c.b16 %v1304, %v1303
      %v1415 = vpack.c.b16 %v1306, %v1305
      %v1416 = vpack.c.b16 %v1308, %v1307
      %v1417 = vpack.c.b16 %v1310, %v1309
      %v1418 = vpack.c.b16 %v1312, %v1311
      %v1419 = vpack.c.b16 %v1314, %v1313
      %v1420 = vpack.c.b16 %v1316, %v1315
      %v1421 = vpack.c.b16 %v1318, %v1317
      %v1422 = vpack.c.b16 %v1320, %v1319
      %v1423 = vpack.c.b16 %v1322, %v1321
      %v1424 = vpack.c.b16 %v1324, %v1323
      %v1425 = vpack.c.b16 %v1326, %v1325
      %v1426 = vpack.c.b16 %v1328, %v1327
      %v1427 = vpack.c.b16 %v1330, %v1329
      %v1428 = vpack.c.b16 %v1332, %v1331
      %v1429 = vpack.c.b16 %v1334, %v1333
      %v1430 = vpack.c.b16 %v1336, %v1335
      %v1431 = vpack.c.b16 %v1338, %v1337
      %v1432 = vpack.c.b16 %v1340, %v1339
      %v1433 = vpack.c.b16 %v1342, %v1341
      %v1434 = vpack.c.b16 %v1344, %v1343
      %v1435 = vpack.c.b16 %v1346, %v1345
      %v1436 = vpack.c.b16 %v1348, %v1347
      %v1437 = vpack.c.b16 %v1350, %v1349
      %v1438 = vpack.c.b16 %v1352, %v1351
      %v1439 = vpack.c.b16 %v1354, %v1353
      %v1440 = vpack.c.b16 %v1356, %v1355
      %v1441 = vpack.c.b16 %v1358, %v1357
      %v1442 = vpack.c.b16 %v1360, %v1359
      %v1443 = vpack.c.b16 %v1362, %v1361
      %v1444 = vpack.c.b16 %v1364, %v1363
      %v1445 = vpack.c.b16 %v1366, %v1365
      %v1446 = vpack.c.b16 %v1368, %v1367
      %v1447 = vpack.c.b16 %v1370, %v1369
      %v1448 = vpack.c.b16 %v1372, %v1371
      %v1449 = vpack.c.b16 %v1374, %v1373
      %v1450 = vpack.c.b16 %v1376, %v1375
      %v1451 = vpack.c.b16 %v1378, %v1377
      %v1452 = vpack.c.b16 %v1380, %v1379
      %1525 = vmatprep.subr.bf16.mxu0 0
      %1526 = vmatpush1.bf16.msra.mxu0 %v1381
      %1527 = vmatprep.subr.bf16.mxu0 0
      %1528 = vmatpush1.bf16.msra.mxu0 %v1382
      %1529 = vmatprep.subr.bf16.mxu0 0
      %1530 = vmatpush1.bf16.msra.mxu0 %v1383
      %1531 = vmatprep.subr.bf16.mxu0 0
      %1532 = vmatpush1.bf16.msra.mxu0 %v1384
      %1533 = vmatprep.subr.bf16.mxu0 0
      %1534 = vmatpush1.bf16.msra.mxu0 %v1385
      %1535 = vmatprep.subr.bf16.mxu0 0
      %1536 = vmatpush1.bf16.msra.mxu0 %v1386
      %1537 = vmatprep.subr.bf16.mxu0 0
      %1538 = vmatpush1.bf16.msra.mxu0 %v1387
      %1539 = vmatprep.subr.bf16.mxu0 0
      %1540 = vmatpush1.bf16.msra.mxu0 %v1388
      %1541 = vmatprep.subr.bf16.mxu0 0
      %1542 = vmatpush1.bf16.msra.mxu0 %v1389
      %1543 = vmatprep.subr.bf16.mxu0 0
      %1544 = vmatpush1.bf16.msra.mxu0 %v1390
      %1545 = vmatprep.subr.bf16.mxu0 0
      %1546 = vmatpush1.bf16.msra.mxu0 %v1391
      %1547 = vmatprep.subr.bf16.mxu0 0
      %1548 = vmatpush1.bf16.msra.mxu0 %v1392
      %1549 = vmatprep.subr.bf16.mxu0 0
      %1550 = vmatpush1.bf16.msra.mxu0 %v1393
      %1551 = vmatprep.subr.bf16.mxu0 0
      %1552 = vmatpush1.bf16.msra.mxu0 %v1394
      %1553 = vmatprep.subr.bf16.mxu0 0
      %1554 = vmatpush1.bf16.msra.mxu0 %v1395
      %1555 = vmatprep.subr.bf16.mxu0 0
      %1556 = vmatpush1.bf16.msra.mxu0 %v1396
      %1557 = vmatprep.mubr.bf16.mxu0 %v780
      %1558 = vmatmul.mubr.bf16.gmra.mrb[0].mxu0 %v734
      %v1559 = vpop.f32.mrb[0].mxu0
      %v1560 = vadd.f32 0.0, %v1559
      %v1561 = vpop.f32.mrb[0].mxu0
      %v1562 = vpop.f32.mrb[0].mxu0
      %v1563 = vadd.f32 0.0, %v1562
      %v1564 = vpop.f32.mrb[0].mxu0
      %1565 = vmatprep.mubr.bf16.mxu0 %v792
      %1566 = vmatmul.mubr.bf16.gmra.mrb[0].mxu0 %v735
      %v1567 = vpop.f32.mrb[0].mxu0
      %v1568 = vadd.f32 0.0, %v1567
      %v1569 = vpop.f32.mrb[0].mxu0
      %v1570 = vpop.f32.mrb[0].mxu0
      %v1571 = vadd.f32 0.0, %v1570
      %v1572 = vpop.f32.mrb[0].mxu0
      %1573 = vmatprep.mubr.bf16.mxu0 %v804
      %1574 = vmatmul.mubr.bf16.gmra.mrb[0].mxu0 %v736
      %v1575 = vpop.f32.mrb[0].mxu0
      %v1576 = vadd.f32 0.0, %v1575
      %v1577 = vpop.f32.mrb[0].mxu0
      %v1578 = vpop.f32.mrb[0].mxu0
      %v1579 = vadd.f32 0.0, %v1578
      %v1580 = vpop.f32.mrb[0].mxu0
      %1581 = vmatprep.mubr.bf16.mxu0 %v816
      %1582 = vmatmul.mubr.bf16.gmra.mrb[0].mxu0 %v737
      %v1583 = vpop.f32.mrb[0].mxu0
      %v1584 = vadd.f32 0.0, %v1583
      %v1585 = vpop.f32.mrb[0].mxu0
      %v1586 = vpop.f32.mrb[0].mxu0
      %v1587 = vadd.f32 0.0, %v1586
      %v1588 = vpop.f32.mrb[0].mxu0
      %1589 = vmatprep.mubr.bf16.mxu0 %v828
      %1590 = vmatmul.mubr.bf16.gmra.mrb[0].mxu0 %v738
      %v1591 = vpop.f32.mrb[0].mxu0
      %v1592 = vadd.f32 0.0, %v1591
      %v1593 = vpop.f32.mrb[0].mxu0
      %v1594 = vpop.f32.mrb[0].mxu0
      %v1595 = vadd.f32 0.0, %v1594
      %v1596 = vpop.f32.mrb[0].mxu0
      %1597 = vmatprep.mubr.bf16.mxu0 %v840
      %1598 = vmatmul.mubr.bf16.gmra.mrb[0].mxu0 %v739
      %v1599 = vpop.f32.mrb[0].mxu0
      %v1600 = vadd.f32 0.0, %v1599
      %v1601 = vpop.f32.mrb[0].mxu0
      %v1602 = vpop.f32.mrb[0].mxu0
      %v1603 = vadd.f32 0.0, %v1602
      %v1604 = vpop.f32.mrb[0].mxu0
      %1605 = vmatprep.mubr.bf16.mxu0 %v852
      %1606 = vmatmul.mubr.bf16.gmra.mrb[0].mxu0 %v740
      %v1607 = vpop.f32.mrb[0].mxu0
      %v1608 = vadd.f32 0.0, %v1607
      %v1609 = vpop.f32.mrb[0].mxu0
      %v1610 = vpop.f32.mrb[0].mxu0
      %v1611 = vadd.f32 0.0, %v1610
      %v1612 = vpop.f32.mrb[0].mxu0
      %1613 = vmatprep.mubr.bf16.mxu0 %v864
      %1614 = vmatmul.mubr.bf16.gmra.mrb[0].mxu0 %v741
      %v1615 = vpop.f32.mrb[0].mxu0
      %v1616 = vadd.f32 0.0, %v1615
      %v1617 = vpop.f32.mrb[0].mxu0
      %v1618 = vpop.f32.mrb[0].mxu0
      %v1619 = vadd.f32 0.0, %v1618
      %v1620 = vpop.f32.mrb[0].mxu0
      %1621 = vmatprep.mubr.bf16.mxu0 %v876
      %1622 = vmatmul.mubr.bf16.gmra.mrb[0].mxu0 %v742
      %v1623 = vpop.f32.mrb[0].mxu0
      %v1624 = vadd.f32 0.0, %v1623
      %v1625 = vpop.f32.mrb[0].mxu0
      %v1626 = vpop.f32.mrb[0].mxu0
      %v1627 = vadd.f32 0.0, %v1626
      %v1628 = vpop.f32.mrb[0].mxu0
      %1629 = vmatprep.mubr.bf16.mxu0 %v888
      %1630 = vmatmul.mubr.bf16.gmra.mrb[0].mxu0 %v743
      %v1631 = vpop.f32.mrb[0].mxu0
      %v1632 = vadd.f32 0.0, %v1631
      %v1633 = vpop.f32.mrb[0].mxu0
      %v1634 = vpop.f32.mrb[0].mxu0
      %v1635 = vadd.f32 0.0, %v1634
      %v1636 = vpop.f32.mrb[0].mxu0
      %1637 = vmatprep.mubr.bf16.mxu0 %v900
      %1638 = vmatmul.mubr.bf16.gmra.mrb[0].mxu0 %v744
      %v1639 = vpop.f32.mrb[0].mxu0
      %v1640 = vadd.f32 0.0, %v1639
      %v1641 = vpop.f32.mrb[0].mxu0
      %v1642 = vpop.f32.mrb[0].mxu0
      %v1643 = vadd.f32 0.0, %v1642
      %v1644 = vpop.f32.mrb[0].mxu0
      %1645 = vmatprep.mubr.bf16.mxu0 %v912
      %1646 = vmatmul.mubr.bf16.gmra.mrb[0].mxu0 %v745
      %v1647 = vpop.f32.mrb[0].mxu0
      %v1648 = vadd.f32 0.0, %v1647
      %v1649 = vpop.f32.mrb[0].mxu0
      %v1650 = vpop.f32.mrb[0].mxu0
      %v1651 = vadd.f32 0.0, %v1650
      %v1652 = vpop.f32.mrb[0].mxu0
      %1653 = vmatprep.mubr.bf16.mxu0 %v924
      %1654 = vmatmul.mubr.bf16.gmra.mrb[0].mxu0 %v746
      %v1655 = vpop.f32.mrb[0].mxu0
      %v1656 = vadd.f32 0.0, %v1655
      %v1657 = vpop.f32.mrb[0].mxu0
      %v1658 = vpop.f32.mrb[0].mxu0
      %v1659 = vadd.f32 0.0, %v1658
      %v1660 = vpop.f32.mrb[0].mxu0
      %1661 = vmatprep.mubr.bf16.mxu0 %v936
      %1662 = vmatmul.mubr.bf16.gmra.mrb[0].mxu0 %v747
      %v1663 = vpop.f32.mrb[0].mxu0
      %v1664 = vadd.f32 0.0, %v1663
      %v1665 = vpop.f32.mrb[0].mxu0
      %v1666 = vpop.f32.mrb[0].mxu0
      %v1667 = vadd.f32 0.0, %v1666
      %v1668 = vpop.f32.mrb[0].mxu0
      %1669 = vmatprep.mubr.bf16.mxu0 %v948
      %1670 = vmatmul.mubr.bf16.gmra.mrb[0].mxu0 %v748
      %v1671 = vpop.f32.mrb[0].mxu0
      %v1672 = vadd.f32 0.0, %v1671
      %v1673 = vpop.f32.mrb[0].mxu0
      %v1674 = vpop.f32.mrb[0].mxu0
      %v1675 = vadd.f32 0.0, %v1674
      %v1676 = vpop.f32.mrb[0].mxu0
      %1677 = vmatprep.mubr.bf16.mxu0 %v960
      %1678 = vmatmul.mubr.bf16.gmra.mrb[0].mxu0 %v749
      %v1679 = vpop.f32.mrb[0].mxu0
      %v1680 = vadd.f32 0.0, %v1679
      %v1681 = vpop.f32.mrb[0].mxu0
      %v1682 = vpop.f32.mrb[0].mxu0
      %v1683 = vadd.f32 0.0, %v1682
      %v1684 = vpop.f32.mrb[0].mxu0
      %1685 = vdwg.mxu0
      %1686 = vmatprep.subr.bf16.mxu0 0
      %1687 = vmatpush1.bf16.msra.mxu0 %v1397
      %1688 = vmatprep.subr.bf16.mxu0 0
      %1689 = vmatpush1.bf16.msra.mxu0 %v1398
      %1690 = vmatprep.subr.bf16.mxu0 0
      %1691 = vmatpush1.bf16.msra.mxu0 %v1399
      %1692 = vmatprep.subr.bf16.mxu0 0
      %1693 = vmatpush1.bf16.msra.mxu0 %v1400
      %1694 = vmatprep.subr.bf16.mxu0 0
      %1695 = vmatpush1.bf16.msra.mxu0 %v1401
      %1696 = vmatprep.subr.bf16.mxu0 0
      %1697 = vmatpush1.bf16.msra.mxu0 %v1402
      %1698 = vmatprep.subr.bf16.mxu0 0
      %1699 = vmatpush1.bf16.msra.mxu0 %v1403
      %1700 = vmatprep.subr.bf16.mxu0 0
      %1701 = vmatpush1.bf16.msra.mxu0 %v1404
      %1702 = vmatprep.subr.bf16.mxu0 0
      %1703 = vmatpush1.bf16.msra.mxu0 %v1405
      %1704 = vmatprep.subr.bf16.mxu0 0
      %1705 = vmatpush1.bf16.msra.mxu0 %v1406
      %1706 = vmatprep.subr.bf16.mxu0 0
      %1707 = vmatpush1.bf16.msra.mxu0 %v1407
      %1708 = vmatprep.subr.bf16.mxu0 0
      %1709 = vmatpush1.bf16.msra.mxu0 %v1408
      %1710 = vmatprep.subr.bf16.mxu0 0
      %1711 = vmatpush1.bf16.msra.mxu0 %v1409
      %1712 = vmatprep.subr.bf16.mxu0 0
      %1713 = vmatpush1.bf16.msra.mxu0 %v1410
      %1714 = vmatprep.subr.bf16.mxu0 0
      %1715 = vmatpush1.bf16.msra.mxu0 %v1411
      %1716 = vmatprep.subr.bf16.mxu0 0
      %1717 = vmatpush1.bf16.msra.mxu0 %v1412
      %1718 = vmatprep.mubr.bf16.mxu0 %v735
      %1719 = vmatmul.mubr.bf16.gmra.mrb[0].mxu0 %v1012
      %v1720 = vpop.f32.mrb[0].mxu0
      %v1721 = vadd.f32 %v1560, %v1720
      %v1722 = vpop.f32.mrb[0].mxu0
      %v1723 = vpop.f32.mrb[0].mxu0
      %v1724 = vadd.f32 %v1563, %v1723
      %v1725 = vpop.f32.mrb[0].mxu0
      %1726 = vmatprep.mubr.bf16.mxu0 %v736
      %1727 = vmatmul.mubr.bf16.gmra.mrb[0].mxu0 %v1015
      %v1728 = vpop.f32.mrb[0].mxu0
      %v1729 = vadd.f32 %v1568, %v1728
      %v1730 = vpop.f32.mrb[0].mxu0
      %v1731 = vpop.f32.mrb[0].mxu0
      %v1732 = vadd.f32 %v1571, %v1731
      %v1733 = vpop.f32.mrb[0].mxu0
      %1734 = vmatprep.mubr.bf16.mxu0 %v737
      %1735 = vmatmul.mubr.bf16.gmra.mrb[0].mxu0 %v1018
      %v1736 = vpop.f32.mrb[0].mxu0
      %v1737 = vadd.f32 %v1576, %v1736
      %v1738 = vpop.f32.mrb[0].mxu0
      %v1739 = vpop.f32.mrb[0].mxu0
      %v1740 = vadd.f32 %v1579, %v1739
      %v1741 = vpop.f32.mrb[0].mxu0
      %1742 = vmatprep.mubr.bf16.mxu0 %v738
      %1743 = vmatmul.mubr.bf16.gmra.mrb[0].mxu0 %v1021
      %v1744 = vpop.f32.mrb[0].mxu0
      %v1745 = vadd.f32 %v1584, %v1744
      %v1746 = vpop.f32.mrb[0].mxu0
      %v1747 = vpop.f32.mrb[0].mxu0
      %v1748 = vadd.f32 %v1587, %v1747
      %v1749 = vpop.f32.mrb[0].mxu0
      %1750 = vmatprep.mubr.bf16.mxu0 %v739
      %1751 = vmatmul.mubr.bf16.gmra.mrb[0].mxu0 %v1024
      %v1752 = vpop.f32.mrb[0].mxu0
      %v1753 = vadd.f32 %v1592, %v1752
      %v1754 = vpop.f32.mrb[0].mxu0
      %v1755 = vpop.f32.mrb[0].mxu0
      %v1756 = vadd.f32 %v1595, %v1755
      %v1757 = vpop.f32.mrb[0].mxu0
      %1758 = vmatprep.mubr.bf16.mxu0 %v740
      %1759 = vmatmul.mubr.bf16.gmra.mrb[0].mxu0 %v1027
      %v1760 = vpop.f32.mrb[0].mxu0
      %v1761 = vadd.f32 %v1600, %v1760
      %v1762 = vpop.f32.mrb[0].mxu0
      %v1763 = vpop.f32.mrb[0].mxu0
      %v1764 = vadd.f32 %v1603, %v1763
      %v1765 = vpop.f32.mrb[0].mxu0
      %1766 = vmatprep.mubr.bf16.mxu0 %v741
      %1767 = vmatmul.mubr.bf16.gmra.mrb[0].mxu0 %v1030
      %v1768 = vpop.f32.mrb[0].mxu0
      %v1769 = vadd.f32 %v1608, %v1768
      %v1770 = vpop.f32.mrb[0].mxu0
      %v1771 = vpop.f32.mrb[0].mxu0
      %v1772 = vadd.f32 %v1611, %v1771
      %v1773 = vpop.f32.mrb[0].mxu0
      %1774 = vmatprep.mubr.bf16.mxu0 %v742
      %1775 = vmatmul.mubr.bf16.gmra.mrb[0].mxu0 %v1033
      %v1776 = vpop.f32.mrb[0].mxu0
      %v1777 = vadd.f32 %v1616, %v1776
      %v1778 = vpop.f32.mrb[0].mxu0
      %v1779 = vpop.f32.mrb[0].mxu0
      %v1780 = vadd.f32 %v1619, %v1779
      %v1781 = vpop.f32.mrb[0].mxu0
      %1782 = vmatprep.mubr.bf16.mxu0 %v743
      %1783 = vmatmul.mubr.bf16.gmra.mrb[0].mxu0 %v1036
      %v1784 = vpop.f32.mrb[0].mxu0
      %v1785 = vadd.f32 %v1624, %v1784
      %v1786 = vpop.f32.mrb[0].mxu0
      %v1787 = vpop.f32.mrb[0].mxu0
      %v1788 = vadd.f32 %v1627, %v1787
      %v1789 = vpop.f32.mrb[0].mxu0
      %1790 = vmatprep.mubr.bf16.mxu0 %v744
      %1791 = vmatmul.mubr.bf16.gmra.mrb[0].mxu0 %v1039
      %v1792 = vpop.f32.mrb[0].mxu0
      %v1793 = vadd.f32 %v1632, %v1792
      %v1794 = vpop.f32.mrb[0].mxu0
      %v1795 = vpop.f32.mrb[0].mxu0
      %v1796 = vadd.f32 %v1635, %v1795
      %v1797 = vpop.f32.mrb[0].mxu0
      %1798 = vmatprep.mubr.bf16.mxu0 %v745
      %1799 = vmatmul.mubr.bf16.gmra.mrb[0].mxu0 %v1042
      %v1800 = vpop.f32.mrb[0].mxu0
      %v1801 = vadd.f32 %v1640, %v1800
      %v1802 = vpop.f32.mrb[0].mxu0
      %v1803 = vpop.f32.mrb[0].mxu0
      %v1804 = vadd.f32 %v1643, %v1803
      %v1805 = vpop.f32.mrb[0].mxu0
      %1806 = vmatprep.mubr.bf16.mxu0 %v746
      %1807 = vmatmul.mubr.bf16.gmra.mrb[0].mxu0 %v1045
      %v1808 = vpop.f32.mrb[0].mxu0
      %v1809 = vadd.f32 %v1648, %v1808
      %v1810 = vpop.f32.mrb[0].mxu0
      %v1811 = vpop.f32.mrb[0].mxu0
      %v1812 = vadd.f32 %v1651, %v1811
      %v1813 = vpop.f32.mrb[0].mxu0
      %1814 = vmatprep.mubr.bf16.mxu0 %v747
      %1815 = vmatmul.mubr.bf16.gmra.mrb[0].mxu0 %v1048
      %v1816 = vpop.f32.mrb[0].mxu0
      %v1817 = vadd.f32 %v1656, %v1816
      %v1818 = vpop.f32.mrb[0].mxu0
      %v1819 = vpop.f32.mrb[0].mxu0
      %v1820 = vadd.f32 %v1659, %v1819
      %v1821 = vpop.f32.mrb[0].mxu0
      %1822 = vmatprep.mubr.bf16.mxu0 %v748
      %1823 = vmatmul.mubr.bf16.gmra.mrb[0].mxu0 %v1051
      %v1824 = vpop.f32.mrb[0].mxu0
      %v1825 = vadd.f32 %v1664, %v1824
      %v1826 = vpop.f32.mrb[0].mxu0
      %v1827 = vpop.f32.mrb[0].mxu0
      %v1828 = vadd.f32 %v1667, %v1827
      %v1829 = vpop.f32.mrb[0].mxu0
      %1830 = vmatprep.mubr.bf16.mxu0 %v749
      %1831 = vmatmul.mubr.bf16.gmra.mrb[0].mxu0 %v1054
      %v1832 = vpop.f32.mrb[0].mxu0
      %v1833 = vadd.f32 %v1672, %v1832
      %v1834 = vpop.f32.mrb[0].mxu0
      %v1835 = vpop.f32.mrb[0].mxu0
      %v1836 = vadd.f32 %v1675, %v1835
      %v1837 = vpop.f32.mrb[0].mxu0
      %1838 = vmatprep.mubr.bf16.mxu0 %v750
      %1839 = vmatmul.mubr.bf16.gmra.mrb[0].mxu0 %v1057
      %v1840 = vpop.f32.mrb[0].mxu0
      %v1841 = vadd.f32 %v1680, %v1840
      %v1842 = vpop.f32.mrb[0].mxu0
      %v1843 = vpop.f32.mrb[0].mxu0
      %v1844 = vadd.f32 %v1683, %v1843
      %v1845 = vpop.f32.mrb[0].mxu0
      %1846 = vdwg.mxu0
      %1847 = vmatprep.subr.bf16.mxu0 0
      %1848 = vmatpush1.bf16.msra.mxu0 %v1413
      %1849 = vmatprep.subr.bf16.mxu0 0
      %1850 = vmatpush1.bf16.msra.mxu0 %v1414
      %1851 = vmatprep.subr.bf16.mxu0 0
      %1852 = vmatpush1.bf16.msra.mxu0 %v1415
      %1853 = vmatprep.subr.bf16.mxu0 0
      %1854 = vmatpush1.bf16.msra.mxu0 %v1416
      %1855 = vmatprep.subr.bf16.mxu0 0
      %1856 = vmatpush1.bf16.msra.mxu0 %v1417
      %1857 = vmatprep.subr.bf16.mxu0 0
      %1858 = vmatpush1.bf16.msra.mxu0 %v1418
      %1859 = vmatprep.subr.bf16.mxu0 0
      %1860 = vmatpush1.bf16.msra.mxu0 %v1419
      %1861 = vmatprep.subr.bf16.mxu0 0
      %1862 = vmatpush1.bf16.msra.mxu0 %v1420
      %1863 = vmatprep.subr.bf16.mxu0 0
      %1864 = vmatpush1.bf16.msra.mxu0 %v1421
      %1865 = vmatprep.subr.bf16.mxu0 0
      %1866 = vmatpush1.bf16.msra.mxu0 %v1422
      %1867 = vmatprep.subr.bf16.mxu0 0
      %1868 = vmatpush1.bf16.msra.mxu0 %v1423
      %1869 = vmatprep.subr.bf16.mxu0 0
      %1870 = vmatpush1.bf16.msra.mxu0 %v1424
      %1871 = vmatprep.subr.bf16.mxu0 0
      %1872 = vmatpush1.bf16.msra.mxu0 %v1425
      %1873 = vmatprep.subr.bf16.mxu0 0
      %1874 = vmatpush1.bf16.msra.mxu0 %v1426
      %1875 = vmatprep.subr.bf16.mxu0 0
      %1876 = vmatpush1.bf16.msra.mxu0 %v1427
      %1877 = vmatprep.subr.bf16.mxu0 0
      %1878 = vmatpush1.bf16.msra.mxu0 %v1428
      %1879 = vmatprep.mubr.bf16.mxu0 %v1015
      %1880 = vmatmul.mubr.bf16.gmra.mrb[0].mxu0 %v792
      %v1881 = vpop.f32.mrb[0].mxu0
      %v1882 = vadd.f32 %v1721, %v1881
      %v1883 = vpop.f32.mrb[0].mxu0
      %v1884 = vpop.f32.mrb[0].mxu0
      %v1885 = vadd.f32 %v1724, %v1884
      %v1886 = vpop.f32.mrb[0].mxu0
      %1887 = vmatprep.mubr.bf16.mxu0 %v1018
      %1888 = vmatmul.mubr.bf16.gmra.mrb[0].mxu0 %v804
      %v1889 = vpop.f32.mrb[0].mxu0
      %v1890 = vadd.f32 %v1729, %v1889
      %v1891 = vpop.f32.mrb[0].mxu0
      %v1892 = vpop.f32.mrb[0].mxu0
      %v1893 = vadd.f32 %v1732, %v1892
      %v1894 = vpop.f32.mrb[0].mxu0
      %1895 = vmatprep.mubr.bf16.mxu0 %v1021
      %1896 = vmatmul.mubr.bf16.gmra.mrb[0].mxu0 %v816
      %v1897 = vpop.f32.mrb[0].mxu0
      %v1898 = vadd.f32 %v1737, %v1897
      %v1899 = vpop.f32.mrb[0].mxu0
      %v1900 = vpop.f32.mrb[0].mxu0
      %v1901 = vadd.f32 %v1740, %v1900
      %v1902 = vpop.f32.mrb[0].mxu0
      %1903 = vmatprep.mubr.bf16.mxu0 %v1024
      %1904 = vmatmul.mubr.bf16.gmra.mrb[0].mxu0 %v828
      %v1905 = vpop.f32.mrb[0].mxu0
      %v1906 = vadd.f32 %v1745, %v1905
      %v1907 = vpop.f32.mrb[0].mxu0
      %v1908 = vpop.f32.mrb[0].mxu0
      %v1909 = vadd.f32 %v1748, %v1908
      %v1910 = vpop.f32.mrb[0].mxu0
      %1911 = vmatprep.mubr.bf16.mxu0 %v1027
      %1912 = vmatmul.mubr.bf16.gmra.mrb[0].mxu0 %v840
      %v1913 = vpop.f32.mrb[0].mxu0
      %v1914 = vadd.f32 %v1753, %v1913
      %v1915 = vpop.f32.mrb[0].mxu0
      %v1916 = vpop.f32.mrb[0].mxu0
      %v1917 = vadd.f32 %v1756, %v1916
      %v1918 = vpop.f32.mrb[0].mxu0
      %1919 = vmatprep.mubr.bf16.mxu0 %v1030
      %1920 = vmatmul.mubr.bf16.gmra.mrb[0].mxu0 %v852
      %v1921 = vpop.f32.mrb[0].mxu0
      %v1922 = vadd.f32 %v1761, %v1921
      %v1923 = vpop.f32.mrb[0].mxu0
      %v1924 = vpop.f32.mrb[0].mxu0
      %v1925 = vadd.f32 %v1764, %v1924
      %v1926 = vpop.f32.mrb[0].mxu0
      %1927 = vmatprep.mubr.bf16.mxu0 %v1033
      %1928 = vmatmul.mubr.bf16.gmra.mrb[0].mxu0 %v864
      %v1929 = vpop.f32.mrb[0].mxu0
      %v1930 = vadd.f32 %v1769, %v1929
      %v1931 = vpop.f32.mrb[0].mxu0
      %v1932 = vpop.f32.mrb[0].mxu0
      %v1933 = vadd.f32 %v1772, %v1932
      %v1934 = vpop.f32.mrb[0].mxu0
      %1935 = vmatprep.mubr.bf16.mxu0 %v1036
      %1936 = vmatmul.mubr.bf16.gmra.mrb[0].mxu0 %v876
      %v1937 = vpop.f32.mrb[0].mxu0
      %v1938 = vadd.f32 %v1777, %v1937
      %v1939 = vpop.f32.mrb[0].mxu0
      %v1940 = vpop.f32.mrb[0].mxu0
      %v1941 = vadd.f32 %v1780, %v1940
      %v1942 = vpop.f32.mrb[0].mxu0
      %1943 = vmatprep.mubr.bf16.mxu0 %v1039
      %1944 = vmatmul.mubr.bf16.gmra.mrb[0].mxu0 %v888
      %v1945 = vpop.f32.mrb[0].mxu0
      %v1946 = vadd.f32 %v1785, %v1945
      %v1947 = vpop.f32.mrb[0].mxu0
      %v1948 = vpop.f32.mrb[0].mxu0
      %v1949 = vadd.f32 %v1788, %v1948
      %v1950 = vpop.f32.mrb[0].mxu0
      %1951 = vmatprep.mubr.bf16.mxu0 %v1042
      %1952 = vmatmul.mubr.bf16.gmra.mrb[0].mxu0 %v900
      %v1953 = vpop.f32.mrb[0].mxu0
      %v1954 = vadd.f32 %v1793, %v1953
      %v1955 = vpop.f32.mrb[0].mxu0
      %v1956 = vpop.f32.mrb[0].mxu0
      %v1957 = vadd.f32 %v1796, %v1956
      %v1958 = vpop.f32.mrb[0].mxu0
      %1959 = vmatprep.mubr.bf16.mxu0 %v1045
      %1960 = vmatmul.mubr.bf16.gmra.mrb[0].mxu0 %v912
      %v1961 = vpop.f32.mrb[0].mxu0
      %v1962 = vadd.f32 %v1801, %v1961
      %v1963 = vpop.f32.mrb[0].mxu0
      %v1964 = vpop.f32.mrb[0].mxu0
      %v1965 = vadd.f32 %v1804, %v1964
      %v1966 = vpop.f32.mrb[0].mxu0
      %1967 = vmatprep.mubr.bf16.mxu0 %v1048
      %1968 = vmatmul.mubr.bf16.gmra.mrb[0].mxu0 %v924
      %v1969 = vpop.f32.mrb[0].mxu0
      %v1970 = vadd.f32 %v1809, %v1969
      %v1971 = vpop.f32.mrb[0].mxu0
      %v1972 = vpop.f32.mrb[0].mxu0
      %v1973 = vadd.f32 %v1812, %v1972
      %v1974 = vpop.f32.mrb[0].mxu0
      %1975 = vmatprep.mubr.bf16.mxu0 %v1051
      %1976 = vmatmul.mubr.bf16.gmra.mrb[0].mxu0 %v936
      %v1977 = vpop.f32.mrb[0].mxu0
      %v1978 = vadd.f32 %v1817, %v1977
      %v1979 = vpop.f32.mrb[0].mxu0
      %v1980 = vpop.f32.mrb[0].mxu0
      %v1981 = vadd.f32 %v1820, %v1980
      %v1982 = vpop.f32.mrb[0].mxu0
      %1983 = vmatprep.mubr.bf16.mxu0 %v1054
      %1984 = vmatmul.mubr.bf16.gmra.mrb[0].mxu0 %v948
      %v1985 = vpop.f32.mrb[0].mxu0
      %v1986 = vadd.f32 %v1825, %v1985
      %v1987 = vpop.f32.mrb[0].mxu0
      %v1988 = vpop.f32.mrb[0].mxu0
      %v1989 = vadd.f32 %v1828, %v1988
      %v1990 = vpop.f32.mrb[0].mxu0
      %1991 = vmatprep.mubr.bf16.mxu0 %v1057
      %1992 = vmatmul.mubr.bf16.gmra.mrb[0].mxu0 %v960
      %v1993 = vpop.f32.mrb[0].mxu0
      %v1994 = vadd.f32 %v1833, %v1993
      %v1995 = vpop.f32.mrb[0].mxu0
      %v1996 = vpop.f32.mrb[0].mxu0
      %v1997 = vadd.f32 %v1836, %v1996
      %v1998 = vpop.f32.mrb[0].mxu0
      %1999 = vmatprep.mubr.bf16.mxu0 %v1091
      %2000 = vmatmul.mubr.bf16.gmra.mrb[0].mxu0 %v1085
      %v2001 = vpop.f32.mrb[0].mxu0
      %v2002 = vadd.f32 %v1841, %v2001
      %v2003 = vpop.f32.mrb[0].mxu0
      %v2004 = vpop.f32.mrb[0].mxu0
      %v2005 = vadd.f32 %v1844, %v2004
      %v2006 = vpop.f32.mrb[0].mxu0
      %2007 = vdwg.mxu0
      %2008 = vmatprep.subr.bf16.mxu0 0
      %2009 = vmatpush1.bf16.msra.mxu0 %v1429
      %2010 = vmatprep.subr.bf16.mxu0 0
      %2011 = vmatpush1.bf16.msra.mxu0 %v1430
      %2012 = vmatprep.subr.bf16.mxu0 0
      %2013 = vmatpush1.bf16.msra.mxu0 %v1431
      %2014 = vmatprep.subr.bf16.mxu0 0
      %2015 = vmatpush1.bf16.msra.mxu0 %v1432
      %2016 = vmatprep.subr.bf16.mxu0 0
      %2017 = vmatpush1.bf16.msra.mxu0 %v1433
      %2018 = vmatprep.subr.bf16.mxu0 0
      %2019 = vmatpush1.bf16.msra.mxu0 %v1434
      %2020 = vmatprep.subr.bf16.mxu0 0
      %2021 = vmatpush1.bf16.msra.mxu0 %v1435
      %2022 = vmatprep.subr.bf16.mxu0 0
      %2023 = vmatpush1.bf16.msra.mxu0 %v1436
      %2024 = vmatprep.subr.bf16.mxu0 0
      %2025 = vmatpush1.bf16.msra.mxu0 %v1437
      %2026 = vmatprep.subr.bf16.mxu0 0
      %2027 = vmatpush1.bf16.msra.mxu0 %v1438
      %2028 = vmatprep.subr.bf16.mxu0 0
      %2029 = vmatpush1.bf16.msra.mxu0 %v1439
      %2030 = vmatprep.subr.bf16.mxu0 0
      %2031 = vmatpush1.bf16.msra.mxu0 %v1440
      %2032 = vmatprep.subr.bf16.mxu0 0
      %2033 = vmatpush1.bf16.msra.mxu0 %v1441
      %2034 = vmatprep.subr.bf16.mxu0 0
      %2035 = vmatpush1.bf16.msra.mxu0 %v1442
      %2036 = vmatprep.subr.bf16.mxu0 0
      %2037 = vmatpush1.bf16.msra.mxu0 %v1443
      %2038 = vmatprep.subr.bf16.mxu0 0
      %2039 = vmatpush1.bf16.msra.mxu0 %v1444
      %2040 = vmatprep.mubr.bf16.mxu0 %v804
      %2041 = vmatmul.mubr.bf16.gmra.mrb[0].mxu0 %v736
      %v2042 = vpop.f32.mrb[0].mxu0
      %v2043 = vadd.f32 %v1882, %v2042
      %v2044 = vpop.f32.mrb[0].mxu0
      %v2045 = vpop.f32.mrb[0].mxu0
      %v2046 = vadd.f32 %v1885, %v2045
      %v2047 = vpop.f32.mrb[0].mxu0
      %2048 = vmatprep.mubr.bf16.mxu0 %v816
      %2049 = vmatmul.mubr.bf16.gmra.mrb[0].mxu0 %v737
      %v2050 = vpop.f32.mrb[0].mxu0
      %v2051 = vadd.f32 %v1890, %v2050
      %v2052 = vpop.f32.mrb[0].mxu0
      %v2053 = vpop.f32.mrb[0].mxu0
      %v2054 = vadd.f32 %v1893, %v2053
      %v2055 = vpop.f32.mrb[0].mxu0
      %2056 = vmatprep.mubr.bf16.mxu0 %v828
      %2057 = vmatmul.mubr.bf16.gmra.mrb[0].mxu0 %v738
      %v2058 = vpop.f32.mrb[0].mxu0
      %v2059 = vadd.f32 %v1898, %v2058
      %v2060 = vpop.f32.mrb[0].mxu0
      %v2061 = vpop.f32.mrb[0].mxu0
      %v2062 = vadd.f32 %v1901, %v2061
      %v2063 = vpop.f32.mrb[0].mxu0
      %2064 = vmatprep.mubr.bf16.mxu0 %v840
      %2065 = vmatmul.mubr.bf16.gmra.mrb[0].mxu0 %v739
      %v2066 = vpop.f32.mrb[0].mxu0
      %v2067 = vadd.f32 %v1906, %v2066
      %v2068 = vpop.f32.mrb[0].mxu0
      %v2069 = vpop.f32.mrb[0].mxu0
      %v2070 = vadd.f32 %v1909, %v2069
      %v2071 = vpop.f32.mrb[0].mxu0
      %2072 = vmatprep.mubr.bf16.mxu0 %v852
      %2073 = vmatmul.mubr.bf16.gmra.mrb[0].mxu0 %v740
      %v2074 = vpop.f32.mrb[0].mxu0
      %v2075 = vadd.f32 %v1914, %v2074
      %v2076 = vpop.f32.mrb[0].mxu0
      %v2077 = vpop.f32.mrb[0].mxu0
      %v2078 = vadd.f32 %v1917, %v2077
      %v2079 = vpop.f32.mrb[0].mxu0
      %2080 = vmatprep.mubr.bf16.mxu0 %v864
      %2081 = vmatmul.mubr.bf16.gmra.mrb[0].mxu0 %v741
      %v2082 = vpop.f32.mrb[0].mxu0
      %v2083 = vadd.f32 %v1922, %v2082
      %v2084 = vpop.f32.mrb[0].mxu0
      %v2085 = vpop.f32.mrb[0].mxu0
      %v2086 = vadd.f32 %v1925, %v2085
      %v2087 = vpop.f32.mrb[0].mxu0
      %2088 = vmatprep.mubr.bf16.mxu0 %v876
      %2089 = vmatmul.mubr.bf16.gmra.mrb[0].mxu0 %v742
      %v2090 = vpop.f32.mrb[0].mxu0
      %v2091 = vadd.f32 %v1930, %v2090
      %v2092 = vpop.f32.mrb[0].mxu0
      %v2093 = vpop.f32.mrb[0].mxu0
      %v2094 = vadd.f32 %v1933, %v2093
      %v2095 = vpop.f32.mrb[0].mxu0
      %2096 = vmatprep.mubr.bf16.mxu0 %v888
      %2097 = vmatmul.mubr.bf16.gmra.mrb[0].mxu0 %v743
      %v2098 = vpop.f32.mrb[0].mxu0
      %v2099 = vadd.f32 %v1938, %v2098
      %v2100 = vpop.f32.mrb[0].mxu0
      %v2101 = vpop.f32.mrb[0].mxu0
      %v2102 = vadd.f32 %v1941, %v2101
      %v2103 = vpop.f32.mrb[0].mxu0
      %2104 = vmatprep.mubr.bf16.mxu0 %v900
      %2105 = vmatmul.mubr.bf16.gmra.mrb[0].mxu0 %v744
      %v2106 = vpop.f32.mrb[0].mxu0
      %v2107 = vadd.f32 %v1946, %v2106
      %v2108 = vpop.f32.mrb[0].mxu0
      %v2109 = vpop.f32.mrb[0].mxu0
      %v2110 = vadd.f32 %v1949, %v2109
      %v2111 = vpop.f32.mrb[0].mxu0
      %2112 = vmatprep.mubr.bf16.mxu0 %v912
      %2113 = vmatmul.mubr.bf16.gmra.mrb[0].mxu0 %v745
      %v2114 = vpop.f32.mrb[0].mxu0
      %v2115 = vadd.f32 %v1954, %v2114
      %v2116 = vpop.f32.mrb[0].mxu0
      %v2117 = vpop.f32.mrb[0].mxu0
      %v2118 = vadd.f32 %v1957, %v2117
      %v2119 = vpop.f32.mrb[0].mxu0
      %2120 = vmatprep.mubr.bf16.mxu0 %v924
      %2121 = vmatmul.mubr.bf16.gmra.mrb[0].mxu0 %v746
      %v2122 = vpop.f32.mrb[0].mxu0
      %v2123 = vadd.f32 %v1962, %v2122
      %v2124 = vpop.f32.mrb[0].mxu0
      %v2125 = vpop.f32.mrb[0].mxu0
      %v2126 = vadd.f32 %v1965, %v2125
      %v2127 = vpop.f32.mrb[0].mxu0
      %2128 = vmatprep.mubr.bf16.mxu0 %v936
      %2129 = vmatmul.mubr.bf16.gmra.mrb[0].mxu0 %v747
      %v2130 = vpop.f32.mrb[0].mxu0
      %v2131 = vadd.f32 %v1970, %v2130
      %v2132 = vpop.f32.mrb[0].mxu0
      %v2133 = vpop.f32.mrb[0].mxu0
      %v2134 = vadd.f32 %v1973, %v2133
      %v2135 = vpop.f32.mrb[0].mxu0
      %2136 = vmatprep.mubr.bf16.mxu0 %v948
      %2137 = vmatmul.mubr.bf16.gmra.mrb[0].mxu0 %v748
      %v2138 = vpop.f32.mrb[0].mxu0
      %v2139 = vadd.f32 %v1978, %v2138
      %v2140 = vpop.f32.mrb[0].mxu0
      %v2141 = vpop.f32.mrb[0].mxu0
      %v2142 = vadd.f32 %v1981, %v2141
      %v2143 = vpop.f32.mrb[0].mxu0
      %2144 = vmatprep.mubr.bf16.mxu0 %v960
      %2145 = vmatmul.mubr.bf16.gmra.mrb[0].mxu0 %v749
      %v2146 = vpop.f32.mrb[0].mxu0
      %v2147 = vadd.f32 %v1986, %v2146
      %v2148 = vpop.f32.mrb[0].mxu0
      %v2149 = vpop.f32.mrb[0].mxu0
      %v2150 = vadd.f32 %v1989, %v2149
      %v2151 = vpop.f32.mrb[0].mxu0
      %2152 = vmatprep.mubr.bf16.mxu0 %v1085
      %2153 = vmatmul.mubr.bf16.gmra.mrb[0].mxu0 %v750
      %v2154 = vpop.f32.mrb[0].mxu0
      %v2155 = vadd.f32 %v1994, %v2154
      %v2156 = vpop.f32.mrb[0].mxu0
      %v2157 = vpop.f32.mrb[0].mxu0
      %v2158 = vadd.f32 %v1997, %v2157
      %v2159 = vpop.f32.mrb[0].mxu0
      %2160 = vmatprep.mubr.bf16.mxu0 %v780
      %2161 = vmatmul.mubr.bf16.gmra.mrb[0].mxu0 %v734
      %v2162 = vpop.f32.mrb[0].mxu0
      %v2163 = vadd.f32 %v2002, %v2162
      %v2164 = vpop.f32.mrb[0].mxu0
      %v2165 = vpop.f32.mrb[0].mxu0
      %v2166 = vadd.f32 %v2005, %v2165
      %v2167 = vpop.f32.mrb[0].mxu0
      %2168 = vdwg.mxu0
      %2169 = vmatprep.subr.bf16.mxu0 0
      %2170 = vmatpush1.bf16.msra.mxu0 %v1445
      %2171 = vmatprep.subr.bf16.mxu0 0
      %2172 = vmatpush1.bf16.msra.mxu0 %v1446
      %2173 = vmatprep.subr.bf16.mxu0 0
      %2174 = vmatpush1.bf16.msra.mxu0 %v1447
      %2175 = vmatprep.subr.bf16.mxu0 0
      %2176 = vmatpush1.bf16.msra.mxu0 %v1448
      %2177 = vmatprep.subr.bf16.mxu0 0
      %2178 = vmatpush1.bf16.msra.mxu0 %v1449
      %2179 = vmatprep.subr.bf16.mxu0 0
      %2180 = vmatpush1.bf16.msra.mxu0 %v1450
      %2181 = vmatprep.subr.bf16.mxu0 0
      %2182 = vmatpush1.bf16.msra.mxu0 %v1451
      %2183 = vmatprep.subr.bf16.mxu0 0
      %2184 = vmatpush1.bf16.msra.mxu0 %v1452
      %2185 = vmatprep.subr.bf16.mxu0 0
      %2186 = vmatpush1.bf16.msra.mxu0 0
      %2187 = vmatprep.subr.bf16.mxu0 0
      %2188 = vmatpush1.bf16.msra.mxu0 0
      %2189 = vmatprep.subr.bf16.mxu0 0
      %2190 = vmatpush1.bf16.msra.mxu0 0
      %2191 = vmatprep.subr.bf16.mxu0 0
      %2192 = vmatpush1.bf16.msra.mxu0 0
      %2193 = vmatprep.subr.bf16.mxu0 0
      %2194 = vmatpush1.bf16.msra.mxu0 0
      %2195 = vmatprep.subr.bf16.mxu0 0
      %2196 = vmatpush1.bf16.msra.mxu0 0
      %2197 = vmatprep.subr.bf16.mxu0 0
      %2198 = vmatpush1.bf16.msra.mxu0 0
      %2199 = vmatprep.subr.bf16.mxu0 0
      %2200 = vmatpush1.bf16.msra.mxu0 0
      %2201 = vmatprep.mubr.bf16.mxu0 0
      %2202 = vmatmul.mubr.bf16.gmra.mrb[0].mxu0 %v1018
      %v2203 = vpop.f32.mrb[0].mxu0
      %v2204 = vadd.f32 %v2043, %v2203
      %v2205 = vpop.f32.mrb[0].mxu0
      %v2206 = vpop.f32.mrb[0].mxu0
      %v2207 = vadd.f32 %v2046, %v2206
      %v2208 = vpop.f32.mrb[0].mxu0
      %2209 = vmatprep.mubr.bf16.mxu0 0
      %2210 = vmatmul.mubr.bf16.gmra.mrb[0].mxu0 %v1021
      %v2211 = vpop.f32.mrb[0].mxu0
      %v2212 = vadd.f32 %v2051, %v2211
      %v2213 = vpop.f32.mrb[0].mxu0
      %v2214 = vpop.f32.mrb[0].mxu0
      %v2215 = vadd.f32 %v2054, %v2214
      %v2216 = vpop.f32.mrb[0].mxu0
      %2217 = vmatprep.mubr.bf16.mxu0 0
      %2218 = vmatmul.mubr.bf16.gmra.mrb[0].mxu0 %v1024
      %v2219 = vpop.f32.mrb[0].mxu0
      %v2220 = vadd.f32 %v2059, %v2219
      %v2221 = vpop.f32.mrb[0].mxu0
      %v2222 = vpop.f32.mrb[0].mxu0
      %v2223 = vadd.f32 %v2062, %v2222
      %v2224 = vpop.f32.mrb[0].mxu0
      %2225 = vmatprep.mubr.bf16.mxu0 0
      %2226 = vmatmul.mubr.bf16.gmra.mrb[0].mxu0 %v1027
      %v2227 = vpop.f32.mrb[0].mxu0
      %v2228 = vadd.f32 %v2067, %v2227
      %v2229 = vpop.f32.mrb[0].mxu0
      %v2230 = vpop.f32.mrb[0].mxu0
      %v2231 = vadd.f32 %v2070, %v2230
      %v2232 = vpop.f32.mrb[0].mxu0
      %2233 = vmatprep.mubr.bf16.mxu0 0
      %2234 = vmatmul.mubr.bf16.gmra.mrb[0].mxu0 %v1030
      %v2235 = vpop.f32.mrb[0].mxu0
      %v2236 = vadd.f32 %v2075, %v2235
      %v2237 = vpop.f32.mrb[0].mxu0
      %v2238 = vpop.f32.mrb[0].mxu0
      %v2239 = vadd.f32 %v2078, %v2238
      %v2240 = vpop.f32.mrb[0].mxu0
      %2241 = vmatprep.mubr.bf16.mxu0 0
      %2242 = vmatmul.mubr.bf16.gmra.mrb[0].mxu0 %v1033
      %v2243 = vpop.f32.mrb[0].mxu0
      %v2244 = vadd.f32 %v2083, %v2243
      %v2245 = vpop.f32.mrb[0].mxu0
      %v2246 = vpop.f32.mrb[0].mxu0
      %v2247 = vadd.f32 %v2086, %v2246
      %v2248 = vpop.f32.mrb[0].mxu0
      %2249 = vmatprep.mubr.bf16.mxu0 0
      %2250 = vmatmul.mubr.bf16.gmra.mrb[0].mxu0 %v1036
      %v2251 = vpop.f32.mrb[0].mxu0
      %v2252 = vadd.f32 %v2091, %v2251
      %v2253 = vpop.f32.mrb[0].mxu0
      %v2254 = vpop.f32.mrb[0].mxu0
      %v2255 = vadd.f32 %v2094, %v2254
      %v2256 = vpop.f32.mrb[0].mxu0
      %2257 = vmatprep.mubr.bf16.mxu0 0
      %2258 = vmatmul.mubr.bf16.gmra.mrb[0].mxu0 %v1039
      %v2259 = vpop.f32.mrb[0].mxu0
      %v2260 = vadd.f32 %v2099, %v2259
      %v2261 = vpop.f32.mrb[0].mxu0
      %v2262 = vpop.f32.mrb[0].mxu0
      %v2263 = vadd.f32 %v2102, %v2262
      %v2264 = vpop.f32.mrb[0].mxu0
      %2265 = vmatprep.mubr.bf16.mxu0 0
      %2266 = vmatmul.mubr.bf16.gmra.mrb[0].mxu0 %v1042
      %v2267 = vpop.f32.mrb[0].mxu0
      %v2268 = vadd.f32 %v2107, %v2267
      %v2269 = vpop.f32.mrb[0].mxu0
      %v2270 = vpop.f32.mrb[0].mxu0
      %v2271 = vadd.f32 %v2110, %v2270
      %v2272 = vpop.f32.mrb[0].mxu0
      %2273 = vmatprep.mubr.bf16.mxu0 0
      %2274 = vmatmul.mubr.bf16.gmra.mrb[0].mxu0 %v1045
      %v2275 = vpop.f32.mrb[0].mxu0
      %v2276 = vadd.f32 %v2115, %v2275
      %v2277 = vpop.f32.mrb[0].mxu0
      %v2278 = vpop.f32.mrb[0].mxu0
      %v2279 = vadd.f32 %v2118, %v2278
      %v2280 = vpop.f32.mrb[0].mxu0
      %2281 = vmatprep.mubr.bf16.mxu0 0
      %2282 = vmatmul.mubr.bf16.gmra.mrb[0].mxu0 %v1048
      %v2283 = vpop.f32.mrb[0].mxu0
      %v2284 = vadd.f32 %v2123, %v2283
      %v2285 = vpop.f32.mrb[0].mxu0
      %v2286 = vpop.f32.mrb[0].mxu0
      %v2287 = vadd.f32 %v2126, %v2286
      %v2288 = vpop.f32.mrb[0].mxu0
      %2289 = vmatprep.mubr.bf16.mxu0 0
      %2290 = vmatmul.mubr.bf16.gmra.mrb[0].mxu0 %v1051
      %v2291 = vpop.f32.mrb[0].mxu0
      %v2292 = vadd.f32 %v2131, %v2291
      %v2293 = vpop.f32.mrb[0].mxu0
      %v2294 = vpop.f32.mrb[0].mxu0
      %v2295 = vadd.f32 %v2134, %v2294
      %v2296 = vpop.f32.mrb[0].mxu0
      %2297 = vmatprep.mubr.bf16.mxu0 0
      %2298 = vmatmul.mubr.bf16.gmra.mrb[0].mxu0 %v1054
      %v2299 = vpop.f32.mrb[0].mxu0
      %v2300 = vadd.f32 %v2139, %v2299
      %v2301 = vpop.f32.mrb[0].mxu0
      %v2302 = vpop.f32.mrb[0].mxu0
      %v2303 = vadd.f32 %v2142, %v2302
      %v2304 = vpop.f32.mrb[0].mxu0
      %2305 = vmatprep.mubr.bf16.mxu0 0
      %2306 = vmatmul.mubr.bf16.gmra.mrb[0].mxu0 %v1057
      %v2307 = vpop.f32.mrb[0].mxu0
      %v2308 = vadd.f32 %v2147, %v2307
      %v2309 = vpop.f32.mrb[0].mxu0
      %v2310 = vpop.f32.mrb[0].mxu0
      %v2311 = vadd.f32 %v2150, %v2310
      %v2312 = vpop.f32.mrb[0].mxu0
      %2313 = vmatprep.mubr.bf16.mxu0 0
      %2314 = vmatmul.mubr.bf16.gmra.mrb[0].mxu0 %v1091
      %v2315 = vpop.f32.mrb[0].mxu0
      %v2316 = vadd.f32 %v2155, %v2315
      %v2317 = vpop.f32.mrb[0].mxu0
      %v2318 = vpop.f32.mrb[0].mxu0
      %v2319 = vadd.f32 %v2158, %v2318
      %v2320 = vpop.f32.mrb[0].mxu0
      %2321 = vmatprep.mubr.bf16.mxu0 0
      %2322 = vmatmul.mubr.bf16.gmra.mrb[0].mxu0 %v1012
      %v2323 = vpop.f32.mrb[0].mxu0
      %v2324 = vadd.f32 %v2163, %v2323
      %v2325 = vpop.f32.mrb[0].mxu0
      %v2326 = vpop.f32.mrb[0].mxu0
      %v2327 = vadd.f32 %v2166, %v2326
      %v2328 = vpop.f32.mrb[0].mxu0
      %2329 = vdwg.mxu0
      %v2330 = vld [vmem:[%s2] sm:$0x1]
      %v2331 = vlaneseq
      %v2332 = vshrl.u32 %v2331, 7
      %v2333 = vsub.s32 0, %v2332
      %v2334 = vrot.slane %v2330, %v2333
      %v2335 = vmul.f32 %v2204, %v2334
      %v2336 = vmul.f32 %v2207, %v2334
      %v2337 = vmul.f32 %v2212, %v2334
      %v2338 = vmul.f32 %v2215, %v2334
      %v2339 = vmul.f32 %v2220, %v2334
      %v2340 = vmul.f32 %v2223, %v2334
      %v2341 = vmul.f32 %v2228, %v2334
      %v2342 = vmul.f32 %v2231, %v2334
      %v2343 = vmul.f32 %v2236, %v2334
      %v2344 = vmul.f32 %v2239, %v2334
      %v2345 = vmul.f32 %v2244, %v2334
      %v2346 = vmul.f32 %v2247, %v2334
      %v2347 = vmul.f32 %v2252, %v2334
      %v2348 = vmul.f32 %v2255, %v2334
      %v2349 = vmul.f32 %v2260, %v2334
      %v2350 = vmul.f32 %v2263, %v2334
      %v2351 = vmul.f32 %v2268, %v2334
      %v2352 = vmul.f32 %v2271, %v2334
      %v2353 = vmul.f32 %v2276, %v2334
      %v2354 = vmul.f32 %v2279, %v2334
      %v2355 = vmul.f32 %v2284, %v2334
      %v2356 = vmul.f32 %v2287, %v2334
      %v2357 = vmul.f32 %v2292, %v2334
      %v2358 = vmul.f32 %v2295, %v2334
      %v2359 = vmul.f32 %v2300, %v2334
      %v2360 = vmul.f32 %v2303, %v2334
      %v2361 = vmul.f32 %v2308, %v2334
      %v2362 = vmul.f32 %v2311, %v2334
      %v2363 = vmul.f32 %v2316, %v2334
      %v2364 = vmul.f32 %v2319, %v2334
      %v2365 = vmul.f32 %v2324, %v2334
      %v2366 = vmul.f32 %v2327, %v2334
      %v2367 = vld [vmem:[%s2 + $0x1] sm:$0x1]
      %v2368 = vlaneseq
      %v2369 = vshrl.u32 %v2368, 7
      %v2370 = vsub.s32 0, %v2369
      %v2371 = vrot.slane %v2367, %v2370
      %v2372 = vadd.f32 %v2335, %v2371
      %v2373 = vadd.f32 %v2336, %v2371
      %v2374 = vadd.f32 %v2337, %v2371
      %v2375 = vadd.f32 %v2338, %v2371
      %v2376 = vadd.f32 %v2339, %v2371
      %v2377 = vadd.f32 %v2340, %v2371
      %v2378 = vadd.f32 %v2341, %v2371
      %v2379 = vadd.f32 %v2342, %v2371
      %v2380 = vadd.f32 %v2343, %v2371
      %v2381 = vadd.f32 %v2344, %v2371
      %v2382 = vadd.f32 %v2345, %v2371
      %v2383 = vadd.f32 %v2346, %v2371
      %v2384 = vadd.f32 %v2347, %v2371
      %v2385 = vadd.f32 %v2348, %v2371
      %v2386 = vadd.f32 %v2349, %v2371
      %v2387 = vadd.f32 %v2350, %v2371
      %v2388 = vadd.f32 %v2351, %v2371
      %v2389 = vadd.f32 %v2352, %v2371
      %v2390 = vadd.f32 %v2353, %v2371
      %v2391 = vadd.f32 %v2354, %v2371
      %v2392 = vadd.f32 %v2355, %v2371
      %v2393 = vadd.f32 %v2356, %v2371
      %v2394 = vadd.f32 %v2357, %v2371
      %v2395 = vadd.f32 %v2358, %v2371
      %v2396 = vadd.f32 %v2359, %v2371
      %v2397 = vadd.f32 %v2360, %v2371
      %v2398 = vadd.f32 %v2361, %v2371
      %v2399 = vadd.f32 %v2362, %v2371
      %v2400 = vadd.f32 %v2363, %v2371
      %v2401 = vadd.f32 %v2364, %v2371
      %v2402 = vadd.f32 %v2365, %v2371
      %v2403 = vadd.f32 %v2366, %v2371
      %v2404 = vmax.f32 %v2372, 0.0
      %v2405 = vmax.f32 %v2373, 0.0
      %v2406 = vmax.f32 %v2374, 0.0
      %v2407 = vmax.f32 %v2375, 0.0
      %v2408 = vmax.f32 %v2376, 0.0
      %v2409 = vmax.f32 %v2377, 0.0
      %v2410 = vmax.f32 %v2378, 0.0
      %v2411 = vmax.f32 %v2379, 0.0
      %v2412 = vmax.f32 %v2380, 0.0
      %v2413 = vmax.f32 %v2381, 0.0
      %v2414 = vmax.f32 %v2382, 0.0
      %v2415 = vmax.f32 %v2383, 0.0
      %v2416 = vmax.f32 %v2384, 0.0
      %v2417 = vmax.f32 %v2385, 0.0
      %v2418 = vmax.f32 %v2386, 0.0
      %v2419 = vmax.f32 %v2387, 0.0
      %v2420 = vmax.f32 %v2388, 0.0
      %v2421 = vmax.f32 %v2389, 0.0
      %v2422 = vmax.f32 %v2390, 0.0
      %v2423 = vmax.f32 %v2391, 0.0
      %v2424 = vmax.f32 %v2392, 0.0
      %v2425 = vmax.f32 %v2393, 0.0
      %v2426 = vmax.f32 %v2394, 0.0
      %v2427 = vmax.f32 %v2395, 0.0
      %v2428 = vmax.f32 %v2396, 0.0
      %v2429 = vmax.f32 %v2397, 0.0
      %v2430 = vmax.f32 %v2398, 0.0
      %v2431 = vmax.f32 %v2399, 0.0
      %v2432 = vmax.f32 %v2400, 0.0
      %v2433 = vmax.f32 %v2401, 0.0
      %v2434 = vmax.f32 %v2402, 0.0
      %v2435 = vmax.f32 %v2403, 0.0
      %v2436 = vpack.c.bf16 %v2405, %v2404
      %v2437 = vpack.c.bf16 %v2407, %v2406
      %v2438 = vpack.c.bf16 %v2409, %v2408
      %v2439 = vpack.c.bf16 %v2411, %v2410
      %v2440 = vpack.c.bf16 %v2413, %v2412
      %v2441 = vpack.c.bf16 %v2415, %v2414
      %v2442 = vpack.c.bf16 %v2417, %v2416
      %v2443 = vpack.c.bf16 %v2419, %v2418
      %v2444 = vpack.c.bf16 %v2421, %v2420
      %v2445 = vpack.c.bf16 %v2423, %v2422
      %v2446 = vpack.c.bf16 %v2425, %v2424
      %v2447 = vpack.c.bf16 %v2427, %v2426
      %v2448 = vpack.c.bf16 %v2429, %v2428
      %v2449 = vpack.c.bf16 %v2431, %v2430
      %v2450 = vpack.c.bf16 %v2433, %v2432
      %v2451 = vpack.c.bf16 %v2435, %v2434
      %v2452 = vld [vmem:[%s4] sm:$0xf]
      %v2453 = vld [vmem:[%s4 + $0x4] sm:$0xf]
      %v2454 = vld [vmem:[%s4 + $0x8] sm:$0xf]
      %v2455 = vld [vmem:[%s4 + $0xc] sm:$0xf]
      %v2456 = vld [vmem:[%s4 + $0x10] sm:$0xf]
      %v2457 = vld [vmem:[%s4 + $0x14] sm:$0xf]
      %v2458 = vld [vmem:[%s4 + $0x18] sm:$0xf]
      %v2459 = vld [vmem:[%s4 + $0x1c] sm:$0xf]
      %v2460 = vld [vmem:[%s4 + $0x20] sm:$0xf]
      %v2461 = vld [vmem:[%s4 + $0x24] sm:$0xf]
      %v2462 = vld [vmem:[%s4 + $0x28] sm:$0xf]
      %v2463 = vld [vmem:[%s4 + $0x2c] sm:$0xf]
      %v2464 = vld [vmem:[%s4 + $0x30] sm:$0xf]
      %v2465 = vld [vmem:[%s4 + $0x34] sm:$0xf]
      %v2466 = vld [vmem:[%s4 + $0x38] sm:$0xf]
      %v2467 = vld [vmem:[%s4 + $0x3c] sm:$0xf]
      %v2468 = vld [vmem:[%s4 + $0x40] sm:$0xf]
      %v2469 = vld [vmem:[%s4 + $0x44] sm:$0xf]
      %v2470 = vld [vmem:[%s4 + $0x48] sm:$0xf]
      %v2471 = vld [vmem:[%s4 + $0x4c] sm:$0xf]
      %v2472 = vld [vmem:[%s4 + $0x50] sm:$0xf]
      %v2473 = vld [vmem:[%s4 + $0x54] sm:$0xf]
      %v2474 = vld [vmem:[%s4 + $0x58] sm:$0xf]
      %v2475 = vld [vmem:[%s4 + $0x5c] sm:$0xf]
      %v2476 = vld [vmem:[%s4 + $0x60] sm:$0xf]
      %v2477 = vld [vmem:[%s4 + $0x64] sm:$0xf]
      %v2478 = vld [vmem:[%s4 + $0x68] sm:$0xf]
      %v2479 = vld [vmem:[%s4 + $0x6c] sm:$0xf]
      %v2480 = vld [vmem:[%s4 + $0x70] sm:$0xf]
      %v2481 = vld [vmem:[%s4 + $0x74] sm:$0xf]
      %v2482 = vld [vmem:[%s4 + $0x78] sm:$0xf]
      %v2483 = vld [vmem:[%s4 + $0x7c] sm:$0xf]
      %v2484 = vld [vmem:[%s4 + $0x80] sm:$0xf]
      %v2485 = vld [vmem:[%s4 + $0x84] sm:$0xf]
      %v2486 = vld [vmem:[%s4 + $0x88] sm:$0xf]
      %v2487 = vld [vmem:[%s4 + $0x8c] sm:$0xf]
      %v2488 = vld [vmem:[%s4 + $0x90] sm:$0xf]
      %v2489 = vld [vmem:[%s4 + $0x94] sm:$0xf]
      %v2490 = vld [vmem:[%s4 + $0x98] sm:$0xf]
      %v2491 = vld [vmem:[%s4 + $0x9c] sm:$0xf]
      %v2492 = vld [vmem:[%s4 + $0xa0] sm:$0xf]
      %v2493 = vld [vmem:[%s4 + $0xa4] sm:$0xf]
      %v2494 = vld [vmem:[%s4 + $0xa8] sm:$0xf]
      %v2495 = vld [vmem:[%s4 + $0xac] sm:$0xf]
      %v2496 = vld [vmem:[%s4 + $0xb0] sm:$0xf]
      %v2497 = vld [vmem:[%s4 + $0xb4] sm:$0xf]
      %v2498 = vld [vmem:[%s4 + $0xb8] sm:$0xf]
      %v2499 = vld [vmem:[%s4 + $0xbc] sm:$0xf]
      %v2500 = vld [vmem:[%s4 + $0xc0] sm:$0xf]
      %v2501 = vld [vmem:[%s4 + $0xc4] sm:$0xf]
      %v2502 = vld [vmem:[%s4 + $0xc8] sm:$0xf]
      %v2503 = vld [vmem:[%s4 + $0xcc] sm:$0xf]
      %v2504 = vld [vmem:[%s4 + $0xd0] sm:$0xf]
      %v2505 = vld [vmem:[%s4 + $0xd4] sm:$0xf]
      %v2506 = vld [vmem:[%s4 + $0xd8] sm:$0xf]
      %v2507 = vld [vmem:[%s4 + $0xdc] sm:$0xf]
      %v2508 = vld [vmem:[%s4 + $0xe0] sm:$0xf]
      %v2509 = vld [vmem:[%s4 + $0xe4] sm:$0xf]
      %v2510 = vld [vmem:[%s4 + $0xe8] sm:$0xf]
      %v2511 = vld [vmem:[%s4 + $0xec] sm:$0xf]
      %v2512 = vld [vmem:[%s4 + $0xf0] sm:$0xf]
      %v2513 = vld [vmem:[%s4 + $0xf4] sm:$0xf]
      %v2514 = vld [vmem:[%s4 + $0xf8] sm:$0xf]
      %v2515 = vld [vmem:[%s4 + $0xfc] sm:$0xf]
      %v2516 = vld [vmem:[%s4 + $0x100] sm:$0xf]
      %v2517 = vld [vmem:[%s4 + $0x104] sm:$0xf]
      %v2518 = vld [vmem:[%s4 + $0x108] sm:$0xf]
      %v2519 = vld [vmem:[%s4 + $0x10c] sm:$0xf]
      %v2520 = vld [vmem:[%s4 + $0x110] sm:$0xf]
      %v2521 = vld [vmem:[%s4 + $0x114] sm:$0xf]
      %v2522 = vld [vmem:[%s4 + $0x118] sm:$0xf]
      %v2523 = vld [vmem:[%s4 + $0x11c] sm:$0xf]
      %v2524 = vld [vmem:[%s4 + $0x120] sm:$0xf]
      %v2525 = vld [vmem:[%s4 + $0x124] sm:$0xf]
      %v2526 = vld [vmem:[%s4 + $0x128] sm:$0xf]
      %v2527 = vld [vmem:[%s4 + $0x12c] sm:$0xf]
      %v2528 = vld [vmem:[%s4 + $0x130] sm:$0xf]
      %v2529 = vld [vmem:[%s4 + $0x134] sm:$0xf]
      %v2530 = vld [vmem:[%s4 + $0x138] sm:$0xf]
      %v2531 = vld [vmem:[%s4 + $0x13c] sm:$0xf]
      %v2532 = vld [vmem:[%s4 + $0x140] sm:$0xf]
      %v2533 = vld [vmem:[%s4 + $0x144] sm:$0xf]
      %v2534 = vld [vmem:[%s4 + $0x148] sm:$0xf]
      %v2535 = vld [vmem:[%s4 + $0x14c] sm:$0xf]
      %v2536 = vld [vmem:[%s4 + $0x150] sm:$0xf]
      %v2537 = vld [vmem:[%s4 + $0x154] sm:$0xf]
      %v2538 = vld [vmem:[%s4 + $0x158] sm:$0xf]
      %v2539 = vld [vmem:[%s4 + $0x15c] sm:$0xf]
      %v2540 = vld [vmem:[%s4 + $0x160] sm:$0xf]
      %v2541 = vld [vmem:[%s4 + $0x164] sm:$0xf]
      %v2542 = vld [vmem:[%s4 + $0x168] sm:$0xf]
      %v2543 = vld [vmem:[%s4 + $0x16c] sm:$0xf]
      %v2544 = vld [vmem:[%s4 + $0x170] sm:$0xf]
      %v2545 = vld [vmem:[%s4 + $0x174] sm:$0xf]
      %v2546 = vld [vmem:[%s4 + $0x178] sm:$0xf]
      %v2547 = vld [vmem:[%s4 + $0x17c] sm:$0xf]
      %v2548 = vld [vmem:[%s4 + $0x180] sm:$0xf]
      %v2549 = vld [vmem:[%s4 + $0x184] sm:$0xf]
      %v2550 = vld [vmem:[%s4 + $0x188] sm:$0xf]
      %v2551 = vld [vmem:[%s4 + $0x18c] sm:$0xf]
      %v2552 = vld [vmem:[%s4 + $0x190] sm:$0xf]
      %v2553 = vld [vmem:[%s4 + $0x194] sm:$0xf]
      %v2554 = vld [vmem:[%s4 + $0x198] sm:$0xf]
      %v2555 = vld [vmem:[%s4 + $0x19c] sm:$0xf]
      %v2556 = vld [vmem:[%s4 + $0x1a0] sm:$0xf]
      %v2557 = vld [vmem:[%s4 + $0x1a4] sm:$0xf]
      %v2558 = vld [vmem:[%s4 + $0x1a8] sm:$0xf]
      %v2559 = vld [vmem:[%s4 + $0x1ac] sm:$0xf]
      %v2560 = vld [vmem:[%s4 + $0x1b0] sm:$0xf]
      %v2561 = vld [vmem:[%s4 + $0x1b4] sm:$0xf]
      %v2562 = vld [vmem:[%s4 + $0x1b8] sm:$0xf]
      %v2563 = vld [vmem:[%s4 + $0x1bc] sm:$0xf]
      %v2564 = vld [vmem:[%s4 + $0x1c0] sm:$0xf]
      %v2565 = vld [vmem:[%s4 + $0x1c4] sm:$0xf]
      %v2566 = vld [vmem:[%s4 + $0x1c8] sm:$0xf]
      %v2567 = vld [vmem:[%s4 + $0x1cc] sm:$0xf]
      %v2568 = vld [vmem:[%s4 + $0x1d0] sm:$0xf]
      %v2569 = vld [vmem:[%s4 + $0x1d4] sm:$0xf]
      %v2570 = vld [vmem:[%s4 + $0x1d8] sm:$0xf]
      %v2571 = vld [vmem:[%s4 + $0x1dc] sm:$0xf]
      %v2572 = vld [vmem:[%s4 + $0x1e0] sm:$0xf]
      %v2573 = vld [vmem:[%s4 + $0x1e4] sm:$0xf]
      %v2574 = vld [vmem:[%s4 + $0x1e8] sm:$0xf]
      %v2575 = vld [vmem:[%s4 + $0x1ec] sm:$0xf]
      %v2576 = vld [vmem:[%s4 + $0x1f0] sm:$0xf]
      %v2577 = vld [vmem:[%s4 + $0x1f4] sm:$0xf]
      %v2578 = vld [vmem:[%s4 + $0x1f8] sm:$0xf]
      %v2579 = vld [vmem:[%s4 + $0x1fc] sm:$0xf]
      %v2580 = vld [vmem:[%s4 + $0x200] sm:$0xf]
      %v2581 = vld [vmem:[%s4 + $0x204] sm:$0xf]
      %v2582 = vld [vmem:[%s4 + $0x208] sm:$0xf]
      %v2583 = vld [vmem:[%s4 + $0x20c] sm:$0xf]
      %v2584 = vld [vmem:[%s4 + $0x210] sm:$0xf]
      %v2585 = vld [vmem:[%s4 + $0x214] sm:$0xf]
      %v2586 = vld [vmem:[%s4 + $0x218] sm:$0xf]
      %v2587 = vld [vmem:[%s4 + $0x21c] sm:$0xf]
      %v2588 = vld [vmem:[%s4 + $0x220] sm:$0xf]
      %v2589 = vld [vmem:[%s4 + $0x224] sm:$0xf]
      %v2590 = vld [vmem:[%s4 + $0x228] sm:$0xf]
      %v2591 = vld [vmem:[%s4 + $0x22c] sm:$0xf]
      %v2592 = vld [vmem:[%s4 + $0x230] sm:$0xf]
      %v2593 = vld [vmem:[%s4 + $0x234] sm:$0xf]
      %v2594 = vld [vmem:[%s4 + $0x238] sm:$0xf]
      %v2595 = vld [vmem:[%s4 + $0x23c] sm:$0xf]
      %v2597 = vshrl.u32 %v2436, 16
      %v2599 = vrot.slane %v2597, 7
      %v2600 = vshll.u32 %v2436, 16
      %v2602 = vor.u32 %v2599, %v2600
      %v2604 = vshrl.u32 %v2437, 16
      %v2606 = vrot.slane %v2604, 7
      %v2607 = vshll.u32 %v2437, 16
      %v2609 = vor.u32 %v2606, %v2607
      %v2611 = vshrl.u32 %v2438, 16
      %v2613 = vrot.slane %v2611, 7
      %v2614 = vshll.u32 %v2438, 16
      %v2616 = vor.u32 %v2613, %v2614
      %v2618 = vshrl.u32 %v2439, 16
      %v2620 = vrot.slane %v2618, 7
      %v2621 = vshll.u32 %v2439, 16
      %v2623 = vor.u32 %v2620, %v2621
      %v2625 = vshrl.u32 %v2440, 16
      %v2627 = vrot.slane %v2625, 7
      %v2628 = vshll.u32 %v2440, 16
      %v2630 = vor.u32 %v2627, %v2628
      %v2632 = vshrl.u32 %v2441, 16
      %v2634 = vrot.slane %v2632, 7
      %v2635 = vshll.u32 %v2441, 16
      %v2637 = vor.u32 %v2634, %v2635
      %v2639 = vshrl.u32 %v2442, 16
      %v2641 = vrot.slane %v2639, 7
      %v2642 = vshll.u32 %v2442, 16
      %v2644 = vor.u32 %v2641, %v2642
      %v2646 = vshrl.u32 %v2443, 16
      %v2648 = vrot.slane %v2646, 7
      %v2649 = vshll.u32 %v2443, 16
      %v2651 = vor.u32 %v2648, %v2649
      %v2653 = vshrl.u32 %v2444, 16
      %v2655 = vrot.slane %v2653, 7
      %v2656 = vshll.u32 %v2444, 16
      %v2658 = vor.u32 %v2655, %v2656
      %v2660 = vshrl.u32 %v2445, 16
      %v2662 = vrot.slane %v2660, 7
      %v2663 = vshll.u32 %v2445, 16
      %v2665 = vor.u32 %v2662, %v2663
      %v2667 = vshrl.u32 %v2446, 16
      %v2669 = vrot.slane %v2667, 7
      %v2670 = vshll.u32 %v2446, 16
      %v2672 = vor.u32 %v2669, %v2670
      %v2674 = vshrl.u32 %v2447, 16
      %v2676 = vrot.slane %v2674, 7
      %v2677 = vshll.u32 %v2447, 16
      %v2679 = vor.u32 %v2676, %v2677
      %v2681 = vshrl.u32 %v2448, 16
      %v2683 = vrot.slane %v2681, 7
      %v2684 = vshll.u32 %v2448, 16
      %v2686 = vor.u32 %v2683, %v2684
      %v2688 = vshrl.u32 %v2449, 16
      %v2690 = vrot.slane %v2688, 7
      %v2691 = vshll.u32 %v2449, 16
      %v2693 = vor.u32 %v2690, %v2691
      %v2695 = vshrl.u32 %v2450, 16
      %v2697 = vrot.slane %v2695, 7
      %v2698 = vshll.u32 %v2450, 16
      %v2700 = vor.u32 %v2697, %v2698
      %v2702 = vshrl.u32 %v2451, 16
      %v2704 = vrot.slane %v2702, 7
      %v2705 = vshll.u32 %v2451, 16
      %v2707 = vor.u32 %v2704, %v2705
      %v2740 = vsel %vm733, 0, %v2602
      %v2741 = vsel %vm733, 0, %v2609
      %v2742 = vsel %vm733, 0, %v2616
      %v2743 = vsel %vm733, 0, %v2623
      %v2744 = vsel %vm733, 0, %v2630
      %v2745 = vsel %vm733, 0, %v2637
      %v2746 = vsel %vm733, 0, %v2644
      %v2747 = vsel %vm733, 0, %v2651
      %v2748 = vsel %vm733, 0, %v2658
      %v2749 = vsel %vm733, 0, %v2665
      %v2750 = vsel %vm733, 0, %v2672
      %v2751 = vsel %vm733, 0, %v2679
      %v2752 = vsel %vm733, 0, %v2686
      %v2753 = vsel %vm733, 0, %v2693
      %v2754 = vsel %vm733, 0, %v2700
      %v2755 = vsel %vm733, 0, %v2707
      %v2756 = vsel %vm733, %v2599, 0
      %v2757 = vsel %vm733, %v2606, 0
      %v2758 = vsel %vm733, %v2613, 0
      %v2759 = vsel %vm733, %v2620, 0
      %v2760 = vsel %vm733, %v2627, 0
      %v2761 = vsel %vm733, %v2634, 0
      %v2762 = vsel %vm733, %v2641, 0
      %v2763 = vsel %vm733, %v2648, 0
      %v2764 = vsel %vm733, %v2655, 0
      %v2765 = vsel %vm733, %v2662, 0
      %v2766 = vsel %vm733, %v2669, 0
      %v2767 = vsel %vm733, %v2676, 0
      %v2768 = vsel %vm733, %v2683, 0
      %v2769 = vsel %vm733, %v2690, 0
      %v2770 = vsel %vm733, %v2697, 0
      %v2771 = vsel %vm733, %v2704, 0
      %v2773 = vshrl.u32 %v2740, 16
      %v2775 = vshll.u32 %v2740, 16
      %v2777 = vrot.slane %v2775, 1
      %v2778 = vor.u32 %v2773, %v2777
      %v2780 = vshll.u32 %v2756, 16
      %v2782 = vrot.slane %v2780, 1
      %v2783 = vsel %vm768, %v2778, %v2782
      %v2785 = vshrl.u32 %v2741, 16
      %v2787 = vshll.u32 %v2741, 16
      %v2789 = vrot.slane %v2787, 1
      %v2790 = vor.u32 %v2785, %v2789
      %v2792 = vshll.u32 %v2757, 16
      %v2794 = vrot.slane %v2792, 1
      %v2795 = vsel %vm768, %v2790, %v2794
      %v2797 = vshrl.u32 %v2742, 16
      %v2799 = vshll.u32 %v2742, 16
      %v2801 = vrot.slane %v2799, 1
      %v2802 = vor.u32 %v2797, %v2801
      %v2804 = vshll.u32 %v2758, 16
      %v2806 = vrot.slane %v2804, 1
      %v2807 = vsel %vm768, %v2802, %v2806
      %v2809 = vshrl.u32 %v2743, 16
      %v2811 = vshll.u32 %v2743, 16
      %v2813 = vrot.slane %v2811, 1
      %v2814 = vor.u32 %v2809, %v2813
      %v2816 = vshll.u32 %v2759, 16
      %v2818 = vrot.slane %v2816, 1
      %v2819 = vsel %vm768, %v2814, %v2818
      %v2821 = vshrl.u32 %v2744, 16
      %v2823 = vshll.u32 %v2744, 16
      %v2825 = vrot.slane %v2823, 1
      %v2826 = vor.u32 %v2821, %v2825
      %v2828 = vshll.u32 %v2760, 16
      %v2830 = vrot.slane %v2828, 1
      %v2831 = vsel %vm768, %v2826, %v2830
      %v2833 = vshrl.u32 %v2745, 16
      %v2835 = vshll.u32 %v2745, 16
      %v2837 = vrot.slane %v2835, 1
      %v2838 = vor.u32 %v2833, %v2837
      %v2840 = vshll.u32 %v2761, 16
      %v2842 = vrot.slane %v2840, 1
      %v2843 = vsel %vm768, %v2838, %v2842
      %v2845 = vshrl.u32 %v2746, 16
      %v2847 = vshll.u32 %v2746, 16
      %v2849 = vrot.slane %v2847, 1
      %v2850 = vor.u32 %v2845, %v2849
      %v2852 = vshll.u32 %v2762, 16
      %v2854 = vrot.slane %v2852, 1
      %v2855 = vsel %vm768, %v2850, %v2854
      %v2857 = vshrl.u32 %v2747, 16
      %v2859 = vshll.u32 %v2747, 16
      %v2861 = vrot.slane %v2859, 1
      %v2862 = vor.u32 %v2857, %v2861
      %v2864 = vshll.u32 %v2763, 16
      %v2866 = vrot.slane %v2864, 1
      %v2867 = vsel %vm768, %v2862, %v2866
      %v2869 = vshrl.u32 %v2748, 16
      %v2871 = vshll.u32 %v2748, 16
      %v2873 = vrot.slane %v2871, 1
      %v2874 = vor.u32 %v2869, %v2873
      %v2876 = vshll.u32 %v2764, 16
      %v2878 = vrot.slane %v2876, 1
      %v2879 = vsel %vm768, %v2874, %v2878
      %v2881 = vshrl.u32 %v2749, 16
      %v2883 = vshll.u32 %v2749, 16
      %v2885 = vrot.slane %v2883, 1
      %v2886 = vor.u32 %v2881, %v2885
      %v2888 = vshll.u32 %v2765, 16
      %v2890 = vrot.slane %v2888, 1
      %v2891 = vsel %vm768, %v2886, %v2890
      %v2893 = vshrl.u32 %v2750, 16
      %v2895 = vshll.u32 %v2750, 16
      %v2897 = vrot.slane %v2895, 1
      %v2898 = vor.u32 %v2893, %v2897
      %v2900 = vshll.u32 %v2766, 16
      %v2902 = vrot.slane %v2900, 1
      %v2903 = vsel %vm768, %v2898, %v2902
      %v2905 = vshrl.u32 %v2751, 16
      %v2907 = vshll.u32 %v2751, 16
      %v2909 = vrot.slane %v2907, 1
      %v2910 = vor.u32 %v2905, %v2909
      %v2912 = vshll.u32 %v2767, 16
      %v2914 = vrot.slane %v2912, 1
      %v2915 = vsel %vm768, %v2910, %v2914
      %v2917 = vshrl.u32 %v2752, 16
      %v2919 = vshll.u32 %v2752, 16
      %v2921 = vrot.slane %v2919, 1
      %v2922 = vor.u32 %v2917, %v2921
      %v2924 = vshll.u32 %v2768, 16
      %v2926 = vrot.slane %v2924, 1
      %v2927 = vsel %vm768, %v2922, %v2926
      %v2929 = vshrl.u32 %v2753, 16
      %v2931 = vshll.u32 %v2753, 16
      %v2933 = vrot.slane %v2931, 1
      %v2934 = vor.u32 %v2929, %v2933
      %v2936 = vshll.u32 %v2769, 16
      %v2938 = vrot.slane %v2936, 1
      %v2939 = vsel %vm768, %v2934, %v2938
      %v2941 = vshrl.u32 %v2754, 16
      %v2943 = vshll.u32 %v2754, 16
      %v2945 = vrot.slane %v2943, 1
      %v2946 = vor.u32 %v2941, %v2945
      %v2948 = vshll.u32 %v2770, 16
      %v2950 = vrot.slane %v2948, 1
      %v2951 = vsel %vm768, %v2946, %v2950
      %v2997 = vrot.slane %v2740, 1
      %v2998 = vrot.slane %v2756, 1
      %v2999 = vsel %vm1009, %v2997, %v2998
      %v3000 = vrot.slane %v2741, 1
      %v3001 = vrot.slane %v2757, 1
      %v3002 = vsel %vm1009, %v3000, %v3001
      %v3003 = vrot.slane %v2742, 1
      %v3004 = vrot.slane %v2758, 1
      %v3005 = vsel %vm1009, %v3003, %v3004
      %v3006 = vrot.slane %v2743, 1
      %v3007 = vrot.slane %v2759, 1
      %v3008 = vsel %vm1009, %v3006, %v3007
      %v3009 = vrot.slane %v2744, 1
      %v3010 = vrot.slane %v2760, 1
      %v3011 = vsel %vm1009, %v3009, %v3010
      %v3012 = vrot.slane %v2745, 1
      %v3013 = vrot.slane %v2761, 1
      %v3014 = vsel %vm1009, %v3012, %v3013
      %v3015 = vrot.slane %v2746, 1
      %v3016 = vrot.slane %v2762, 1
      %v3017 = vsel %vm1009, %v3015, %v3016
      %v3018 = vrot.slane %v2747, 1
      %v3019 = vrot.slane %v2763, 1
      %v3020 = vsel %vm1009, %v3018, %v3019
      %v3021 = vrot.slane %v2748, 1
      %v3022 = vrot.slane %v2764, 1
      %v3023 = vsel %vm1009, %v3021, %v3022
      %v3024 = vrot.slane %v2749, 1
      %v3025 = vrot.slane %v2765, 1
      %v3026 = vsel %vm1009, %v3024, %v3025
      %v3027 = vrot.slane %v2750, 1
      %v3028 = vrot.slane %v2766, 1
      %v3029 = vsel %vm1009, %v3027, %v3028
      %v3030 = vrot.slane %v2751, 1
      %v3031 = vrot.slane %v2767, 1
      %v3032 = vsel %vm1009, %v3030, %v3031
      %v3033 = vrot.slane %v2752, 1
      %v3034 = vrot.slane %v2768, 1
      %v3035 = vsel %vm1009, %v3033, %v3034
      %v3036 = vrot.slane %v2753, 1
      %v3037 = vrot.slane %v2769, 1
      %v3038 = vsel %vm1009, %v3036, %v3037
      %v3039 = vrot.slane %v2754, 1
      %v3040 = vrot.slane %v2770, 1
      %v3041 = vsel %vm1009, %v3039, %v3040
      %v3058 = vshrl.u32 %v2755, 16
      %v3060 = vshll.u32 %v2755, 16
      %v3062 = vrot.slane %v3060, 1
      %v3063 = vor.u32 %v3058, %v3062
      %v3065 = vshll.u32 %v2771, 16
      %v3067 = vrot.slane %v3065, 1
      %v3068 = vsel %vm768, %v3063, %v3067
      %v3072 = vrot.slane %v2755, 1
      %v3073 = vrot.slane %v2771, 1
      %v3074 = vsel %vm1009, %v3072, %v3073
      %v3220 = vunpack.c.l.b16 %v2452
      %v3221 = vunpack.c.l.b16 %v2453
      %v3222 = vunpack.c.l.b16 %v2454
      %v3223 = vunpack.c.l.b16 %v2455
      %v3224 = vunpack.c.l.b16 %v2456
      %v3225 = vunpack.c.l.b16 %v2457
      %v3226 = vunpack.c.l.b16 %v2458
      %v3227 = vunpack.c.l.b16 %v2459
      %v3228 = vunpack.c.l.b16 %v2460
      %v3229 = vunpack.c.l.b16 %v2461
      %v3230 = vunpack.c.l.b16 %v2462
      %v3231 = vunpack.c.l.b16 %v2463
      %v3232 = vunpack.c.l.b16 %v2464
      %v3233 = vunpack.c.l.b16 %v2465
      %v3234 = vunpack.c.l.b16 %v2466
      %v3235 = vunpack.c.l.b16 %v2467
      %v3236 = vunpack.c.l.b16 %v2468
      %v3237 = vunpack.c.l.b16 %v2469
      %v3238 = vunpack.c.l.b16 %v2470
      %v3239 = vunpack.c.l.b16 %v2471
      %v3240 = vunpack.c.l.b16 %v2472
      %v3241 = vunpack.c.l.b16 %v2473
      %v3242 = vunpack.c.l.b16 %v2474
      %v3243 = vunpack.c.l.b16 %v2475
      %v3244 = vunpack.c.l.b16 %v2476
      %v3245 = vunpack.c.l.b16 %v2477
      %v3246 = vunpack.c.l.b16 %v2478
      %v3247 = vunpack.c.l.b16 %v2479
      %v3248 = vunpack.c.l.b16 %v2480
      %v3249 = vunpack.c.l.b16 %v2481
      %v3250 = vunpack.c.l.b16 %v2482
      %v3251 = vunpack.c.l.b16 %v2483
      %v3252 = vunpack.c.l.b16 %v2484
      %v3253 = vunpack.c.l.b16 %v2485
      %v3254 = vunpack.c.l.b16 %v2486
      %v3255 = vunpack.c.l.b16 %v2487
      %v3256 = vunpack.c.l.b16 %v2488
      %v3257 = vunpack.c.l.b16 %v2489
      %v3258 = vunpack.c.l.b16 %v2490
      %v3259 = vunpack.c.l.b16 %v2491
      %v3260 = vunpack.c.l.b16 %v2492
      %v3261 = vunpack.c.l.b16 %v2493
      %v3262 = vunpack.c.l.b16 %v2494
      %v3263 = vunpack.c.l.b16 %v2495
      %v3264 = vunpack.c.l.b16 %v2496
      %v3265 = vunpack.c.l.b16 %v2497
      %v3266 = vunpack.c.l.b16 %v2498
      %v3267 = vunpack.c.l.b16 %v2499
      %v3268 = vunpack.c.l.b16 %v2500
      %v3269 = vunpack.c.l.b16 %v2501
      %v3270 = vunpack.c.l.b16 %v2502
      %v3271 = vunpack.c.l.b16 %v2503
      %v3272 = vunpack.c.l.b16 %v2504
      %v3273 = vunpack.c.l.b16 %v2505
      %v3274 = vunpack.c.l.b16 %v2506
      %v3275 = vunpack.c.l.b16 %v2507
      %v3276 = vunpack.c.l.b16 %v2508
      %v3277 = vunpack.c.l.b16 %v2509
      %v3278 = vunpack.c.l.b16 %v2510
      %v3279 = vunpack.c.l.b16 %v2511
      %v3280 = vunpack.c.l.b16 %v2512
      %v3281 = vunpack.c.l.b16 %v2513
      %v3282 = vunpack.c.l.b16 %v2514
      %v3283 = vunpack.c.l.b16 %v2515
      %v3284 = vunpack.c.l.b16 %v2516
      %v3285 = vunpack.c.l.b16 %v2517
      %v3286 = vunpack.c.l.b16 %v2518
      %v3287 = vunpack.c.l.b16 %v2519
      %v3288 = vunpack.c.l.b16 %v2520
      %v3289 = vunpack.c.l.b16 %v2521
      %v3290 = vunpack.c.l.b16 %v2522
      %v3291 = vunpack.c.l.b16 %v2523
      %v3292 = vunpack.c.l.b16 %v2524
      %v3293 = vunpack.c.l.b16 %v2525
      %v3294 = vunpack.c.l.b16 %v2526
      %v3295 = vunpack.c.l.b16 %v2527
      %v3296 = vunpack.c.l.b16 %v2528
      %v3297 = vunpack.c.l.b16 %v2529
      %v3298 = vunpack.c.l.b16 %v2530
      %v3299 = vunpack.c.l.b16 %v2531
      %v3300 = vunpack.c.l.b16 %v2532
      %v3301 = vunpack.c.l.b16 %v2533
      %v3302 = vunpack.c.l.b16 %v2534
      %v3303 = vunpack.c.l.b16 %v2535
      %v3304 = vunpack.c.l.b16 %v2536
      %v3305 = vunpack.c.l.b16 %v2537
      %v3306 = vunpack.c.l.b16 %v2538
      %v3307 = vunpack.c.l.b16 %v2539
      %v3308 = vunpack.c.l.b16 %v2540
      %v3309 = vunpack.c.l.b16 %v2541
      %v3310 = vunpack.c.l.b16 %v2542
      %v3311 = vunpack.c.l.b16 %v2543
      %v3312 = vunpack.c.l.b16 %v2544
      %v3313 = vunpack.c.l.b16 %v2545
      %v3314 = vunpack.c.l.b16 %v2546
      %v3315 = vunpack.c.l.b16 %v2547
      %v3316 = vunpack.c.l.b16 %v2548
      %v3317 = vunpack.c.l.b16 %v2549
      %v3318 = vunpack.c.l.b16 %v2550
      %v3319 = vunpack.c.l.b16 %v2551
      %v3320 = vunpack.c.l.b16 %v2552
      %v3321 = vunpack.c.l.b16 %v2553
      %v3322 = vunpack.c.l.b16 %v2554
      %v3323 = vunpack.c.l.b16 %v2555
      %v3324 = vunpack.c.l.b16 %v2556
      %v3325 = vunpack.c.l.b16 %v2557
      %v3326 = vunpack.c.l.b16 %v2558
      %v3327 = vunpack.c.l.b16 %v2559
      %v3328 = vunpack.c.l.b16 %v2560
      %v3329 = vunpack.c.l.b16 %v2561
      %v3330 = vunpack.c.l.b16 %v2562
      %v3331 = vunpack.c.l.b16 %v2563
      %v3332 = vunpack.c.l.b16 %v2564
      %v3333 = vunpack.c.l.b16 %v2565
      %v3334 = vunpack.c.l.b16 %v2566
      %v3335 = vunpack.c.l.b16 %v2567
      %v3336 = vunpack.c.l.b16 %v2568
      %v3337 = vunpack.c.l.b16 %v2569
      %v3338 = vunpack.c.l.b16 %v2570
      %v3339 = vunpack.c.l.b16 %v2571
      %v3340 = vunpack.c.l.b16 %v2572
      %v3341 = vunpack.c.l.b16 %v2573
      %v3342 = vunpack.c.l.b16 %v2574
      %v3343 = vunpack.c.l.b16 %v2575
      %v3344 = vunpack.c.l.b16 %v2576
      %v3345 = vunpack.c.l.b16 %v2577
      %v3346 = vunpack.c.l.b16 %v2578
      %v3347 = vunpack.c.l.b16 %v2579
      %v3348 = vunpack.c.l.b16 %v2580
      %v3349 = vunpack.c.l.b16 %v2581
      %v3350 = vunpack.c.l.b16 %v2582
      %v3351 = vunpack.c.l.b16 %v2583
      %v3352 = vunpack.c.l.b16 %v2584
      %v3353 = vunpack.c.l.b16 %v2585
      %v3354 = vunpack.c.l.b16 %v2586
      %v3355 = vunpack.c.l.b16 %v2587
      %v3356 = vunpack.c.l.b16 %v2588
      %v3357 = vunpack.c.l.b16 %v2589
      %v3358 = vunpack.c.l.b16 %v2590
      %v3359 = vunpack.c.l.b16 %v2591
      %v3360 = vunpack.c.l.b16 %v2592
      %v3361 = vunpack.c.l.b16 %v2593
      %v3362 = vunpack.c.l.b16 %v2594
      %v3363 = vunpack.c.l.b16 %v2595
      %v3364 = vpack.c.b16 %v3221, %v3220
      %v3365 = vpack.c.b16 %v3223, %v3222
      %v3366 = vpack.c.b16 %v3225, %v3224
      %v3367 = vpack.c.b16 %v3227, %v3226
      %v3368 = vpack.c.b16 %v3229, %v3228
      %v3369 = vpack.c.b16 %v3231, %v3230
      %v3370 = vpack.c.b16 %v3233, %v3232
      %v3371 = vpack.c.b16 %v3235, %v3234
      %v3372 = vpack.c.b16 %v3237, %v3236
      %v3373 = vpack.c.b16 %v3239, %v3238
      %v3374 = vpack.c.b16 %v3241, %v3240
      %v3375 = vpack.c.b16 %v3243, %v3242
      %v3376 = vpack.c.b16 %v3245, %v3244
      %v3377 = vpack.c.b16 %v3247, %v3246
      %v3378 = vpack.c.b16 %v3249, %v3248
      %v3379 = vpack.c.b16 %v3251, %v3250
      %v3380 = vpack.c.b16 %v3253, %v3252
      %v3381 = vpack.c.b16 %v3255, %v3254
      %v3382 = vpack.c.b16 %v3257, %v3256
      %v3383 = vpack.c.b16 %v3259, %v3258
      %v3384 = vpack.c.b16 %v3261, %v3260
      %v3385 = vpack.c.b16 %v3263, %v3262
      %v3386 = vpack.c.b16 %v3265, %v3264
      %v3387 = vpack.c.b16 %v3267, %v3266
      %v3388 = vpack.c.b16 %v3269, %v3268
      %v3389 = vpack.c.b16 %v3271, %v3270
      %v3390 = vpack.c.b16 %v3273, %v3272
      %v3391 = vpack.c.b16 %v3275, %v3274
      %v3392 = vpack.c.b16 %v3277, %v3276
      %v3393 = vpack.c.b16 %v3279, %v3278
      %v3394 = vpack.c.b16 %v3281, %v3280
      %v3395 = vpack.c.b16 %v3283, %v3282
      %v3396 = vpack.c.b16 %v3285, %v3284
      %v3397 = vpack.c.b16 %v3287, %v3286
      %v3398 = vpack.c.b16 %v3289, %v3288
      %v3399 = vpack.c.b16 %v3291, %v3290
      %v3400 = vpack.c.b16 %v3293, %v3292
      %v3401 = vpack.c.b16 %v3295, %v3294
      %v3402 = vpack.c.b16 %v3297, %v3296
      %v3403 = vpack.c.b16 %v3299, %v3298
      %v3404 = vpack.c.b16 %v3301, %v3300
      %v3405 = vpack.c.b16 %v3303, %v3302
      %v3406 = vpack.c.b16 %v3305, %v3304
      %v3407 = vpack.c.b16 %v3307, %v3306
      %v3408 = vpack.c.b16 %v3309, %v3308
      %v3409 = vpack.c.b16 %v3311, %v3310
      %v3410 = vpack.c.b16 %v3313, %v3312
      %v3411 = vpack.c.b16 %v3315, %v3314
      %v3412 = vpack.c.b16 %v3317, %v3316
      %v3413 = vpack.c.b16 %v3319, %v3318
      %v3414 = vpack.c.b16 %v3321, %v3320
      %v3415 = vpack.c.b16 %v3323, %v3322
      %v3416 = vpack.c.b16 %v3325, %v3324
      %v3417 = vpack.c.b16 %v3327, %v3326
      %v3418 = vpack.c.b16 %v3329, %v3328
      %v3419 = vpack.c.b16 %v3331, %v3330
      %v3420 = vpack.c.b16 %v3333, %v3332
      %v3421 = vpack.c.b16 %v3335, %v3334
      %v3422 = vpack.c.b16 %v3337, %v3336
      %v3423 = vpack.c.b16 %v3339, %v3338
      %v3424 = vpack.c.b16 %v3341, %v3340
      %v3425 = vpack.c.b16 %v3343, %v3342
      %v3426 = vpack.c.b16 %v3345, %v3344
      %v3427 = vpack.c.b16 %v3347, %v3346
      %v3428 = vpack.c.b16 %v3349, %v3348
      %v3429 = vpack.c.b16 %v3351, %v3350
      %v3430 = vpack.c.b16 %v3353, %v3352
      %v3431 = vpack.c.b16 %v3355, %v3354
      %v3432 = vpack.c.b16 %v3357, %v3356
      %v3433 = vpack.c.b16 %v3359, %v3358
      %v3434 = vpack.c.b16 %v3361, %v3360
      %v3435 = vpack.c.b16 %v3363, %v3362
      %3508 = vmatprep.subr.bf16.mxu0 0
      %3509 = vmatpush1.bf16.msra.mxu0 %v3364
      %3510 = vmatprep.subr.bf16.mxu0 0
      %3511 = vmatpush1.bf16.msra.mxu0 %v3365
      %3512 = vmatprep.subr.bf16.mxu0 0
      %3513 = vmatpush1.bf16.msra.mxu0 %v3366
      %3514 = vmatprep.subr.bf16.mxu0 0
      %3515 = vmatpush1.bf16.msra.mxu0 %v3367
      %3516 = vmatprep.subr.bf16.mxu0 0
      %3517 = vmatpush1.bf16.msra.mxu0 %v3368
      %3518 = vmatprep.subr.bf16.mxu0 0
      %3519 = vmatpush1.bf16.msra.mxu0 %v3369
      %3520 = vmatprep.subr.bf16.mxu0 0
      %3521 = vmatpush1.bf16.msra.mxu0 %v3370
      %3522 = vmatprep.subr.bf16.mxu0 0
      %3523 = vmatpush1.bf16.msra.mxu0 %v3371
      %3524 = vmatprep.subr.bf16.mxu0 0
      %3525 = vmatpush1.bf16.msra.mxu0 %v3372
      %3526 = vmatprep.subr.bf16.mxu0 0
      %3527 = vmatpush1.bf16.msra.mxu0 %v3373
      %3528 = vmatprep.subr.bf16.mxu0 0
      %3529 = vmatpush1.bf16.msra.mxu0 %v3374
      %3530 = vmatprep.subr.bf16.mxu0 0
      %3531 = vmatpush1.bf16.msra.mxu0 %v3375
      %3532 = vmatprep.subr.bf16.mxu0 0
      %3533 = vmatpush1.bf16.msra.mxu0 %v3376
      %3534 = vmatprep.subr.bf16.mxu0 0
      %3535 = vmatpush1.bf16.msra.mxu0 %v3377
      %3536 = vmatprep.subr.bf16.mxu0 0
      %3537 = vmatpush1.bf16.msra.mxu0 %v3378
      %3538 = vmatprep.subr.bf16.mxu0 0
      %3539 = vmatpush1.bf16.msra.mxu0 %v3379
      %3540 = vmatprep.mubr.bf16.mxu0 %v780
      %3541 = vmatmul.mubr.bf16.gmra.mrb[0].mxu0 %v734
      %v3542 = vpop.f32.mrb[0].mxu0
      %v3543 = vadd.f32 0.0, %v3542
      %v3544 = vpop.f32.mrb[0].mxu0
      %v3545 = vpop.f32.mrb[0].mxu0
      %v3546 = vadd.f32 0.0, %v3545
      %v3547 = vpop.f32.mrb[0].mxu0
      %3548 = vmatprep.mubr.bf16.mxu0 %v2783
      %3549 = vmatmul.mubr.bf16.gmra.mrb[0].mxu0 %v2740
      %v3550 = vpop.f32.mrb[0].mxu0
      %v3551 = vadd.f32 0.0, %v3550
      %v3552 = vpop.f32.mrb[0].mxu0
      %v3553 = vpop.f32.mrb[0].mxu0
      %v3554 = vadd.f32 0.0, %v3553
      %v3555 = vpop.f32.mrb[0].mxu0
      %3556 = vmatprep.mubr.bf16.mxu0 %v2795
      %3557 = vmatmul.mubr.bf16.gmra.mrb[0].mxu0 %v2741
      %v3558 = vpop.f32.mrb[0].mxu0
      %v3559 = vadd.f32 0.0, %v3558
      %v3560 = vpop.f32.mrb[0].mxu0
      %v3561 = vpop.f32.mrb[0].mxu0
      %v3562 = vadd.f32 0.0, %v3561
      %v3563 = vpop.f32.mrb[0].mxu0
      %3564 = vmatprep.mubr.bf16.mxu0 %v2807
      %3565 = vmatmul.mubr.bf16.gmra.mrb[0].mxu0 %v2742
      %v3566 = vpop.f32.mrb[0].mxu0
      %v3567 = vadd.f32 0.0, %v3566
      %v3568 = vpop.f32.mrb[0].mxu0
      %v3569 = vpop.f32.mrb[0].mxu0
      %v3570 = vadd.f32 0.0, %v3569
      %v3571 = vpop.f32.mrb[0].mxu0
      %3572 = vmatprep.mubr.bf16.mxu0 %v2819
      %3573 = vmatmul.mubr.bf16.gmra.mrb[0].mxu0 %v2743
      %v3574 = vpop.f32.mrb[0].mxu0
      %v3575 = vadd.f32 0.0, %v3574
      %v3576 = vpop.f32.mrb[0].mxu0
      %v3577 = vpop.f32.mrb[0].mxu0
      %v3578 = vadd.f32 0.0, %v3577
      %v3579 = vpop.f32.mrb[0].mxu0
      %3580 = vmatprep.mubr.bf16.mxu0 %v2831
      %3581 = vmatmul.mubr.bf16.gmra.mrb[0].mxu0 %v2744
      %v3582 = vpop.f32.mrb[0].mxu0
      %v3583 = vadd.f32 0.0, %v3582
      %v3584 = vpop.f32.mrb[0].mxu0
      %v3585 = vpop.f32.mrb[0].mxu0
      %v3586 = vadd.f32 0.0, %v3585
      %v3587 = vpop.f32.mrb[0].mxu0
      %3588 = vmatprep.mubr.bf16.mxu0 %v2843
      %3589 = vmatmul.mubr.bf16.gmra.mrb[0].mxu0 %v2745
      %v3590 = vpop.f32.mrb[0].mxu0
      %v3591 = vadd.f32 0.0, %v3590
      %v3592 = vpop.f32.mrb[0].mxu0
      %v3593 = vpop.f32.mrb[0].mxu0
      %v3594 = vadd.f32 0.0, %v3593
      %v3595 = vpop.f32.mrb[0].mxu0
      %3596 = vmatprep.mubr.bf16.mxu0 %v2855
      %3597 = vmatmul.mubr.bf16.gmra.mrb[0].mxu0 %v2746
      %v3598 = vpop.f32.mrb[0].mxu0
      %v3599 = vadd.f32 0.0, %v3598
      %v3600 = vpop.f32.mrb[0].mxu0
      %v3601 = vpop.f32.mrb[0].mxu0
      %v3602 = vadd.f32 0.0, %v3601
      %v3603 = vpop.f32.mrb[0].mxu0
      %3604 = vmatprep.mubr.bf16.mxu0 %v2867
      %3605 = vmatmul.mubr.bf16.gmra.mrb[0].mxu0 %v2747
      %v3606 = vpop.f32.mrb[0].mxu0
      %v3607 = vadd.f32 0.0, %v3606
      %v3608 = vpop.f32.mrb[0].mxu0
      %v3609 = vpop.f32.mrb[0].mxu0
      %v3610 = vadd.f32 0.0, %v3609
      %v3611 = vpop.f32.mrb[0].mxu0
      %3612 = vmatprep.mubr.bf16.mxu0 %v2879
      %3613 = vmatmul.mubr.bf16.gmra.mrb[0].mxu0 %v2748
      %v3614 = vpop.f32.mrb[0].mxu0
      %v3615 = vadd.f32 0.0, %v3614
      %v3616 = vpop.f32.mrb[0].mxu0
      %v3617 = vpop.f32.mrb[0].mxu0
      %v3618 = vadd.f32 0.0, %v3617
      %v3619 = vpop.f32.mrb[0].mxu0
      %3620 = vmatprep.mubr.bf16.mxu0 %v2891
      %3621 = vmatmul.mubr.bf16.gmra.mrb[0].mxu0 %v2749
      %v3622 = vpop.f32.mrb[0].mxu0
      %v3623 = vadd.f32 0.0, %v3622
      %v3624 = vpop.f32.mrb[0].mxu0
      %v3625 = vpop.f32.mrb[0].mxu0
      %v3626 = vadd.f32 0.0, %v3625
      %v3627 = vpop.f32.mrb[0].mxu0
      %3628 = vmatprep.mubr.bf16.mxu0 %v2903
      %3629 = vmatmul.mubr.bf16.gmra.mrb[0].mxu0 %v2750
      %v3630 = vpop.f32.mrb[0].mxu0
      %v3631 = vadd.f32 0.0, %v3630
      %v3632 = vpop.f32.mrb[0].mxu0
      %v3633 = vpop.f32.mrb[0].mxu0
      %v3634 = vadd.f32 0.0, %v3633
      %v3635 = vpop.f32.mrb[0].mxu0
      %3636 = vmatprep.mubr.bf16.mxu0 %v2915
      %3637 = vmatmul.mubr.bf16.gmra.mrb[0].mxu0 %v2751
      %v3638 = vpop.f32.mrb[0].mxu0
      %v3639 = vadd.f32 0.0, %v3638
      %v3640 = vpop.f32.mrb[0].mxu0
      %v3641 = vpop.f32.mrb[0].mxu0
      %v3642 = vadd.f32 0.0, %v3641
      %v3643 = vpop.f32.mrb[0].mxu0
      %3644 = vmatprep.mubr.bf16.mxu0 %v2927
      %3645 = vmatmul.mubr.bf16.gmra.mrb[0].mxu0 %v2752
      %v3646 = vpop.f32.mrb[0].mxu0
      %v3647 = vadd.f32 0.0, %v3646
      %v3648 = vpop.f32.mrb[0].mxu0
      %v3649 = vpop.f32.mrb[0].mxu0
      %v3650 = vadd.f32 0.0, %v3649
      %v3651 = vpop.f32.mrb[0].mxu0
      %3652 = vmatprep.mubr.bf16.mxu0 %v2939
      %3653 = vmatmul.mubr.bf16.gmra.mrb[0].mxu0 %v2753
      %v3654 = vpop.f32.mrb[0].mxu0
      %v3655 = vadd.f32 0.0, %v3654
      %v3656 = vpop.f32.mrb[0].mxu0
      %v3657 = vpop.f32.mrb[0].mxu0
      %v3658 = vadd.f32 0.0, %v3657
      %v3659 = vpop.f32.mrb[0].mxu0
      %3660 = vmatprep.mubr.bf16.mxu0 %v2951
      %3661 = vmatmul.mubr.bf16.gmra.mrb[0].mxu0 %v2754
      %v3662 = vpop.f32.mrb[0].mxu0
      %v3663 = vadd.f32 0.0, %v3662
      %v3664 = vpop.f32.mrb[0].mxu0
      %v3665 = vpop.f32.mrb[0].mxu0
      %v3666 = vadd.f32 0.0, %v3665
      %v3667 = vpop.f32.mrb[0].mxu0
      %3668 = vdwg.mxu0
      %3669 = vmatprep.subr.bf16.mxu0 0
      %3670 = vmatpush1.bf16.msra.mxu0 %v3380
      %3671 = vmatprep.subr.bf16.mxu0 0
      %3672 = vmatpush1.bf16.msra.mxu0 %v3381
      %3673 = vmatprep.subr.bf16.mxu0 0
      %3674 = vmatpush1.bf16.msra.mxu0 %v3382
      %3675 = vmatprep.subr.bf16.mxu0 0
      %3676 = vmatpush1.bf16.msra.mxu0 %v3383
      %3677 = vmatprep.subr.bf16.mxu0 0
      %3678 = vmatpush1.bf16.msra.mxu0 %v3384
      %3679 = vmatprep.subr.bf16.mxu0 0
      %3680 = vmatpush1.bf16.msra.mxu0 %v3385
      %3681 = vmatprep.subr.bf16.mxu0 0
      %3682 = vmatpush1.bf16.msra.mxu0 %v3386
      %3683 = vmatprep.subr.bf16.mxu0 0
      %3684 = vmatpush1.bf16.msra.mxu0 %v3387
      %3685 = vmatprep.subr.bf16.mxu0 0
      %3686 = vmatpush1.bf16.msra.mxu0 %v3388
      %3687 = vmatprep.subr.bf16.mxu0 0
      %3688 = vmatpush1.bf16.msra.mxu0 %v3389
      %3689 = vmatprep.subr.bf16.mxu0 0
      %3690 = vmatpush1.bf16.msra.mxu0 %v3390
      %3691 = vmatprep.subr.bf16.mxu0 0
      %3692 = vmatpush1.bf16.msra.mxu0 %v3391
      %3693 = vmatprep.subr.bf16.mxu0 0
      %3694 = vmatpush1.bf16.msra.mxu0 %v3392
      %3695 = vmatprep.subr.bf16.mxu0 0
      %3696 = vmatpush1.bf16.msra.mxu0 %v3393
      %3697 = vmatprep.subr.bf16.mxu0 0
      %3698 = vmatpush1.bf16.msra.mxu0 %v3394
      %3699 = vmatprep.subr.bf16.mxu0 0
      %3700 = vmatpush1.bf16.msra.mxu0 %v3395
      %3701 = vmatprep.mubr.bf16.mxu0 %v2740
      %3702 = vmatmul.mubr.bf16.gmra.mrb[0].mxu0 %v1012
      %v3703 = vpop.f32.mrb[0].mxu0
      %v3704 = vadd.f32 %v3543, %v3703
      %v3705 = vpop.f32.mrb[0].mxu0
      %v3706 = vpop.f32.mrb[0].mxu0
      %v3707 = vadd.f32 %v3546, %v3706
      %v3708 = vpop.f32.mrb[0].mxu0
      %3709 = vmatprep.mubr.bf16.mxu0 %v2741
      %3710 = vmatmul.mubr.bf16.gmra.mrb[0].mxu0 %v2999
      %v3711 = vpop.f32.mrb[0].mxu0
      %v3712 = vadd.f32 %v3551, %v3711
      %v3713 = vpop.f32.mrb[0].mxu0
      %v3714 = vpop.f32.mrb[0].mxu0
      %v3715 = vadd.f32 %v3554, %v3714
      %v3716 = vpop.f32.mrb[0].mxu0
      %3717 = vmatprep.mubr.bf16.mxu0 %v2742
      %3718 = vmatmul.mubr.bf16.gmra.mrb[0].mxu0 %v3002
      %v3719 = vpop.f32.mrb[0].mxu0
      %v3720 = vadd.f32 %v3559, %v3719
      %v3721 = vpop.f32.mrb[0].mxu0
      %v3722 = vpop.f32.mrb[0].mxu0
      %v3723 = vadd.f32 %v3562, %v3722
      %v3724 = vpop.f32.mrb[0].mxu0
      %3725 = vmatprep.mubr.bf16.mxu0 %v2743
      %3726 = vmatmul.mubr.bf16.gmra.mrb[0].mxu0 %v3005
      %v3727 = vpop.f32.mrb[0].mxu0
      %v3728 = vadd.f32 %v3567, %v3727
      %v3729 = vpop.f32.mrb[0].mxu0
      %v3730 = vpop.f32.mrb[0].mxu0
      %v3731 = vadd.f32 %v3570, %v3730
      %v3732 = vpop.f32.mrb[0].mxu0
      %3733 = vmatprep.mubr.bf16.mxu0 %v2744
      %3734 = vmatmul.mubr.bf16.gmra.mrb[0].mxu0 %v3008
      %v3735 = vpop.f32.mrb[0].mxu0
      %v3736 = vadd.f32 %v3575, %v3735
      %v3737 = vpop.f32.mrb[0].mxu0
      %v3738 = vpop.f32.mrb[0].mxu0
      %v3739 = vadd.f32 %v3578, %v3738
      %v3740 = vpop.f32.mrb[0].mxu0
      %3741 = vmatprep.mubr.bf16.mxu0 %v2745
      %3742 = vmatmul.mubr.bf16.gmra.mrb[0].mxu0 %v3011
      %v3743 = vpop.f32.mrb[0].mxu0
      %v3744 = vadd.f32 %v3583, %v3743
      %v3745 = vpop.f32.mrb[0].mxu0
      %v3746 = vpop.f32.mrb[0].mxu0
      %v3747 = vadd.f32 %v3586, %v3746
      %v3748 = vpop.f32.mrb[0].mxu0
      %3749 = vmatprep.mubr.bf16.mxu0 %v2746
      %3750 = vmatmul.mubr.bf16.gmra.mrb[0].mxu0 %v3014
      %v3751 = vpop.f32.mrb[0].mxu0
      %v3752 = vadd.f32 %v3591, %v3751
      %v3753 = vpop.f32.mrb[0].mxu0
      %v3754 = vpop.f32.mrb[0].mxu0
      %v3755 = vadd.f32 %v3594, %v3754
      %v3756 = vpop.f32.mrb[0].mxu0
      %3757 = vmatprep.mubr.bf16.mxu0 %v2747
      %3758 = vmatmul.mubr.bf16.gmra.mrb[0].mxu0 %v3017
      %v3759 = vpop.f32.mrb[0].mxu0
      %v3760 = vadd.f32 %v3599, %v3759
      %v3761 = vpop.f32.mrb[0].mxu0
      %v3762 = vpop.f32.mrb[0].mxu0
      %v3763 = vadd.f32 %v3602, %v3762
      %v3764 = vpop.f32.mrb[0].mxu0
      %3765 = vmatprep.mubr.bf16.mxu0 %v2748
      %3766 = vmatmul.mubr.bf16.gmra.mrb[0].mxu0 %v3020
      %v3767 = vpop.f32.mrb[0].mxu0
      %v3768 = vadd.f32 %v3607, %v3767
      %v3769 = vpop.f32.mrb[0].mxu0
      %v3770 = vpop.f32.mrb[0].mxu0
      %v3771 = vadd.f32 %v3610, %v3770
      %v3772 = vpop.f32.mrb[0].mxu0
      %3773 = vmatprep.mubr.bf16.mxu0 %v2749
      %3774 = vmatmul.mubr.bf16.gmra.mrb[0].mxu0 %v3023
      %v3775 = vpop.f32.mrb[0].mxu0
      %v3776 = vadd.f32 %v3615, %v3775
      %v3777 = vpop.f32.mrb[0].mxu0
      %v3778 = vpop.f32.mrb[0].mxu0
      %v3779 = vadd.f32 %v3618, %v3778
      %v3780 = vpop.f32.mrb[0].mxu0
      %3781 = vmatprep.mubr.bf16.mxu0 %v2750
      %3782 = vmatmul.mubr.bf16.gmra.mrb[0].mxu0 %v3026
      %v3783 = vpop.f32.mrb[0].mxu0
      %v3784 = vadd.f32 %v3623, %v3783
      %v3785 = vpop.f32.mrb[0].mxu0
      %v3786 = vpop.f32.mrb[0].mxu0
      %v3787 = vadd.f32 %v3626, %v3786
      %v3788 = vpop.f32.mrb[0].mxu0
      %3789 = vmatprep.mubr.bf16.mxu0 %v2751
      %3790 = vmatmul.mubr.bf16.gmra.mrb[0].mxu0 %v3029
      %v3791 = vpop.f32.mrb[0].mxu0
      %v3792 = vadd.f32 %v3631, %v3791
      %v3793 = vpop.f32.mrb[0].mxu0
      %v3794 = vpop.f32.mrb[0].mxu0
      %v3795 = vadd.f32 %v3634, %v3794
      %v3796 = vpop.f32.mrb[0].mxu0
      %3797 = vmatprep.mubr.bf16.mxu0 %v2752
      %3798 = vmatmul.mubr.bf16.gmra.mrb[0].mxu0 %v3032
      %v3799 = vpop.f32.mrb[0].mxu0
      %v3800 = vadd.f32 %v3639, %v3799
      %v3801 = vpop.f32.mrb[0].mxu0
      %v3802 = vpop.f32.mrb[0].mxu0
      %v3803 = vadd.f32 %v3642, %v3802
      %v3804 = vpop.f32.mrb[0].mxu0
      %3805 = vmatprep.mubr.bf16.mxu0 %v2753
      %3806 = vmatmul.mubr.bf16.gmra.mrb[0].mxu0 %v3035
      %v3807 = vpop.f32.mrb[0].mxu0
      %v3808 = vadd.f32 %v3647, %v3807
      %v3809 = vpop.f32.mrb[0].mxu0
      %v3810 = vpop.f32.mrb[0].mxu0
      %v3811 = vadd.f32 %v3650, %v3810
      %v3812 = vpop.f32.mrb[0].mxu0
      %3813 = vmatprep.mubr.bf16.mxu0 %v2754
      %3814 = vmatmul.mubr.bf16.gmra.mrb[0].mxu0 %v3038
      %v3815 = vpop.f32.mrb[0].mxu0
      %v3816 = vadd.f32 %v3655, %v3815
      %v3817 = vpop.f32.mrb[0].mxu0
      %v3818 = vpop.f32.mrb[0].mxu0
      %v3819 = vadd.f32 %v3658, %v3818
      %v3820 = vpop.f32.mrb[0].mxu0
      %3821 = vmatprep.mubr.bf16.mxu0 %v2755
      %3822 = vmatmul.mubr.bf16.gmra.mrb[0].mxu0 %v3041
      %v3823 = vpop.f32.mrb[0].mxu0
      %v3824 = vadd.f32 %v3663, %v3823
      %v3825 = vpop.f32.mrb[0].mxu0
      %v3826 = vpop.f32.mrb[0].mxu0
      %v3827 = vadd.f32 %v3666, %v3826
      %v3828 = vpop.f32.mrb[0].mxu0
      %3829 = vdwg.mxu0
      %3830 = vmatprep.subr.bf16.mxu0 0
      %3831 = vmatpush1.bf16.msra.mxu0 %v3396
      %3832 = vmatprep.subr.bf16.mxu0 0
      %3833 = vmatpush1.bf16.msra.mxu0 %v3397
      %3834 = vmatprep.subr.bf16.mxu0 0
      %3835 = vmatpush1.bf16.msra.mxu0 %v3398
      %3836 = vmatprep.subr.bf16.mxu0 0
      %3837 = vmatpush1.bf16.msra.mxu0 %v3399
      %3838 = vmatprep.subr.bf16.mxu0 0
      %3839 = vmatpush1.bf16.msra.mxu0 %v3400
      %3840 = vmatprep.subr.bf16.mxu0 0
      %3841 = vmatpush1.bf16.msra.mxu0 %v3401
      %3842 = vmatprep.subr.bf16.mxu0 0
      %3843 = vmatpush1.bf16.msra.mxu0 %v3402
      %3844 = vmatprep.subr.bf16.mxu0 0
      %3845 = vmatpush1.bf16.msra.mxu0 %v3403
      %3846 = vmatprep.subr.bf16.mxu0 0
      %3847 = vmatpush1.bf16.msra.mxu0 %v3404
      %3848 = vmatprep.subr.bf16.mxu0 0
      %3849 = vmatpush1.bf16.msra.mxu0 %v3405
      %3850 = vmatprep.subr.bf16.mxu0 0
      %3851 = vmatpush1.bf16.msra.mxu0 %v3406
      %3852 = vmatprep.subr.bf16.mxu0 0
      %3853 = vmatpush1.bf16.msra.mxu0 %v3407
      %3854 = vmatprep.subr.bf16.mxu0 0
      %3855 = vmatpush1.bf16.msra.mxu0 %v3408
      %3856 = vmatprep.subr.bf16.mxu0 0
      %3857 = vmatpush1.bf16.msra.mxu0 %v3409
      %3858 = vmatprep.subr.bf16.mxu0 0
      %3859 = vmatpush1.bf16.msra.mxu0 %v3410
      %3860 = vmatprep.subr.bf16.mxu0 0
      %3861 = vmatpush1.bf16.msra.mxu0 %v3411
      %3862 = vmatprep.mubr.bf16.mxu0 %v2999
      %3863 = vmatmul.mubr.bf16.gmra.mrb[0].mxu0 %v2783
      %v3864 = vpop.f32.mrb[0].mxu0
      %v3865 = vadd.f32 %v3704, %v3864
      %v3866 = vpop.f32.mrb[0].mxu0
      %v3867 = vpop.f32.mrb[0].mxu0
      %v3868 = vadd.f32 %v3707, %v3867
      %v3869 = vpop.f32.mrb[0].mxu0
      %3870 = vmatprep.mubr.bf16.mxu0 %v3002
      %3871 = vmatmul.mubr.bf16.gmra.mrb[0].mxu0 %v2795
      %v3872 = vpop.f32.mrb[0].mxu0
      %v3873 = vadd.f32 %v3712, %v3872
      %v3874 = vpop.f32.mrb[0].mxu0
      %v3875 = vpop.f32.mrb[0].mxu0
      %v3876 = vadd.f32 %v3715, %v3875
      %v3877 = vpop.f32.mrb[0].mxu0
      %3878 = vmatprep.mubr.bf16.mxu0 %v3005
      %3879 = vmatmul.mubr.bf16.gmra.mrb[0].mxu0 %v2807
      %v3880 = vpop.f32.mrb[0].mxu0
      %v3881 = vadd.f32 %v3720, %v3880
      %v3882 = vpop.f32.mrb[0].mxu0
      %v3883 = vpop.f32.mrb[0].mxu0
      %v3884 = vadd.f32 %v3723, %v3883
      %v3885 = vpop.f32.mrb[0].mxu0
      %3886 = vmatprep.mubr.bf16.mxu0 %v3008
      %3887 = vmatmul.mubr.bf16.gmra.mrb[0].mxu0 %v2819
      %v3888 = vpop.f32.mrb[0].mxu0
      %v3889 = vadd.f32 %v3728, %v3888
      %v3890 = vpop.f32.mrb[0].mxu0
      %v3891 = vpop.f32.mrb[0].mxu0
      %v3892 = vadd.f32 %v3731, %v3891
      %v3893 = vpop.f32.mrb[0].mxu0
      %3894 = vmatprep.mubr.bf16.mxu0 %v3011
      %3895 = vmatmul.mubr.bf16.gmra.mrb[0].mxu0 %v2831
      %v3896 = vpop.f32.mrb[0].mxu0
      %v3897 = vadd.f32 %v3736, %v3896
      %v3898 = vpop.f32.mrb[0].mxu0
      %v3899 = vpop.f32.mrb[0].mxu0
      %v3900 = vadd.f32 %v3739, %v3899
      %v3901 = vpop.f32.mrb[0].mxu0
      %3902 = vmatprep.mubr.bf16.mxu0 %v3014
      %3903 = vmatmul.mubr.bf16.gmra.mrb[0].mxu0 %v2843
      %v3904 = vpop.f32.mrb[0].mxu0
      %v3905 = vadd.f32 %v3744, %v3904
      %v3906 = vpop.f32.mrb[0].mxu0
      %v3907 = vpop.f32.mrb[0].mxu0
      %v3908 = vadd.f32 %v3747, %v3907
      %v3909 = vpop.f32.mrb[0].mxu0
      %3910 = vmatprep.mubr.bf16.mxu0 %v3017
      %3911 = vmatmul.mubr.bf16.gmra.mrb[0].mxu0 %v2855
      %v3912 = vpop.f32.mrb[0].mxu0
      %v3913 = vadd.f32 %v3752, %v3912
      %v3914 = vpop.f32.mrb[0].mxu0
      %v3915 = vpop.f32.mrb[0].mxu0
      %v3916 = vadd.f32 %v3755, %v3915
      %v3917 = vpop.f32.mrb[0].mxu0
      %3918 = vmatprep.mubr.bf16.mxu0 %v3020
      %3919 = vmatmul.mubr.bf16.gmra.mrb[0].mxu0 %v2867
      %v3920 = vpop.f32.mrb[0].mxu0
      %v3921 = vadd.f32 %v3760, %v3920
      %v3922 = vpop.f32.mrb[0].mxu0
      %v3923 = vpop.f32.mrb[0].mxu0
      %v3924 = vadd.f32 %v3763, %v3923
      %v3925 = vpop.f32.mrb[0].mxu0
      %3926 = vmatprep.mubr.bf16.mxu0 %v3023
      %3927 = vmatmul.mubr.bf16.gmra.mrb[0].mxu0 %v2879
      %v3928 = vpop.f32.mrb[0].mxu0
      %v3929 = vadd.f32 %v3768, %v3928
      %v3930 = vpop.f32.mrb[0].mxu0
      %v3931 = vpop.f32.mrb[0].mxu0
      %v3932 = vadd.f32 %v3771, %v3931
      %v3933 = vpop.f32.mrb[0].mxu0
      %3934 = vmatprep.mubr.bf16.mxu0 %v3026
      %3935 = vmatmul.mubr.bf16.gmra.mrb[0].mxu0 %v2891
      %v3936 = vpop.f32.mrb[0].mxu0
      %v3937 = vadd.f32 %v3776, %v3936
      %v3938 = vpop.f32.mrb[0].mxu0
      %v3939 = vpop.f32.mrb[0].mxu0
      %v3940 = vadd.f32 %v3779, %v3939
      %v3941 = vpop.f32.mrb[0].mxu0
      %3942 = vmatprep.mubr.bf16.mxu0 %v3029
      %3943 = vmatmul.mubr.bf16.gmra.mrb[0].mxu0 %v2903
      %v3944 = vpop.f32.mrb[0].mxu0
      %v3945 = vadd.f32 %v3784, %v3944
      %v3946 = vpop.f32.mrb[0].mxu0
      %v3947 = vpop.f32.mrb[0].mxu0
      %v3948 = vadd.f32 %v3787, %v3947
      %v3949 = vpop.f32.mrb[0].mxu0
      %3950 = vmatprep.mubr.bf16.mxu0 %v3032
      %3951 = vmatmul.mubr.bf16.gmra.mrb[0].mxu0 %v2915
      %v3952 = vpop.f32.mrb[0].mxu0
      %v3953 = vadd.f32 %v3792, %v3952
      %v3954 = vpop.f32.mrb[0].mxu0
      %v3955 = vpop.f32.mrb[0].mxu0
      %v3956 = vadd.f32 %v3795, %v3955
      %v3957 = vpop.f32.mrb[0].mxu0
      %3958 = vmatprep.mubr.bf16.mxu0 %v3035
      %3959 = vmatmul.mubr.bf16.gmra.mrb[0].mxu0 %v2927
      %v3960 = vpop.f32.mrb[0].mxu0
      %v3961 = vadd.f32 %v3800, %v3960
      %v3962 = vpop.f32.mrb[0].mxu0
      %v3963 = vpop.f32.mrb[0].mxu0
      %v3964 = vadd.f32 %v3803, %v3963
      %v3965 = vpop.f32.mrb[0].mxu0
      %3966 = vmatprep.mubr.bf16.mxu0 %v3038
      %3967 = vmatmul.mubr.bf16.gmra.mrb[0].mxu0 %v2939
      %v3968 = vpop.f32.mrb[0].mxu0
      %v3969 = vadd.f32 %v3808, %v3968
      %v3970 = vpop.f32.mrb[0].mxu0
      %v3971 = vpop.f32.mrb[0].mxu0
      %v3972 = vadd.f32 %v3811, %v3971
      %v3973 = vpop.f32.mrb[0].mxu0
      %3974 = vmatprep.mubr.bf16.mxu0 %v3041
      %3975 = vmatmul.mubr.bf16.gmra.mrb[0].mxu0 %v2951
      %v3976 = vpop.f32.mrb[0].mxu0
      %v3977 = vadd.f32 %v3816, %v3976
      %v3978 = vpop.f32.mrb[0].mxu0
      %v3979 = vpop.f32.mrb[0].mxu0
      %v3980 = vadd.f32 %v3819, %v3979
      %v3981 = vpop.f32.mrb[0].mxu0
      %3982 = vmatprep.mubr.bf16.mxu0 %v3074
      %3983 = vmatmul.mubr.bf16.gmra.mrb[0].mxu0 %v3068
      %v3984 = vpop.f32.mrb[0].mxu0
      %v3985 = vadd.f32 %v3824, %v3984
      %v3986 = vpop.f32.mrb[0].mxu0
      %v3987 = vpop.f32.mrb[0].mxu0
      %v3988 = vadd.f32 %v3827, %v3987
      %v3989 = vpop.f32.mrb[0].mxu0
      %3990 = vdwg.mxu0
      %3991 = vmatprep.subr.bf16.mxu0 0
      %3992 = vmatpush1.bf16.msra.mxu0 %v3412
      %3993 = vmatprep.subr.bf16.mxu0 0
      %3994 = vmatpush1.bf16.msra.mxu0 %v3413
      %3995 = vmatprep.subr.bf16.mxu0 0
      %3996 = vmatpush1.bf16.msra.mxu0 %v3414
      %3997 = vmatprep.subr.bf16.mxu0 0
      %3998 = vmatpush1.bf16.msra.mxu0 %v3415
      %3999 = vmatprep.subr.bf16.mxu0 0
      %4000 = vmatpush1.bf16.msra.mxu0 %v3416
      %4001 = vmatprep.subr.bf16.mxu0 0
      %4002 = vmatpush1.bf16.msra.mxu0 %v3417
      %4003 = vmatprep.subr.bf16.mxu0 0
      %4004 = vmatpush1.bf16.msra.mxu0 %v3418
      %4005 = vmatprep.subr.bf16.mxu0 0
      %4006 = vmatpush1.bf16.msra.mxu0 %v3419
      %4007 = vmatprep.subr.bf16.mxu0 0
      %4008 = vmatpush1.bf16.msra.mxu0 %v3420
      %4009 = vmatprep.subr.bf16.mxu0 0
      %4010 = vmatpush1.bf16.msra.mxu0 %v3421
      %4011 = vmatprep.subr.bf16.mxu0 0
      %4012 = vmatpush1.bf16.msra.mxu0 %v3422
      %4013 = vmatprep.subr.bf16.mxu0 0
      %4014 = vmatpush1.bf16.msra.mxu0 %v3423
      %4015 = vmatprep.subr.bf16.mxu0 0
      %4016 = vmatpush1.bf16.msra.mxu0 %v3424
      %4017 = vmatprep.subr.bf16.mxu0 0
      %4018 = vmatpush1.bf16.msra.mxu0 %v3425
      %4019 = vmatprep.subr.bf16.mxu0 0
      %4020 = vmatpush1.bf16.msra.mxu0 %v3426
      %4021 = vmatprep.subr.bf16.mxu0 0
      %4022 = vmatpush1.bf16.msra.mxu0 %v3427
      %4023 = vmatprep.mubr.bf16.mxu0 %v2795
      %4024 = vmatmul.mubr.bf16.gmra.mrb[0].mxu0 %v2741
      %v4025 = vpop.f32.mrb[0].mxu0
      %v4026 = vadd.f32 %v3865, %v4025
      %v4027 = vpop.f32.mrb[0].mxu0
      %v4028 = vpop.f32.mrb[0].mxu0
      %v4029 = vadd.f32 %v3868, %v4028
      %v4030 = vpop.f32.mrb[0].mxu0
      %4031 = vmatprep.mubr.bf16.mxu0 %v2807
      %4032 = vmatmul.mubr.bf16.gmra.mrb[0].mxu0 %v2742
      %v4033 = vpop.f32.mrb[0].mxu0
      %v4034 = vadd.f32 %v3873, %v4033
      %v4035 = vpop.f32.mrb[0].mxu0
      %v4036 = vpop.f32.mrb[0].mxu0
      %v4037 = vadd.f32 %v3876, %v4036
      %v4038 = vpop.f32.mrb[0].mxu0
      %4039 = vmatprep.mubr.bf16.mxu0 %v2819
      %4040 = vmatmul.mubr.bf16.gmra.mrb[0].mxu0 %v2743
      %v4041 = vpop.f32.mrb[0].mxu0
      %v4042 = vadd.f32 %v3881, %v4041
      %v4043 = vpop.f32.mrb[0].mxu0
      %v4044 = vpop.f32.mrb[0].mxu0
      %v4045 = vadd.f32 %v3884, %v4044
      %v4046 = vpop.f32.mrb[0].mxu0
      %4047 = vmatprep.mubr.bf16.mxu0 %v2831
      %4048 = vmatmul.mubr.bf16.gmra.mrb[0].mxu0 %v2744
      %v4049 = vpop.f32.mrb[0].mxu0
      %v4050 = vadd.f32 %v3889, %v4049
      %v4051 = vpop.f32.mrb[0].mxu0
      %v4052 = vpop.f32.mrb[0].mxu0
      %v4053 = vadd.f32 %v3892, %v4052
      %v4054 = vpop.f32.mrb[0].mxu0
      %4055 = vmatprep.mubr.bf16.mxu0 %v2843
      %4056 = vmatmul.mubr.bf16.gmra.mrb[0].mxu0 %v2745
      %v4057 = vpop.f32.mrb[0].mxu0
      %v4058 = vadd.f32 %v3897, %v4057
      %v4059 = vpop.f32.mrb[0].mxu0
      %v4060 = vpop.f32.mrb[0].mxu0
      %v4061 = vadd.f32 %v3900, %v4060
      %v4062 = vpop.f32.mrb[0].mxu0
      %4063 = vmatprep.mubr.bf16.mxu0 %v2855
      %4064 = vmatmul.mubr.bf16.gmra.mrb[0].mxu0 %v2746
      %v4065 = vpop.f32.mrb[0].mxu0
      %v4066 = vadd.f32 %v3905, %v4065
      %v4067 = vpop.f32.mrb[0].mxu0
      %v4068 = vpop.f32.mrb[0].mxu0
      %v4069 = vadd.f32 %v3908, %v4068
      %v4070 = vpop.f32.mrb[0].mxu0
      %4071 = vmatprep.mubr.bf16.mxu0 %v2867
      %4072 = vmatmul.mubr.bf16.gmra.mrb[0].mxu0 %v2747
      %v4073 = vpop.f32.mrb[0].mxu0
      %v4074 = vadd.f32 %v3913, %v4073
      %v4075 = vpop.f32.mrb[0].mxu0
      %v4076 = vpop.f32.mrb[0].mxu0
      %v4077 = vadd.f32 %v3916, %v4076
      %v4078 = vpop.f32.mrb[0].mxu0
      %4079 = vmatprep.mubr.bf16.mxu0 %v2879
      %4080 = vmatmul.mubr.bf16.gmra.mrb[0].mxu0 %v2748
      %v4081 = vpop.f32.mrb[0].mxu0
      %v4082 = vadd.f32 %v3921, %v4081
      %v4083 = vpop.f32.mrb[0].mxu0
      %v4084 = vpop.f32.mrb[0].mxu0
      %v4085 = vadd.f32 %v3924, %v4084
      %v4086 = vpop.f32.mrb[0].mxu0
      %4087 = vmatprep.mubr.bf16.mxu0 %v2891
      %4088 = vmatmul.mubr.bf16.gmra.mrb[0].mxu0 %v2749
      %v4089 = vpop.f32.mrb[0].mxu0
      %v4090 = vadd.f32 %v3929, %v4089
      %v4091 = vpop.f32.mrb[0].mxu0
      %v4092 = vpop.f32.mrb[0].mxu0
      %v4093 = vadd.f32 %v3932, %v4092
      %v4094 = vpop.f32.mrb[0].mxu0
      %4095 = vmatprep.mubr.bf16.mxu0 %v2903
      %4096 = vmatmul.mubr.bf16.gmra.mrb[0].mxu0 %v2750
      %v4097 = vpop.f32.mrb[0].mxu0
      %v4098 = vadd.f32 %v3937, %v4097
      %v4099 = vpop.f32.mrb[0].mxu0
      %v4100 = vpop.f32.mrb[0].mxu0
      %v4101 = vadd.f32 %v3940, %v4100
      %v4102 = vpop.f32.mrb[0].mxu0
      %4103 = vmatprep.mubr.bf16.mxu0 %v2915
      %4104 = vmatmul.mubr.bf16.gmra.mrb[0].mxu0 %v2751
      %v4105 = vpop.f32.mrb[0].mxu0
      %v4106 = vadd.f32 %v3945, %v4105
      %v4107 = vpop.f32.mrb[0].mxu0
      %v4108 = vpop.f32.mrb[0].mxu0
      %v4109 = vadd.f32 %v3948, %v4108
      %v4110 = vpop.f32.mrb[0].mxu0
      %4111 = vmatprep.mubr.bf16.mxu0 %v2927
      %4112 = vmatmul.mubr.bf16.gmra.mrb[0].mxu0 %v2752
      %v4113 = vpop.f32.mrb[0].mxu0
      %v4114 = vadd.f32 %v3953, %v4113
      %v4115 = vpop.f32.mrb[0].mxu0
      %v4116 = vpop.f32.mrb[0].mxu0
      %v4117 = vadd.f32 %v3956, %v4116
      %v4118 = vpop.f32.mrb[0].mxu0
      %4119 = vmatprep.mubr.bf16.mxu0 %v2939
      %4120 = vmatmul.mubr.bf16.gmra.mrb[0].mxu0 %v2753
      %v4121 = vpop.f32.mrb[0].mxu0
      %v4122 = vadd.f32 %v3961, %v4121
      %v4123 = vpop.f32.mrb[0].mxu0
      %v4124 = vpop.f32.mrb[0].mxu0
      %v4125 = vadd.f32 %v3964, %v4124
      %v4126 = vpop.f32.mrb[0].mxu0
      %4127 = vmatprep.mubr.bf16.mxu0 %v2951
      %4128 = vmatmul.mubr.bf16.gmra.mrb[0].mxu0 %v2754
      %v4129 = vpop.f32.mrb[0].mxu0
      %v4130 = vadd.f32 %v3969, %v4129
      %v4131 = vpop.f32.mrb[0].mxu0
      %v4132 = vpop.f32.mrb[0].mxu0
      %v4133 = vadd.f32 %v3972, %v4132
      %v4134 = vpop.f32.mrb[0].mxu0
      %4135 = vmatprep.mubr.bf16.mxu0 %v3068
      %4136 = vmatmul.mubr.bf16.gmra.mrb[0].mxu0 %v2755
      %v4137 = vpop.f32.mrb[0].mxu0
      %v4138 = vadd.f32 %v3977, %v4137
      %v4139 = vpop.f32.mrb[0].mxu0
      %v4140 = vpop.f32.mrb[0].mxu0
      %v4141 = vadd.f32 %v3980, %v4140
      %v4142 = vpop.f32.mrb[0].mxu0
      %4143 = vmatprep.mubr.bf16.mxu0 %v780
      %4144 = vmatmul.mubr.bf16.gmra.mrb[0].mxu0 %v734
      %v4145 = vpop.f32.mrb[0].mxu0
      %v4146 = vadd.f32 %v3985, %v4145
      %v4147 = vpop.f32.mrb[0].mxu0
      %v4148 = vpop.f32.mrb[0].mxu0
      %v4149 = vadd.f32 %v3988, %v4148
      %v4150 = vpop.f32.mrb[0].mxu0
      %4151 = vdwg.mxu0
      %4152 = vmatprep.subr.bf16.mxu0 0
      %4153 = vmatpush1.bf16.msra.mxu0 %v3428
      %4154 = vmatprep.subr.bf16.mxu0 0
      %4155 = vmatpush1.bf16.msra.mxu0 %v3429
      %4156 = vmatprep.subr.bf16.mxu0 0
      %4157 = vmatpush1.bf16.msra.mxu0 %v3430
      %4158 = vmatprep.subr.bf16.mxu0 0
      %4159 = vmatpush1.bf16.msra.mxu0 %v3431
      %4160 = vmatprep.subr.bf16.mxu0 0
      %4161 = vmatpush1.bf16.msra.mxu0 %v3432
      %4162 = vmatprep.subr.bf16.mxu0 0
      %4163 = vmatpush1.bf16.msra.mxu0 %v3433
      %4164 = vmatprep.subr.bf16.mxu0 0
      %4165 = vmatpush1.bf16.msra.mxu0 %v3434
      %4166 = vmatprep.subr.bf16.mxu0 0
      %4167 = vmatpush1.bf16.msra.mxu0 %v3435
      %4168 = vmatprep.subr.bf16.mxu0 0
      %4169 = vmatpush1.bf16.msra.mxu0 0
      %4170 = vmatprep.subr.bf16.mxu0 0
      %4171 = vmatpush1.bf16.msra.mxu0 0
      %4172 = vmatprep.subr.bf16.mxu0 0
      %4173 = vmatpush1.bf16.msra.mxu0 0
      %4174 = vmatprep.subr.bf16.mxu0 0
      %4175 = vmatpush1.bf16.msra.mxu0 0
      %4176 = vmatprep.subr.bf16.mxu0 0
      %4177 = vmatpush1.bf16.msra.mxu0 0
      %4178 = vmatprep.subr.bf16.mxu0 0
      %4179 = vmatpush1.bf16.msra.mxu0 0
      %4180 = vmatprep.subr.bf16.mxu0 0
      %4181 = vmatpush1.bf16.msra.mxu0 0
      %4182 = vmatprep.subr.bf16.mxu0 0
      %4183 = vmatpush1.bf16.msra.mxu0 0
      %4184 = vmatprep.mubr.bf16.mxu0 0
      %4185 = vmatmul.mubr.bf16.gmra.mrb[0].mxu0 %v3002
      %v4186 = vpop.f32.mrb[0].mxu0
      %v4187 = vadd.f32 %v4026, %v4186
      %v4188 = vpop.f32.mrb[0].mxu0
      %v4189 = vpop.f32.mrb[0].mxu0
      %v4190 = vadd.f32 %v4029, %v4189
      %v4191 = vpop.f32.mrb[0].mxu0
      %4192 = vmatprep.mubr.bf16.mxu0 0
      %4193 = vmatmul.mubr.bf16.gmra.mrb[0].mxu0 %v3005
      %v4194 = vpop.f32.mrb[0].mxu0
      %v4195 = vadd.f32 %v4034, %v4194
      %v4196 = vpop.f32.mrb[0].mxu0
      %v4197 = vpop.f32.mrb[0].mxu0
      %v4198 = vadd.f32 %v4037, %v4197
      %v4199 = vpop.f32.mrb[0].mxu0
      %4200 = vmatprep.mubr.bf16.mxu0 0
      %4201 = vmatmul.mubr.bf16.gmra.mrb[0].mxu0 %v3008
      %v4202 = vpop.f32.mrb[0].mxu0
      %v4203 = vadd.f32 %v4042, %v4202
      %v4204 = vpop.f32.mrb[0].mxu0
      %v4205 = vpop.f32.mrb[0].mxu0
      %v4206 = vadd.f32 %v4045, %v4205
      %v4207 = vpop.f32.mrb[0].mxu0
      %4208 = vmatprep.mubr.bf16.mxu0 0
      %4209 = vmatmul.mubr.bf16.gmra.mrb[0].mxu0 %v3011
      %v4210 = vpop.f32.mrb[0].mxu0
      %v4211 = vadd.f32 %v4050, %v4210
      %v4212 = vpop.f32.mrb[0].mxu0
      %v4213 = vpop.f32.mrb[0].mxu0
      %v4214 = vadd.f32 %v4053, %v4213
      %v4215 = vpop.f32.mrb[0].mxu0
      %4216 = vmatprep.mubr.bf16.mxu0 0
      %4217 = vmatmul.mubr.bf16.gmra.mrb[0].mxu0 %v3014
      %v4218 = vpop.f32.mrb[0].mxu0
      %v4219 = vadd.f32 %v4058, %v4218
      %v4220 = vpop.f32.mrb[0].mxu0
      %v4221 = vpop.f32.mrb[0].mxu0
      %v4222 = vadd.f32 %v4061, %v4221
      %v4223 = vpop.f32.mrb[0].mxu0
      %4224 = vmatprep.mubr.bf16.mxu0 0
      %4225 = vmatmul.mubr.bf16.gmra.mrb[0].mxu0 %v3017
      %v4226 = vpop.f32.mrb[0].mxu0
      %v4227 = vadd.f32 %v4066, %v4226
      %v4228 = vpop.f32.mrb[0].mxu0
      %v4229 = vpop.f32.mrb[0].mxu0
      %v4230 = vadd.f32 %v4069, %v4229
      %v4231 = vpop.f32.mrb[0].mxu0
      %4232 = vmatprep.mubr.bf16.mxu0 0
      %4233 = vmatmul.mubr.bf16.gmra.mrb[0].mxu0 %v3020
      %v4234 = vpop.f32.mrb[0].mxu0
      %v4235 = vadd.f32 %v4074, %v4234
      %v4236 = vpop.f32.mrb[0].mxu0
      %v4237 = vpop.f32.mrb[0].mxu0
      %v4238 = vadd.f32 %v4077, %v4237
      %v4239 = vpop.f32.mrb[0].mxu0
      %4240 = vmatprep.mubr.bf16.mxu0 0
      %4241 = vmatmul.mubr.bf16.gmra.mrb[0].mxu0 %v3023
      %v4242 = vpop.f32.mrb[0].mxu0
      %v4243 = vadd.f32 %v4082, %v4242
      %v4244 = vpop.f32.mrb[0].mxu0
      %v4245 = vpop.f32.mrb[0].mxu0
      %v4246 = vadd.f32 %v4085, %v4245
      %v4247 = vpop.f32.mrb[0].mxu0
      %4248 = vmatprep.mubr.bf16.mxu0 0
      %4249 = vmatmul.mubr.bf16.gmra.mrb[0].mxu0 %v3026
      %v4250 = vpop.f32.mrb[0].mxu0
      %v4251 = vadd.f32 %v4090, %v4250
      %v4252 = vpop.f32.mrb[0].mxu0
      %v4253 = vpop.f32.mrb[0].mxu0
      %v4254 = vadd.f32 %v4093, %v4253
      %v4255 = vpop.f32.mrb[0].mxu0
      %4256 = vmatprep.mubr.bf16.mxu0 0
      %4257 = vmatmul.mubr.bf16.gmra.mrb[0].mxu0 %v3029
      %v4258 = vpop.f32.mrb[0].mxu0
      %v4259 = vadd.f32 %v4098, %v4258
      %v4260 = vpop.f32.mrb[0].mxu0
      %v4261 = vpop.f32.mrb[0].mxu0
      %v4262 = vadd.f32 %v4101, %v4261
      %v4263 = vpop.f32.mrb[0].mxu0
      %4264 = vmatprep.mubr.bf16.mxu0 0
      %4265 = vmatmul.mubr.bf16.gmra.mrb[0].mxu0 %v3032
      %v4266 = vpop.f32.mrb[0].mxu0
      %v4267 = vadd.f32 %v4106, %v4266
      %v4268 = vpop.f32.mrb[0].mxu0
      %v4269 = vpop.f32.mrb[0].mxu0
      %v4270 = vadd.f32 %v4109, %v4269
      %v4271 = vpop.f32.mrb[0].mxu0
      %4272 = vmatprep.mubr.bf16.mxu0 0
      %4273 = vmatmul.mubr.bf16.gmra.mrb[0].mxu0 %v3035
      %v4274 = vpop.f32.mrb[0].mxu0
      %v4275 = vadd.f32 %v4114, %v4274
      %v4276 = vpop.f32.mrb[0].mxu0
      %v4277 = vpop.f32.mrb[0].mxu0
      %v4278 = vadd.f32 %v4117, %v4277
      %v4279 = vpop.f32.mrb[0].mxu0
      %4280 = vmatprep.mubr.bf16.mxu0 0
      %4281 = vmatmul.mubr.bf16.gmra.mrb[0].mxu0 %v3038
      %v4282 = vpop.f32.mrb[0].mxu0
      %v4283 = vadd.f32 %v4122, %v4282
      %v4284 = vpop.f32.mrb[0].mxu0
      %v4285 = vpop.f32.mrb[0].mxu0
      %v4286 = vadd.f32 %v4125, %v4285
      %v4287 = vpop.f32.mrb[0].mxu0
      %4288 = vmatprep.mubr.bf16.mxu0 0
      %4289 = vmatmul.mubr.bf16.gmra.mrb[0].mxu0 %v3041
      %v4290 = vpop.f32.mrb[0].mxu0
      %v4291 = vadd.f32 %v4130, %v4290
      %v4292 = vpop.f32.mrb[0].mxu0
      %v4293 = vpop.f32.mrb[0].mxu0
      %v4294 = vadd.f32 %v4133, %v4293
      %v4295 = vpop.f32.mrb[0].mxu0
      %4296 = vmatprep.mubr.bf16.mxu0 0
      %4297 = vmatmul.mubr.bf16.gmra.mrb[0].mxu0 %v3074
      %v4298 = vpop.f32.mrb[0].mxu0
      %v4299 = vadd.f32 %v4138, %v4298
      %v4300 = vpop.f32.mrb[0].mxu0
      %v4301 = vpop.f32.mrb[0].mxu0
      %v4302 = vadd.f32 %v4141, %v4301
      %v4303 = vpop.f32.mrb[0].mxu0
      %4304 = vmatprep.mubr.bf16.mxu0 0
      %4305 = vmatmul.mubr.bf16.gmra.mrb[0].mxu0 %v1012
      %v4306 = vpop.f32.mrb[0].mxu0
      %v4307 = vadd.f32 %v4146, %v4306
      %v4308 = vpop.f32.mrb[0].mxu0
      %v4309 = vpop.f32.mrb[0].mxu0
      %v4310 = vadd.f32 %v4149, %v4309
      %v4311 = vpop.f32.mrb[0].mxu0
      %4312 = vdwg.mxu0
      %v4313 = vld [vmem:[%s2 + $0x2] sm:$0x1]
      %v4314 = vlaneseq
      %v4315 = vshrl.u32 %v4314, 7
      %v4316 = vsub.s32 0, %v4315
      %v4317 = vrot.slane %v4313, %v4316
      %v4318 = vmul.f32 %v4187, %v4317
      %v4319 = vmul.f32 %v4190, %v4317
      %v4320 = vmul.f32 %v4195, %v4317
      %v4321 = vmul.f32 %v4198, %v4317
      %v4322 = vmul.f32 %v4203, %v4317
      %v4323 = vmul.f32 %v4206, %v4317
      %v4324 = vmul.f32 %v4211, %v4317
      %v4325 = vmul.f32 %v4214, %v4317
      %v4326 = vmul.f32 %v4219, %v4317
      %v4327 = vmul.f32 %v4222, %v4317
      %v4328 = vmul.f32 %v4227, %v4317
      %v4329 = vmul.f32 %v4230, %v4317
      %v4330 = vmul.f32 %v4235, %v4317
      %v4331 = vmul.f32 %v4238, %v4317
      %v4332 = vmul.f32 %v4243, %v4317
      %v4333 = vmul.f32 %v4246, %v4317
      %v4334 = vmul.f32 %v4251, %v4317
      %v4335 = vmul.f32 %v4254, %v4317
      %v4336 = vmul.f32 %v4259, %v4317
      %v4337 = vmul.f32 %v4262, %v4317
      %v4338 = vmul.f32 %v4267, %v4317
      %v4339 = vmul.f32 %v4270, %v4317
      %v4340 = vmul.f32 %v4275, %v4317
      %v4341 = vmul.f32 %v4278, %v4317
      %v4342 = vmul.f32 %v4283, %v4317
      %v4343 = vmul.f32 %v4286, %v4317
      %v4344 = vmul.f32 %v4291, %v4317
      %v4345 = vmul.f32 %v4294, %v4317
      %v4346 = vmul.f32 %v4299, %v4317
      %v4347 = vmul.f32 %v4302, %v4317
      %v4348 = vmul.f32 %v4307, %v4317
      %v4349 = vmul.f32 %v4310, %v4317
      %v4350 = vld [vmem:[%s2 + $0x3] sm:$0x1]
      %v4351 = vlaneseq
      %v4352 = vshrl.u32 %v4351, 7
      %v4353 = vsub.s32 0, %v4352
      %v4354 = vrot.slane %v4350, %v4353
      %v4355 = vadd.f32 %v4318, %v4354
      %v4356 = vadd.f32 %v4319, %v4354
      %v4357 = vadd.f32 %v4320, %v4354
      %v4358 = vadd.f32 %v4321, %v4354
      %v4359 = vadd.f32 %v4322, %v4354
      %v4360 = vadd.f32 %v4323, %v4354
      %v4361 = vadd.f32 %v4324, %v4354
      %v4362 = vadd.f32 %v4325, %v4354
      %v4363 = vadd.f32 %v4326, %v4354
      %v4364 = vadd.f32 %v4327, %v4354
      %v4365 = vadd.f32 %v4328, %v4354
      %v4366 = vadd.f32 %v4329, %v4354
      %v4367 = vadd.f32 %v4330, %v4354
      %v4368 = vadd.f32 %v4331, %v4354
      %v4369 = vadd.f32 %v4332, %v4354
      %v4370 = vadd.f32 %v4333, %v4354
      %v4371 = vadd.f32 %v4334, %v4354
      %v4372 = vadd.f32 %v4335, %v4354
      %v4373 = vadd.f32 %v4336, %v4354
      %v4374 = vadd.f32 %v4337, %v4354
      %v4375 = vadd.f32 %v4338, %v4354
      %v4376 = vadd.f32 %v4339, %v4354
      %v4377 = vadd.f32 %v4340, %v4354
      %v4378 = vadd.f32 %v4341, %v4354
      %v4379 = vadd.f32 %v4342, %v4354
      %v4380 = vadd.f32 %v4343, %v4354
      %v4381 = vadd.f32 %v4344, %v4354
      %v4382 = vadd.f32 %v4345, %v4354
      %v4383 = vadd.f32 %v4346, %v4354
      %v4384 = vadd.f32 %v4347, %v4354
      %v4385 = vadd.f32 %v4348, %v4354
      %v4386 = vadd.f32 %v4349, %v4354
      %v4387 = vmax.f32 %v4355, 0.0
      %v4388 = vmax.f32 %v4356, 0.0
      %v4389 = vmax.f32 %v4357, 0.0
      %v4390 = vmax.f32 %v4358, 0.0
      %v4391 = vmax.f32 %v4359, 0.0
      %v4392 = vmax.f32 %v4360, 0.0
      %v4393 = vmax.f32 %v4361, 0.0
      %v4394 = vmax.f32 %v4362, 0.0
      %v4395 = vmax.f32 %v4363, 0.0
      %v4396 = vmax.f32 %v4364, 0.0
      %v4397 = vmax.f32 %v4365, 0.0
      %v4398 = vmax.f32 %v4366, 0.0
      %v4399 = vmax.f32 %v4367, 0.0
      %v4400 = vmax.f32 %v4368, 0.0
      %v4401 = vmax.f32 %v4369, 0.0
      %v4402 = vmax.f32 %v4370, 0.0
      %v4403 = vmax.f32 %v4371, 0.0
      %v4404 = vmax.f32 %v4372, 0.0
      %v4405 = vmax.f32 %v4373, 0.0
      %v4406 = vmax.f32 %v4374, 0.0
      %v4407 = vmax.f32 %v4375, 0.0
      %v4408 = vmax.f32 %v4376, 0.0
      %v4409 = vmax.f32 %v4377, 0.0
      %v4410 = vmax.f32 %v4378, 0.0
      %v4411 = vmax.f32 %v4379, 0.0
      %v4412 = vmax.f32 %v4380, 0.0
      %v4413 = vmax.f32 %v4381, 0.0
      %v4414 = vmax.f32 %v4382, 0.0
      %v4415 = vmax.f32 %v4383, 0.0
      %v4416 = vmax.f32 %v4384, 0.0
      %v4417 = vmax.f32 %v4385, 0.0
      %v4418 = vmax.f32 %v4386, 0.0
      %v4419 = vpack.c.bf16 %v4388, %v4387
      %v4420 = vpack.c.bf16 %v4390, %v4389
      %v4421 = vpack.c.bf16 %v4392, %v4391
      %v4422 = vpack.c.bf16 %v4394, %v4393
      %v4423 = vpack.c.bf16 %v4396, %v4395
      %v4424 = vpack.c.bf16 %v4398, %v4397
      %v4425 = vpack.c.bf16 %v4400, %v4399
      %v4426 = vpack.c.bf16 %v4402, %v4401
      %v4427 = vpack.c.bf16 %v4404, %v4403
      %v4428 = vpack.c.bf16 %v4406, %v4405
      %v4429 = vpack.c.bf16 %v4408, %v4407
      %v4430 = vpack.c.bf16 %v4410, %v4409
      %v4431 = vpack.c.bf16 %v4412, %v4411
      %v4432 = vpack.c.bf16 %v4414, %v4413
      %v4433 = vpack.c.bf16 %v4416, %v4415
      %v4434 = vpack.c.bf16 %v4418, %v4417
      %v4435 = vld [vmem:[%s5] sm:$0xf]
      %v4436 = vld [vmem:[%s5 + $0x4] sm:$0xf]
      %v4437 = vld [vmem:[%s5 + $0x8] sm:$0xf]
      %v4438 = vld [vmem:[%s5 + $0xc] sm:$0xf]
      %v4439 = vld [vmem:[%s5 + $0x10] sm:$0xf]
      %v4440 = vld [vmem:[%s5 + $0x14] sm:$0xf]
      %v4441 = vld [vmem:[%s5 + $0x18] sm:$0xf]
      %v4442 = vld [vmem:[%s5 + $0x1c] sm:$0xf]
      %v4443 = vld [vmem:[%s5 + $0x20] sm:$0xf]
      %v4444 = vld [vmem:[%s5 + $0x24] sm:$0xf]
      %v4445 = vld [vmem:[%s5 + $0x28] sm:$0xf]
      %v4446 = vld [vmem:[%s5 + $0x2c] sm:$0xf]
      %v4447 = vld [vmem:[%s5 + $0x30] sm:$0xf]
      %v4448 = vld [vmem:[%s5 + $0x34] sm:$0xf]
      %v4449 = vld [vmem:[%s5 + $0x38] sm:$0xf]
      %v4450 = vld [vmem:[%s5 + $0x3c] sm:$0xf]
      %v4451 = vld [vmem:[%s5 + $0x40] sm:$0xf]
      %v4452 = vld [vmem:[%s5 + $0x44] sm:$0xf]
      %v4453 = vld [vmem:[%s5 + $0x48] sm:$0xf]
      %v4454 = vld [vmem:[%s5 + $0x4c] sm:$0xf]
      %v4455 = vld [vmem:[%s5 + $0x50] sm:$0xf]
      %v4456 = vld [vmem:[%s5 + $0x54] sm:$0xf]
      %v4457 = vld [vmem:[%s5 + $0x58] sm:$0xf]
      %v4458 = vld [vmem:[%s5 + $0x5c] sm:$0xf]
      %v4459 = vld [vmem:[%s5 + $0x60] sm:$0xf]
      %v4460 = vld [vmem:[%s5 + $0x64] sm:$0xf]
      %v4461 = vld [vmem:[%s5 + $0x68] sm:$0xf]
      %v4462 = vld [vmem:[%s5 + $0x6c] sm:$0xf]
      %v4463 = vld [vmem:[%s5 + $0x70] sm:$0xf]
      %v4464 = vld [vmem:[%s5 + $0x74] sm:$0xf]
      %v4465 = vld [vmem:[%s5 + $0x78] sm:$0xf]
      %v4466 = vld [vmem:[%s5 + $0x7c] sm:$0xf]
      %v4467 = vld [vmem:[%s5 + $0x80] sm:$0xf]
      %v4468 = vld [vmem:[%s5 + $0x84] sm:$0xf]
      %v4469 = vld [vmem:[%s5 + $0x88] sm:$0xf]
      %v4470 = vld [vmem:[%s5 + $0x8c] sm:$0xf]
      %v4471 = vld [vmem:[%s5 + $0x90] sm:$0xf]
      %v4472 = vld [vmem:[%s5 + $0x94] sm:$0xf]
      %v4473 = vld [vmem:[%s5 + $0x98] sm:$0xf]
      %v4474 = vld [vmem:[%s5 + $0x9c] sm:$0xf]
      %v4475 = vld [vmem:[%s5 + $0xa0] sm:$0xf]
      %v4476 = vld [vmem:[%s5 + $0xa4] sm:$0xf]
      %v4477 = vld [vmem:[%s5 + $0xa8] sm:$0xf]
      %v4478 = vld [vmem:[%s5 + $0xac] sm:$0xf]
      %v4479 = vld [vmem:[%s5 + $0xb0] sm:$0xf]
      %v4480 = vld [vmem:[%s5 + $0xb4] sm:$0xf]
      %v4481 = vld [vmem:[%s5 + $0xb8] sm:$0xf]
      %v4482 = vld [vmem:[%s5 + $0xbc] sm:$0xf]
      %v4483 = vld [vmem:[%s5 + $0xc0] sm:$0xf]
      %v4484 = vld [vmem:[%s5 + $0xc4] sm:$0xf]
      %v4485 = vld [vmem:[%s5 + $0xc8] sm:$0xf]
      %v4486 = vld [vmem:[%s5 + $0xcc] sm:$0xf]
      %v4487 = vld [vmem:[%s5 + $0xd0] sm:$0xf]
      %v4488 = vld [vmem:[%s5 + $0xd4] sm:$0xf]
      %v4489 = vld [vmem:[%s5 + $0xd8] sm:$0xf]
      %v4490 = vld [vmem:[%s5 + $0xdc] sm:$0xf]
      %v4491 = vld [vmem:[%s5 + $0xe0] sm:$0xf]
      %v4492 = vld [vmem:[%s5 + $0xe4] sm:$0xf]
      %v4493 = vld [vmem:[%s5 + $0xe8] sm:$0xf]
      %v4494 = vld [vmem:[%s5 + $0xec] sm:$0xf]
      %v4495 = vld [vmem:[%s5 + $0xf0] sm:$0xf]
      %v4496 = vld [vmem:[%s5 + $0xf4] sm:$0xf]
      %v4497 = vld [vmem:[%s5 + $0xf8] sm:$0xf]
      %v4498 = vld [vmem:[%s5 + $0xfc] sm:$0xf]
      %v4499 = vld [vmem:[%s5 + $0x100] sm:$0xf]
      %v4500 = vld [vmem:[%s5 + $0x104] sm:$0xf]
      %v4501 = vld [vmem:[%s5 + $0x108] sm:$0xf]
      %v4502 = vld [vmem:[%s5 + $0x10c] sm:$0xf]
      %v4503 = vld [vmem:[%s5 + $0x110] sm:$0xf]
      %v4504 = vld [vmem:[%s5 + $0x114] sm:$0xf]
      %v4505 = vld [vmem:[%s5 + $0x118] sm:$0xf]
      %v4506 = vld [vmem:[%s5 + $0x11c] sm:$0xf]
      %v4507 = vld [vmem:[%s5 + $0x120] sm:$0xf]
      %v4508 = vld [vmem:[%s5 + $0x124] sm:$0xf]
      %v4509 = vld [vmem:[%s5 + $0x128] sm:$0xf]
      %v4510 = vld [vmem:[%s5 + $0x12c] sm:$0xf]
      %v4511 = vld [vmem:[%s5 + $0x130] sm:$0xf]
      %v4512 = vld [vmem:[%s5 + $0x134] sm:$0xf]
      %v4513 = vld [vmem:[%s5 + $0x138] sm:$0xf]
      %v4514 = vld [vmem:[%s5 + $0x13c] sm:$0xf]
      %v4515 = vld [vmem:[%s5 + $0x140] sm:$0xf]
      %v4516 = vld [vmem:[%s5 + $0x144] sm:$0xf]
      %v4517 = vld [vmem:[%s5 + $0x148] sm:$0xf]
      %v4518 = vld [vmem:[%s5 + $0x14c] sm:$0xf]
      %v4519 = vld [vmem:[%s5 + $0x150] sm:$0xf]
      %v4520 = vld [vmem:[%s5 + $0x154] sm:$0xf]
      %v4521 = vld [vmem:[%s5 + $0x158] sm:$0xf]
      %v4522 = vld [vmem:[%s5 + $0x15c] sm:$0xf]
      %v4523 = vld [vmem:[%s5 + $0x160] sm:$0xf]
      %v4524 = vld [vmem:[%s5 + $0x164] sm:$0xf]
      %v4525 = vld [vmem:[%s5 + $0x168] sm:$0xf]
      %v4526 = vld [vmem:[%s5 + $0x16c] sm:$0xf]
      %v4527 = vld [vmem:[%s5 + $0x170] sm:$0xf]
      %v4528 = vld [vmem:[%s5 + $0x174] sm:$0xf]
      %v4529 = vld [vmem:[%s5 + $0x178] sm:$0xf]
      %v4530 = vld [vmem:[%s5 + $0x17c] sm:$0xf]
      %v4531 = vld [vmem:[%s5 + $0x180] sm:$0xf]
      %v4532 = vld [vmem:[%s5 + $0x184] sm:$0xf]
      %v4533 = vld [vmem:[%s5 + $0x188] sm:$0xf]
      %v4534 = vld [vmem:[%s5 + $0x18c] sm:$0xf]
      %v4535 = vld [vmem:[%s5 + $0x190] sm:$0xf]
      %v4536 = vld [vmem:[%s5 + $0x194] sm:$0xf]
      %v4537 = vld [vmem:[%s5 + $0x198] sm:$0xf]
      %v4538 = vld [vmem:[%s5 + $0x19c] sm:$0xf]
      %v4539 = vld [vmem:[%s5 + $0x1a0] sm:$0xf]
      %v4540 = vld [vmem:[%s5 + $0x1a4] sm:$0xf]
      %v4541 = vld [vmem:[%s5 + $0x1a8] sm:$0xf]
      %v4542 = vld [vmem:[%s5 + $0x1ac] sm:$0xf]
      %v4543 = vld [vmem:[%s5 + $0x1b0] sm:$0xf]
      %v4544 = vld [vmem:[%s5 + $0x1b4] sm:$0xf]
      %v4545 = vld [vmem:[%s5 + $0x1b8] sm:$0xf]
      %v4546 = vld [vmem:[%s5 + $0x1bc] sm:$0xf]
      %v4547 = vld [vmem:[%s5 + $0x1c0] sm:$0xf]
      %v4548 = vld [vmem:[%s5 + $0x1c4] sm:$0xf]
      %v4549 = vld [vmem:[%s5 + $0x1c8] sm:$0xf]
      %v4550 = vld [vmem:[%s5 + $0x1cc] sm:$0xf]
      %v4551 = vld [vmem:[%s5 + $0x1d0] sm:$0xf]
      %v4552 = vld [vmem:[%s5 + $0x1d4] sm:$0xf]
      %v4553 = vld [vmem:[%s5 + $0x1d8] sm:$0xf]
      %v4554 = vld [vmem:[%s5 + $0x1dc] sm:$0xf]
      %v4555 = vld [vmem:[%s5 + $0x1e0] sm:$0xf]
      %v4556 = vld [vmem:[%s5 + $0x1e4] sm:$0xf]
      %v4557 = vld [vmem:[%s5 + $0x1e8] sm:$0xf]
      %v4558 = vld [vmem:[%s5 + $0x1ec] sm:$0xf]
      %v4559 = vld [vmem:[%s5 + $0x1f0] sm:$0xf]
      %v4560 = vld [vmem:[%s5 + $0x1f4] sm:$0xf]
      %v4561 = vld [vmem:[%s5 + $0x1f8] sm:$0xf]
      %v4562 = vld [vmem:[%s5 + $0x1fc] sm:$0xf]
      %v4563 = vld [vmem:[%s5 + $0x200] sm:$0xf]
      %v4564 = vld [vmem:[%s5 + $0x204] sm:$0xf]
      %v4565 = vld [vmem:[%s5 + $0x208] sm:$0xf]
      %v4566 = vld [vmem:[%s5 + $0x20c] sm:$0xf]
      %v4567 = vld [vmem:[%s5 + $0x210] sm:$0xf]
      %v4568 = vld [vmem:[%s5 + $0x214] sm:$0xf]
      %v4569 = vld [vmem:[%s5 + $0x218] sm:$0xf]
      %v4570 = vld [vmem:[%s5 + $0x21c] sm:$0xf]
      %v4571 = vld [vmem:[%s5 + $0x220] sm:$0xf]
      %v4572 = vld [vmem:[%s5 + $0x224] sm:$0xf]
      %v4573 = vld [vmem:[%s5 + $0x228] sm:$0xf]
      %v4574 = vld [vmem:[%s5 + $0x22c] sm:$0xf]
      %v4575 = vld [vmem:[%s5 + $0x230] sm:$0xf]
      %v4576 = vld [vmem:[%s5 + $0x234] sm:$0xf]
      %v4577 = vld [vmem:[%s5 + $0x238] sm:$0xf]
      %v4578 = vld [vmem:[%s5 + $0x23c] sm:$0xf]
      %v4580 = vshrl.u32 %v4419, 16
      %v4582 = vrot.slane %v4580, 7
      %v4583 = vshll.u32 %v4419, 16
      %v4585 = vor.u32 %v4582, %v4583
      %v4587 = vshrl.u32 %v4420, 16
      %v4589 = vrot.slane %v4587, 7
      %v4590 = vshll.u32 %v4420, 16
      %v4592 = vor.u32 %v4589, %v4590
      %v4594 = vshrl.u32 %v4421, 16
      %v4596 = vrot.slane %v4594, 7
      %v4597 = vshll.u32 %v4421, 16
      %v4599 = vor.u32 %v4596, %v4597
      %v4601 = vshrl.u32 %v4422, 16
      %v4603 = vrot.slane %v4601, 7
      %v4604 = vshll.u32 %v4422, 16
      %v4606 = vor.u32 %v4603, %v4604
      %v4608 = vshrl.u32 %v4423, 16
      %v4610 = vrot.slane %v4608, 7
      %v4611 = vshll.u32 %v4423, 16
      %v4613 = vor.u32 %v4610, %v4611
      %v4615 = vshrl.u32 %v4424, 16
      %v4617 = vrot.slane %v4615, 7
      %v4618 = vshll.u32 %v4424, 16
      %v4620 = vor.u32 %v4617, %v4618
      %v4622 = vshrl.u32 %v4425, 16
      %v4624 = vrot.slane %v4622, 7
      %v4625 = vshll.u32 %v4425, 16
      %v4627 = vor.u32 %v4624, %v4625
      %v4629 = vshrl.u32 %v4426, 16
      %v4631 = vrot.slane %v4629, 7
      %v4632 = vshll.u32 %v4426, 16
      %v4634 = vor.u32 %v4631, %v4632
      %v4636 = vshrl.u32 %v4427, 16
      %v4638 = vrot.slane %v4636, 7
      %v4639 = vshll.u32 %v4427, 16
      %v4641 = vor.u32 %v4638, %v4639
      %v4643 = vshrl.u32 %v4428, 16
      %v4645 = vrot.slane %v4643, 7
      %v4646 = vshll.u32 %v4428, 16
      %v4648 = vor.u32 %v4645, %v4646
      %v4650 = vshrl.u32 %v4429, 16
      %v4652 = vrot.slane %v4650, 7
      %v4653 = vshll.u32 %v4429, 16
      %v4655 = vor.u32 %v4652, %v4653
      %v4657 = vshrl.u32 %v4430, 16
      %v4659 = vrot.slane %v4657, 7
      %v4660 = vshll.u32 %v4430, 16
      %v4662 = vor.u32 %v4659, %v4660
      %v4664 = vshrl.u32 %v4431, 16
      %v4666 = vrot.slane %v4664, 7
      %v4667 = vshll.u32 %v4431, 16
      %v4669 = vor.u32 %v4666, %v4667
      %v4671 = vshrl.u32 %v4432, 16
      %v4673 = vrot.slane %v4671, 7
      %v4674 = vshll.u32 %v4432, 16
      %v4676 = vor.u32 %v4673, %v4674
      %v4678 = vshrl.u32 %v4433, 16
      %v4680 = vrot.slane %v4678, 7
      %v4681 = vshll.u32 %v4433, 16
      %v4683 = vor.u32 %v4680, %v4681
      %v4685 = vshrl.u32 %v4434, 16
      %v4687 = vrot.slane %v4685, 7
      %v4688 = vshll.u32 %v4434, 16
      %v4690 = vor.u32 %v4687, %v4688
      %v4723 = vsel %vm733, 0, %v4585
      %v4724 = vsel %vm733, 0, %v4592
      %v4725 = vsel %vm733, 0, %v4599
      %v4726 = vsel %vm733, 0, %v4606
      %v4727 = vsel %vm733, 0, %v4613
      %v4728 = vsel %vm733, 0, %v4620
      %v4729 = vsel %vm733, 0, %v4627
      %v4730 = vsel %vm733, 0, %v4634
      %v4731 = vsel %vm733, 0, %v4641
      %v4732 = vsel %vm733, 0, %v4648
      %v4733 = vsel %vm733, 0, %v4655
      %v4734 = vsel %vm733, 0, %v4662
      %v4735 = vsel %vm733, 0, %v4669
      %v4736 = vsel %vm733, 0, %v4676
      %v4737 = vsel %vm733, 0, %v4683
      %v4738 = vsel %vm733, 0, %v4690
      %v4739 = vsel %vm733, %v4582, 0
      %v4740 = vsel %vm733, %v4589, 0
      %v4741 = vsel %vm733, %v4596, 0
      %v4742 = vsel %vm733, %v4603, 0
      %v4743 = vsel %vm733, %v4610, 0
      %v4744 = vsel %vm733, %v4617, 0
      %v4745 = vsel %vm733, %v4624, 0
      %v4746 = vsel %vm733, %v4631, 0
      %v4747 = vsel %vm733, %v4638, 0
      %v4748 = vsel %vm733, %v4645, 0
      %v4749 = vsel %vm733, %v4652, 0
      %v4750 = vsel %vm733, %v4659, 0
      %v4751 = vsel %vm733, %v4666, 0
      %v4752 = vsel %vm733, %v4673, 0
      %v4753 = vsel %vm733, %v4680, 0
      %v4754 = vsel %vm733, %v4687, 0
      %v4756 = vshrl.u32 %v4723, 16
      %v4758 = vshll.u32 %v4723, 16
      %v4760 = vrot.slane %v4758, 1
      %v4761 = vor.u32 %v4756, %v4760
      %v4763 = vshll.u32 %v4739, 16
      %v4765 = vrot.slane %v4763, 1
      %v4766 = vsel %vm768, %v4761, %v4765
      %v4768 = vshrl.u32 %v4724, 16
      %v4770 = vshll.u32 %v4724, 16
      %v4772 = vrot.slane %v4770, 1
      %v4773 = vor.u32 %v4768, %v4772
      %v4775 = vshll.u32 %v4740, 16
      %v4777 = vrot.slane %v4775, 1
      %v4778 = vsel %vm768, %v4773, %v4777
      %v4780 = vshrl.u32 %v4725, 16
      %v4782 = vshll.u32 %v4725, 16
      %v4784 = vrot.slane %v4782, 1
      %v4785 = vor.u32 %v4780, %v4784
      %v4787 = vshll.u32 %v4741, 16
      %v4789 = vrot.slane %v4787, 1
      %v4790 = vsel %vm768, %v4785, %v4789
      %v4792 = vshrl.u32 %v4726, 16
      %v4794 = vshll.u32 %v4726, 16
      %v4796 = vrot.slane %v4794, 1
      %v4797 = vor.u32 %v4792, %v4796
      %v4799 = vshll.u32 %v4742, 16
      %v4801 = vrot.slane %v4799, 1
      %v4802 = vsel %vm768, %v4797, %v4801
      %v4804 = vshrl.u32 %v4727, 16
      %v4806 = vshll.u32 %v4727, 16
      %v4808 = vrot.slane %v4806, 1
      %v4809 = vor.u32 %v4804, %v4808
      %v4811 = vshll.u32 %v4743, 16
      %v4813 = vrot.slane %v4811, 1
      %v4814 = vsel %vm768, %v4809, %v4813
      %v4816 = vshrl.u32 %v4728, 16
      %v4818 = vshll.u32 %v4728, 16
      %v4820 = vrot.slane %v4818, 1
      %v4821 = vor.u32 %v4816, %v4820
      %v4823 = vshll.u32 %v4744, 16
      %v4825 = vrot.slane %v4823, 1
      %v4826 = vsel %vm768, %v4821, %v4825
      %v4828 = vshrl.u32 %v4729, 16
      %v4830 = vshll.u32 %v4729, 16
      %v4832 = vrot.slane %v4830, 1
      %v4833 = vor.u32 %v4828, %v4832
      %v4835 = vshll.u32 %v4745, 16
      %v4837 = vrot.slane %v4835, 1
      %v4838 = vsel %vm768, %v4833, %v4837
      %v4840 = vshrl.u32 %v4730, 16
      %v4842 = vshll.u32 %v4730, 16
      %v4844 = vrot.slane %v4842, 1
      %v4845 = vor.u32 %v4840, %v4844
      %v4847 = vshll.u32 %v4746, 16
      %v4849 = vrot.slane %v4847, 1
      %v4850 = vsel %vm768, %v4845, %v4849
      %v4852 = vshrl.u32 %v4731, 16
      %v4854 = vshll.u32 %v4731, 16
      %v4856 = vrot.slane %v4854, 1
      %v4857 = vor.u32 %v4852, %v4856
      %v4859 = vshll.u32 %v4747, 16
      %v4861 = vrot.slane %v4859, 1
      %v4862 = vsel %vm768, %v4857, %v4861
      %v4864 = vshrl.u32 %v4732, 16
      %v4866 = vshll.u32 %v4732, 16
      %v4868 = vrot.slane %v4866, 1
      %v4869 = vor.u32 %v4864, %v4868
      %v4871 = vshll.u32 %v4748, 16
      %v4873 = vrot.slane %v4871, 1
      %v4874 = vsel %vm768, %v4869, %v4873
      %v4876 = vshrl.u32 %v4733, 16
      %v4878 = vshll.u32 %v4733, 16
      %v4880 = vrot.slane %v4878, 1
      %v4881 = vor.u32 %v4876, %v4880
      %v4883 = vshll.u32 %v4749, 16
      %v4885 = vrot.slane %v4883, 1
      %v4886 = vsel %vm768, %v4881, %v4885
      %v4888 = vshrl.u32 %v4734, 16
      %v4890 = vshll.u32 %v4734, 16
      %v4892 = vrot.slane %v4890, 1
      %v4893 = vor.u32 %v4888, %v4892
      %v4895 = vshll.u32 %v4750, 16
      %v4897 = vrot.slane %v4895, 1
      %v4898 = vsel %vm768, %v4893, %v4897
      %v4900 = vshrl.u32 %v4735, 16
      %v4902 = vshll.u32 %v4735, 16
      %v4904 = vrot.slane %v4902, 1
      %v4905 = vor.u32 %v4900, %v4904
      %v4907 = vshll.u32 %v4751, 16
      %v4909 = vrot.slane %v4907, 1
      %v4910 = vsel %vm768, %v4905, %v4909
      %v4912 = vshrl.u32 %v4736, 16
      %v4914 = vshll.u32 %v4736, 16
      %v4916 = vrot.slane %v4914, 1
      %v4917 = vor.u32 %v4912, %v4916
      %v4919 = vshll.u32 %v4752, 16
      %v4921 = vrot.slane %v4919, 1
      %v4922 = vsel %vm768, %v4917, %v4921
      %v4924 = vshrl.u32 %v4737, 16
      %v4926 = vshll.u32 %v4737, 16
      %v4928 = vrot.slane %v4926, 1
      %v4929 = vor.u32 %v4924, %v4928
      %v4931 = vshll.u32 %v4753, 16
      %v4933 = vrot.slane %v4931, 1
      %v4934 = vsel %vm768, %v4929, %v4933
      %v4980 = vrot.slane %v4723, 1
      %v4981 = vrot.slane %v4739, 1
      %v4982 = vsel %vm1009, %v4980, %v4981
      %v4983 = vrot.slane %v4724, 1
      %v4984 = vrot.slane %v4740, 1
      %v4985 = vsel %vm1009, %v4983, %v4984
      %v4986 = vrot.slane %v4725, 1
      %v4987 = vrot.slane %v4741, 1
      %v4988 = vsel %vm1009, %v4986, %v4987
      %v4989 = vrot.slane %v4726, 1
      %v4990 = vrot.slane %v4742, 1
      %v4991 = vsel %vm1009, %v4989, %v4990
      %v4992 = vrot.slane %v4727, 1
      %v4993 = vrot.slane %v4743, 1
      %v4994 = vsel %vm1009, %v4992, %v4993
      %v4995 = vrot.slane %v4728, 1
      %v4996 = vrot.slane %v4744, 1
      %v4997 = vsel %vm1009, %v4995, %v4996
      %v4998 = vrot.slane %v4729, 1
      %v4999 = vrot.slane %v4745, 1
      %v5000 = vsel %vm1009, %v4998, %v4999
      %v5001 = vrot.slane %v4730, 1
      %v5002 = vrot.slane %v4746, 1
      %v5003 = vsel %vm1009, %v5001, %v5002
      %v5004 = vrot.slane %v4731, 1
      %v5005 = vrot.slane %v4747, 1
      %v5006 = vsel %vm1009, %v5004, %v5005
      %v5007 = vrot.slane %v4732, 1
      %v5008 = vrot.slane %v4748, 1
      %v5009 = vsel %vm1009, %v5007, %v5008
      %v5010 = vrot.slane %v4733, 1
      %v5011 = vrot.slane %v4749, 1
      %v5012 = vsel %vm1009, %v5010, %v5011
      %v5013 = vrot.slane %v4734, 1
      %v5014 = vrot.slane %v4750, 1
      %v5015 = vsel %vm1009, %v5013, %v5014
      %v5016 = vrot.slane %v4735, 1
      %v5017 = vrot.slane %v4751, 1
      %v5018 = vsel %vm1009, %v5016, %v5017
      %v5019 = vrot.slane %v4736, 1
      %v5020 = vrot.slane %v4752, 1
      %v5021 = vsel %vm1009, %v5019, %v5020
      %v5022 = vrot.slane %v4737, 1
      %v5023 = vrot.slane %v4753, 1
      %v5024 = vsel %vm1009, %v5022, %v5023
      %v5041 = vshrl.u32 %v4738, 16
      %v5043 = vshll.u32 %v4738, 16
      %v5045 = vrot.slane %v5043, 1
      %v5046 = vor.u32 %v5041, %v5045
      %v5048 = vshll.u32 %v4754, 16
      %v5050 = vrot.slane %v5048, 1
      %v5051 = vsel %vm768, %v5046, %v5050
      %v5055 = vrot.slane %v4738, 1
      %v5056 = vrot.slane %v4754, 1
      %v5057 = vsel %vm1009, %v5055, %v5056
      %v5203 = vunpack.c.l.b16 %v4435
      %v5204 = vunpack.c.l.b16 %v4436
      %v5205 = vunpack.c.l.b16 %v4437
      %v5206 = vunpack.c.l.b16 %v4438
      %v5207 = vunpack.c.l.b16 %v4439
      %v5208 = vunpack.c.l.b16 %v4440
      %v5209 = vunpack.c.l.b16 %v4441
      %v5210 = vunpack.c.l.b16 %v4442
      %v5211 = vunpack.c.l.b16 %v4443
      %v5212 = vunpack.c.l.b16 %v4444
      %v5213 = vunpack.c.l.b16 %v4445
      %v5214 = vunpack.c.l.b16 %v4446
      %v5215 = vunpack.c.l.b16 %v4447
      %v5216 = vunpack.c.l.b16 %v4448
      %v5217 = vunpack.c.l.b16 %v4449
      %v5218 = vunpack.c.l.b16 %v4450
      %v5219 = vunpack.c.l.b16 %v4451
      %v5220 = vunpack.c.l.b16 %v4452
      %v5221 = vunpack.c.l.b16 %v4453
      %v5222 = vunpack.c.l.b16 %v4454
      %v5223 = vunpack.c.l.b16 %v4455
      %v5224 = vunpack.c.l.b16 %v4456
      %v5225 = vunpack.c.l.b16 %v4457
      %v5226 = vunpack.c.l.b16 %v4458
      %v5227 = vunpack.c.l.b16 %v4459
      %v5228 = vunpack.c.l.b16 %v4460
      %v5229 = vunpack.c.l.b16 %v4461
      %v5230 = vunpack.c.l.b16 %v4462
      %v5231 = vunpack.c.l.b16 %v4463
      %v5232 = vunpack.c.l.b16 %v4464
      %v5233 = vunpack.c.l.b16 %v4465
      %v5234 = vunpack.c.l.b16 %v4466
      %v5235 = vunpack.c.l.b16 %v4467
      %v5236 = vunpack.c.l.b16 %v4468
      %v5237 = vunpack.c.l.b16 %v4469
      %v5238 = vunpack.c.l.b16 %v4470
      %v5239 = vunpack.c.l.b16 %v4471
      %v5240 = vunpack.c.l.b16 %v4472
      %v5241 = vunpack.c.l.b16 %v4473
      %v5242 = vunpack.c.l.b16 %v4474
      %v5243 = vunpack.c.l.b16 %v4475
      %v5244 = vunpack.c.l.b16 %v4476
      %v5245 = vunpack.c.l.b16 %v4477
      %v5246 = vunpack.c.l.b16 %v4478
      %v5247 = vunpack.c.l.b16 %v4479
      %v5248 = vunpack.c.l.b16 %v4480
      %v5249 = vunpack.c.l.b16 %v4481
      %v5250 = vunpack.c.l.b16 %v4482
      %v5251 = vunpack.c.l.b16 %v4483
      %v5252 = vunpack.c.l.b16 %v4484
      %v5253 = vunpack.c.l.b16 %v4485
      %v5254 = vunpack.c.l.b16 %v4486
      %v5255 = vunpack.c.l.b16 %v4487
      %v5256 = vunpack.c.l.b16 %v4488
      %v5257 = vunpack.c.l.b16 %v4489
      %v5258 = vunpack.c.l.b16 %v4490
      %v5259 = vunpack.c.l.b16 %v4491
      %v5260 = vunpack.c.l.b16 %v4492
      %v5261 = vunpack.c.l.b16 %v4493
      %v5262 = vunpack.c.l.b16 %v4494
      %v5263 = vunpack.c.l.b16 %v4495
      %v5264 = vunpack.c.l.b16 %v4496
      %v5265 = vunpack.c.l.b16 %v4497
      %v5266 = vunpack.c.l.b16 %v4498
      %v5267 = vunpack.c.l.b16 %v4499
      %v5268 = vunpack.c.l.b16 %v4500
      %v5269 = vunpack.c.l.b16 %v4501
      %v5270 = vunpack.c.l.b16 %v4502
      %v5271 = vunpack.c.l.b16 %v4503
      %v5272 = vunpack.c.l.b16 %v4504
      %v5273 = vunpack.c.l.b16 %v4505
      %v5274 = vunpack.c.l.b16 %v4506
      %v5275 = vunpack.c.l.b16 %v4507
      %v5276 = vunpack.c.l.b16 %v4508
      %v5277 = vunpack.c.l.b16 %v4509
      %v5278 = vunpack.c.l.b16 %v4510
      %v5279 = vunpack.c.l.b16 %v4511
      %v5280 = vunpack.c.l.b16 %v4512
      %v5281 = vunpack.c.l.b16 %v4513
      %v5282 = vunpack.c.l.b16 %v4514
      %v5283 = vunpack.c.l.b16 %v4515
      %v5284 = vunpack.c.l.b16 %v4516
      %v5285 = vunpack.c.l.b16 %v4517
      %v5286 = vunpack.c.l.b16 %v4518
      %v5287 = vunpack.c.l.b16 %v4519
      %v5288 = vunpack.c.l.b16 %v4520
      %v5289 = vunpack.c.l.b16 %v4521
      %v5290 = vunpack.c.l.b16 %v4522
      %v5291 = vunpack.c.l.b16 %v4523
      %v5292 = vunpack.c.l.b16 %v4524
      %v5293 = vunpack.c.l.b16 %v4525
      %v5294 = vunpack.c.l.b16 %v4526
      %v5295 = vunpack.c.l.b16 %v4527
      %v5296 = vunpack.c.l.b16 %v4528
      %v5297 = vunpack.c.l.b16 %v4529
      %v5298 = vunpack.c.l.b16 %v4530
      %v5299 = vunpack.c.l.b16 %v4531
      %v5300 = vunpack.c.l.b16 %v4532
      %v5301 = vunpack.c.l.b16 %v4533
      %v5302 = vunpack.c.l.b16 %v4534
      %v5303 = vunpack.c.l.b16 %v4535
      %v5304 = vunpack.c.l.b16 %v4536
      %v5305 = vunpack.c.l.b16 %v4537
      %v5306 = vunpack.c.l.b16 %v4538
      %v5307 = vunpack.c.l.b16 %v4539
      %v5308 = vunpack.c.l.b16 %v4540
      %v5309 = vunpack.c.l.b16 %v4541
      %v5310 = vunpack.c.l.b16 %v4542
      %v5311 = vunpack.c.l.b16 %v4543
      %v5312 = vunpack.c.l.b16 %v4544
      %v5313 = vunpack.c.l.b16 %v4545
      %v5314 = vunpack.c.l.b16 %v4546
      %v5315 = vunpack.c.l.b16 %v4547
      %v5316 = vunpack.c.l.b16 %v4548
      %v5317 = vunpack.c.l.b16 %v4549
      %v5318 = vunpack.c.l.b16 %v4550
      %v5319 = vunpack.c.l.b16 %v4551
      %v5320 = vunpack.c.l.b16 %v4552
      %v5321 = vunpack.c.l.b16 %v4553
      %v5322 = vunpack.c.l.b16 %v4554
      %v5323 = vunpack.c.l.b16 %v4555
      %v5324 = vunpack.c.l.b16 %v4556
      %v5325 = vunpack.c.l.b16 %v4557
      %v5326 = vunpack.c.l.b16 %v4558
      %v5327 = vunpack.c.l.b16 %v4559
      %v5328 = vunpack.c.l.b16 %v4560
      %v5329 = vunpack.c.l.b16 %v4561
      %v5330 = vunpack.c.l.b16 %v4562
      %v5331 = vunpack.c.l.b16 %v4563
      %v5332 = vunpack.c.l.b16 %v4564
      %v5333 = vunpack.c.l.b16 %v4565
      %v5334 = vunpack.c.l.b16 %v4566
      %v5335 = vunpack.c.l.b16 %v4567
      %v5336 = vunpack.c.l.b16 %v4568
      %v5337 = vunpack.c.l.b16 %v4569
      %v5338 = vunpack.c.l.b16 %v4570
      %v5339 = vunpack.c.l.b16 %v4571
      %v5340 = vunpack.c.l.b16 %v4572
      %v5341 = vunpack.c.l.b16 %v4573
      %v5342 = vunpack.c.l.b16 %v4574
      %v5343 = vunpack.c.l.b16 %v4575
      %v5344 = vunpack.c.l.b16 %v4576
      %v5345 = vunpack.c.l.b16 %v4577
      %v5346 = vunpack.c.l.b16 %v4578
      %v5347 = vpack.c.b16 %v5204, %v5203
      %v5348 = vpack.c.b16 %v5206, %v5205
      %v5349 = vpack.c.b16 %v5208, %v5207
      %v5350 = vpack.c.b16 %v5210, %v5209
      %v5351 = vpack.c.b16 %v5212, %v5211
      %v5352 = vpack.c.b16 %v5214, %v5213
      %v5353 = vpack.c.b16 %v5216, %v5215
      %v5354 = vpack.c.b16 %v5218, %v5217
      %v5355 = vpack.c.b16 %v5220, %v5219
      %v5356 = vpack.c.b16 %v5222, %v5221
      %v5357 = vpack.c.b16 %v5224, %v5223
      %v5358 = vpack.c.b16 %v5226, %v5225
      %v5359 = vpack.c.b16 %v5228, %v5227
      %v5360 = vpack.c.b16 %v5230, %v5229
      %v5361 = vpack.c.b16 %v5232, %v5231
      %v5362 = vpack.c.b16 %v5234, %v5233
      %v5363 = vpack.c.b16 %v5236, %v5235
      %v5364 = vpack.c.b16 %v5238, %v5237
      %v5365 = vpack.c.b16 %v5240, %v5239
      %v5366 = vpack.c.b16 %v5242, %v5241
      %v5367 = vpack.c.b16 %v5244, %v5243
      %v5368 = vpack.c.b16 %v5246, %v5245
      %v5369 = vpack.c.b16 %v5248, %v5247
      %v5370 = vpack.c.b16 %v5250, %v5249
      %v5371 = vpack.c.b16 %v5252, %v5251
      %v5372 = vpack.c.b16 %v5254, %v5253
      %v5373 = vpack.c.b16 %v5256, %v5255
      %v5374 = vpack.c.b16 %v5258, %v5257
      %v5375 = vpack.c.b16 %v5260, %v5259
      %v5376 = vpack.c.b16 %v5262, %v5261
      %v5377 = vpack.c.b16 %v5264, %v5263
      %v5378 = vpack.c.b16 %v5266, %v5265
      %v5379 = vpack.c.b16 %v5268, %v5267
      %v5380 = vpack.c.b16 %v5270, %v5269
      %v5381 = vpack.c.b16 %v5272, %v5271
      %v5382 = vpack.c.b16 %v5274, %v5273
      %v5383 = vpack.c.b16 %v5276, %v5275
      %v5384 = vpack.c.b16 %v5278, %v5277
      %v5385 = vpack.c.b16 %v5280, %v5279
      %v5386 = vpack.c.b16 %v5282, %v5281
      %v5387 = vpack.c.b16 %v5284, %v5283
      %v5388 = vpack.c.b16 %v5286, %v5285
      %v5389 = vpack.c.b16 %v5288, %v5287
      %v5390 = vpack.c.b16 %v5290, %v5289
      %v5391 = vpack.c.b16 %v5292, %v5291
      %v5392 = vpack.c.b16 %v5294, %v5293
      %v5393 = vpack.c.b16 %v5296, %v5295
      %v5394 = vpack.c.b16 %v5298, %v5297
      %v5395 = vpack.c.b16 %v5300, %v5299
      %v5396 = vpack.c.b16 %v5302, %v5301
      %v5397 = vpack.c.b16 %v5304, %v5303
      %v5398 = vpack.c.b16 %v5306, %v5305
      %v5399 = vpack.c.b16 %v5308, %v5307
      %v5400 = vpack.c.b16 %v5310, %v5309
      %v5401 = vpack.c.b16 %v5312, %v5311
      %v5402 = vpack.c.b16 %v5314, %v5313
      %v5403 = vpack.c.b16 %v5316, %v5315
      %v5404 = vpack.c.b16 %v5318, %v5317
      %v5405 = vpack.c.b16 %v5320, %v5319
      %v5406 = vpack.c.b16 %v5322, %v5321
      %v5407 = vpack.c.b16 %v5324, %v5323
      %v5408 = vpack.c.b16 %v5326, %v5325
      %v5409 = vpack.c.b16 %v5328, %v5327
      %v5410 = vpack.c.b16 %v5330, %v5329
      %v5411 = vpack.c.b16 %v5332, %v5331
      %v5412 = vpack.c.b16 %v5334, %v5333
      %v5413 = vpack.c.b16 %v5336, %v5335
      %v5414 = vpack.c.b16 %v5338, %v5337
      %v5415 = vpack.c.b16 %v5340, %v5339
      %v5416 = vpack.c.b16 %v5342, %v5341
      %v5417 = vpack.c.b16 %v5344, %v5343
      %v5418 = vpack.c.b16 %v5346, %v5345
      %5491 = vmatprep.subr.bf16.mxu0 0
      %5492 = vmatpush1.bf16.msra.mxu0 %v5347
      %5493 = vmatprep.subr.bf16.mxu0 0
      %5494 = vmatpush1.bf16.msra.mxu0 %v5348
      %5495 = vmatprep.subr.bf16.mxu0 0
      %5496 = vmatpush1.bf16.msra.mxu0 %v5349
      %5497 = vmatprep.subr.bf16.mxu0 0
      %5498 = vmatpush1.bf16.msra.mxu0 %v5350
      %5499 = vmatprep.subr.bf16.mxu0 0
      %5500 = vmatpush1.bf16.msra.mxu0 %v5351
      %5501 = vmatprep.subr.bf16.mxu0 0
      %5502 = vmatpush1.bf16.msra.mxu0 %v5352
      %5503 = vmatprep.subr.bf16.mxu0 0
      %5504 = vmatpush1.bf16.msra.mxu0 %v5353
      %5505 = vmatprep.subr.bf16.mxu0 0
      %5506 = vmatpush1.bf16.msra.mxu0 %v5354
      %5507 = vmatprep.subr.bf16.mxu0 0
      %5508 = vmatpush1.bf16.msra.mxu0 %v5355
      %5509 = vmatprep.subr.bf16.mxu0 0
      %5510 = vmatpush1.bf16.msra.mxu0 %v5356
      %5511 = vmatprep.subr.bf16.mxu0 0
      %5512 = vmatpush1.bf16.msra.mxu0 %v5357
      %5513 = vmatprep.subr.bf16.mxu0 0
      %5514 = vmatpush1.bf16.msra.mxu0 %v5358
      %5515 = vmatprep.subr.bf16.mxu0 0
      %5516 = vmatpush1.bf16.msra.mxu0 %v5359
      %5517 = vmatprep.subr.bf16.mxu0 0
      %5518 = vmatpush1.bf16.msra.mxu0 %v5360
      %5519 = vmatprep.subr.bf16.mxu0 0
      %5520 = vmatpush1.bf16.msra.mxu0 %v5361
      %5521 = vmatprep.subr.bf16.mxu0 0
      %5522 = vmatpush1.bf16.msra.mxu0 %v5362
      %5523 = vmatprep.mubr.bf16.mxu0 %v780
      %5524 = vmatmul.mubr.bf16.gmra.mrb[0].mxu0 %v734
      %v5525 = vpop.f32.mrb[0].mxu0
      %v5526 = vadd.f32 0.0, %v5525
      %v5527 = vpop.f32.mrb[0].mxu0
      %v5528 = vpop.f32.mrb[0].mxu0
      %v5529 = vadd.f32 0.0, %v5528
      %v5530 = vpop.f32.mrb[0].mxu0
      %5531 = vmatprep.mubr.bf16.mxu0 %v4766
      %5532 = vmatmul.mubr.bf16.gmra.mrb[0].mxu0 %v4723
      %v5533 = vpop.f32.mrb[0].mxu0
      %v5534 = vadd.f32 0.0, %v5533
      %v5535 = vpop.f32.mrb[0].mxu0
      %v5536 = vpop.f32.mrb[0].mxu0
      %v5537 = vadd.f32 0.0, %v5536
      %v5538 = vpop.f32.mrb[0].mxu0
      %5539 = vmatprep.mubr.bf16.mxu0 %v4778
      %5540 = vmatmul.mubr.bf16.gmra.mrb[0].mxu0 %v4724
      %v5541 = vpop.f32.mrb[0].mxu0
      %v5542 = vadd.f32 0.0, %v5541
      %v5543 = vpop.f32.mrb[0].mxu0
      %v5544 = vpop.f32.mrb[0].mxu0
      %v5545 = vadd.f32 0.0, %v5544
      %v5546 = vpop.f32.mrb[0].mxu0
      %5547 = vmatprep.mubr.bf16.mxu0 %v4790
      %5548 = vmatmul.mubr.bf16.gmra.mrb[0].mxu0 %v4725
      %v5549 = vpop.f32.mrb[0].mxu0
      %v5550 = vadd.f32 0.0, %v5549
      %v5551 = vpop.f32.mrb[0].mxu0
      %v5552 = vpop.f32.mrb[0].mxu0
      %v5553 = vadd.f32 0.0, %v5552
      %v5554 = vpop.f32.mrb[0].mxu0
      %5555 = vmatprep.mubr.bf16.mxu0 %v4802
      %5556 = vmatmul.mubr.bf16.gmra.mrb[0].mxu0 %v4726
      %v5557 = vpop.f32.mrb[0].mxu0
      %v5558 = vadd.f32 0.0, %v5557
      %v5559 = vpop.f32.mrb[0].mxu0
      %v5560 = vpop.f32.mrb[0].mxu0
      %v5561 = vadd.f32 0.0, %v5560
      %v5562 = vpop.f32.mrb[0].mxu0
      %5563 = vmatprep.mubr.bf16.mxu0 %v4814
      %5564 = vmatmul.mubr.bf16.gmra.mrb[0].mxu0 %v4727
      %v5565 = vpop.f32.mrb[0].mxu0
      %v5566 = vadd.f32 0.0, %v5565
      %v5567 = vpop.f32.mrb[0].mxu0
      %v5568 = vpop.f32.mrb[0].mxu0
      %v5569 = vadd.f32 0.0, %v5568
      %v5570 = vpop.f32.mrb[0].mxu0
      %5571 = vmatprep.mubr.bf16.mxu0 %v4826
      %5572 = vmatmul.mubr.bf16.gmra.mrb[0].mxu0 %v4728
      %v5573 = vpop.f32.mrb[0].mxu0
      %v5574 = vadd.f32 0.0, %v5573
      %v5575 = vpop.f32.mrb[0].mxu0
      %v5576 = vpop.f32.mrb[0].mxu0
      %v5577 = vadd.f32 0.0, %v5576
      %v5578 = vpop.f32.mrb[0].mxu0
      %5579 = vmatprep.mubr.bf16.mxu0 %v4838
      %5580 = vmatmul.mubr.bf16.gmra.mrb[0].mxu0 %v4729
      %v5581 = vpop.f32.mrb[0].mxu0
      %v5582 = vadd.f32 0.0, %v5581
      %v5583 = vpop.f32.mrb[0].mxu0
      %v5584 = vpop.f32.mrb[0].mxu0
      %v5585 = vadd.f32 0.0, %v5584
      %v5586 = vpop.f32.mrb[0].mxu0
      %5587 = vmatprep.mubr.bf16.mxu0 %v4850
      %5588 = vmatmul.mubr.bf16.gmra.mrb[0].mxu0 %v4730
      %v5589 = vpop.f32.mrb[0].mxu0
      %v5590 = vadd.f32 0.0, %v5589
      %v5591 = vpop.f32.mrb[0].mxu0
      %v5592 = vpop.f32.mrb[0].mxu0
      %v5593 = vadd.f32 0.0, %v5592
      %v5594 = vpop.f32.mrb[0].mxu0
      %5595 = vmatprep.mubr.bf16.mxu0 %v4862
      %5596 = vmatmul.mubr.bf16.gmra.mrb[0].mxu0 %v4731
      %v5597 = vpop.f32.mrb[0].mxu0
      %v5598 = vadd.f32 0.0, %v5597
      %v5599 = vpop.f32.mrb[0].mxu0
      %v5600 = vpop.f32.mrb[0].mxu0
      %v5601 = vadd.f32 0.0, %v5600
      %v5602 = vpop.f32.mrb[0].mxu0
      %5603 = vmatprep.mubr.bf16.mxu0 %v4874
      %5604 = vmatmul.mubr.bf16.gmra.mrb[0].mxu0 %v4732
      %v5605 = vpop.f32.mrb[0].mxu0
      %v5606 = vadd.f32 0.0, %v5605
      %v5607 = vpop.f32.mrb[0].mxu0
      %v5608 = vpop.f32.mrb[0].mxu0
      %v5609 = vadd.f32 0.0, %v5608
      %v5610 = vpop.f32.mrb[0].mxu0
      %5611 = vmatprep.mubr.bf16.mxu0 %v4886
      %5612 = vmatmul.mubr.bf16.gmra.mrb[0].mxu0 %v4733
      %v5613 = vpop.f32.mrb[0].mxu0
      %v5614 = vadd.f32 0.0, %v5613
      %v5615 = vpop.f32.mrb[0].mxu0
      %v5616 = vpop.f32.mrb[0].mxu0
      %v5617 = vadd.f32 0.0, %v5616
      %v5618 = vpop.f32.mrb[0].mxu0
      %5619 = vmatprep.mubr.bf16.mxu0 %v4898
      %5620 = vmatmul.mubr.bf16.gmra.mrb[0].mxu0 %v4734
      %v5621 = vpop.f32.mrb[0].mxu0
      %v5622 = vadd.f32 0.0, %v5621
      %v5623 = vpop.f32.mrb[0].mxu0
      %v5624 = vpop.f32.mrb[0].mxu0
      %v5625 = vadd.f32 0.0, %v5624
      %v5626 = vpop.f32.mrb[0].mxu0
      %5627 = vmatprep.mubr.bf16.mxu0 %v4910
      %5628 = vmatmul.mubr.bf16.gmra.mrb[0].mxu0 %v4735
      %v5629 = vpop.f32.mrb[0].mxu0
      %v5630 = vadd.f32 0.0, %v5629
      %v5631 = vpop.f32.mrb[0].mxu0
      %v5632 = vpop.f32.mrb[0].mxu0
      %v5633 = vadd.f32 0.0, %v5632
      %v5634 = vpop.f32.mrb[0].mxu0
      %5635 = vmatprep.mubr.bf16.mxu0 %v4922
      %5636 = vmatmul.mubr.bf16.gmra.mrb[0].mxu0 %v4736
      %v5637 = vpop.f32.mrb[0].mxu0
      %v5638 = vadd.f32 0.0, %v5637
      %v5639 = vpop.f32.mrb[0].mxu0
      %v5640 = vpop.f32.mrb[0].mxu0
      %v5641 = vadd.f32 0.0, %v5640
      %v5642 = vpop.f32.mrb[0].mxu0
      %5643 = vmatprep.mubr.bf16.mxu0 %v4934
      %5644 = vmatmul.mubr.bf16.gmra.mrb[0].mxu0 %v4737
      %v5645 = vpop.f32.mrb[0].mxu0
      %v5646 = vadd.f32 0.0, %v5645
      %v5647 = vpop.f32.mrb[0].mxu0
      %v5648 = vpop.f32.mrb[0].mxu0
      %v5649 = vadd.f32 0.0, %v5648
      %v5650 = vpop.f32.mrb[0].mxu0
      %5651 = vdwg.mxu0
      %5652 = vmatprep.subr.bf16.mxu0 0
      %5653 = vmatpush1.bf16.msra.mxu0 %v5363
      %5654 = vmatprep.subr.bf16.mxu0 0
      %5655 = vmatpush1.bf16.msra.mxu0 %v5364
      %5656 = vmatprep.subr.bf16.mxu0 0
      %5657 = vmatpush1.bf16.msra.mxu0 %v5365
      %5658 = vmatprep.subr.bf16.mxu0 0
      %5659 = vmatpush1.bf16.msra.mxu0 %v5366
      %5660 = vmatprep.subr.bf16.mxu0 0
      %5661 = vmatpush1.bf16.msra.mxu0 %v5367
      %5662 = vmatprep.subr.bf16.mxu0 0
      %5663 = vmatpush1.bf16.msra.mxu0 %v5368
      %5664 = vmatprep.subr.bf16.mxu0 0
      %5665 = vmatpush1.bf16.msra.mxu0 %v5369
      %5666 = vmatprep.subr.bf16.mxu0 0
      %5667 = vmatpush1.bf16.msra.mxu0 %v5370
      %5668 = vmatprep.subr.bf16.mxu0 0
      %5669 = vmatpush1.bf16.msra.mxu0 %v5371
      %5670 = vmatprep.subr.bf16.mxu0 0
      %5671 = vmatpush1.bf16.msra.mxu0 %v5372
      %5672 = vmatprep.subr.bf16.mxu0 0
      %5673 = vmatpush1.bf16.msra.mxu0 %v5373
      %5674 = vmatprep.subr.bf16.mxu0 0
      %5675 = vmatpush1.bf16.msra.mxu0 %v5374
      %5676 = vmatprep.subr.bf16.mxu0 0
      %5677 = vmatpush1.bf16.msra.mxu0 %v5375
      %5678 = vmatprep.subr.bf16.mxu0 0
      %5679 = vmatpush1.bf16.msra.mxu0 %v5376
      %5680 = vmatprep.subr.bf16.mxu0 0
      %5681 = vmatpush1.bf16.msra.mxu0 %v5377
      %5682 = vmatprep.subr.bf16.mxu0 0
      %5683 = vmatpush1.bf16.msra.mxu0 %v5378
      %5684 = vmatprep.mubr.bf16.mxu0 %v4723
      %5685 = vmatmul.mubr.bf16.gmra.mrb[0].mxu0 %v1012
      %v5686 = vpop.f32.mrb[0].mxu0
      %v5687 = vadd.f32 %v5526, %v5686
      %v5688 = vpop.f32.mrb[0].mxu0
      %v5689 = vpop.f32.mrb[0].mxu0
      %v5690 = vadd.f32 %v5529, %v5689
      %v5691 = vpop.f32.mrb[0].mxu0
      %5692 = vmatprep.mubr.bf16.mxu0 %v4724
      %5693 = vmatmul.mubr.bf16.gmra.mrb[0].mxu0 %v4982
      %v5694 = vpop.f32.mrb[0].mxu0
      %v5695 = vadd.f32 %v5534, %v5694
      %v5696 = vpop.f32.mrb[0].mxu0
      %v5697 = vpop.f32.mrb[0].mxu0
      %v5698 = vadd.f32 %v5537, %v5697
      %v5699 = vpop.f32.mrb[0].mxu0
      %5700 = vmatprep.mubr.bf16.mxu0 %v4725
      %5701 = vmatmul.mubr.bf16.gmra.mrb[0].mxu0 %v4985
      %v5702 = vpop.f32.mrb[0].mxu0
      %v5703 = vadd.f32 %v5542, %v5702
      %v5704 = vpop.f32.mrb[0].mxu0
      %v5705 = vpop.f32.mrb[0].mxu0
      %v5706 = vadd.f32 %v5545, %v5705
      %v5707 = vpop.f32.mrb[0].mxu0
      %5708 = vmatprep.mubr.bf16.mxu0 %v4726
      %5709 = vmatmul.mubr.bf16.gmra.mrb[0].mxu0 %v4988
      %v5710 = vpop.f32.mrb[0].mxu0
      %v5711 = vadd.f32 %v5550, %v5710
      %v5712 = vpop.f32.mrb[0].mxu0
      %v5713 = vpop.f32.mrb[0].mxu0
      %v5714 = vadd.f32 %v5553, %v5713
      %v5715 = vpop.f32.mrb[0].mxu0
      %5716 = vmatprep.mubr.bf16.mxu0 %v4727
      %5717 = vmatmul.mubr.bf16.gmra.mrb[0].mxu0 %v4991
      %v5718 = vpop.f32.mrb[0].mxu0
      %v5719 = vadd.f32 %v5558, %v5718
      %v5720 = vpop.f32.mrb[0].mxu0
      %v5721 = vpop.f32.mrb[0].mxu0
      %v5722 = vadd.f32 %v5561, %v5721
      %v5723 = vpop.f32.mrb[0].mxu0
      %5724 = vmatprep.mubr.bf16.mxu0 %v4728
      %5725 = vmatmul.mubr.bf16.gmra.mrb[0].mxu0 %v4994
      %v5726 = vpop.f32.mrb[0].mxu0
      %v5727 = vadd.f32 %v5566, %v5726
      %v5728 = vpop.f32.mrb[0].mxu0
      %v5729 = vpop.f32.mrb[0].mxu0
      %v5730 = vadd.f32 %v5569, %v5729
      %v5731 = vpop.f32.mrb[0].mxu0
      %5732 = vmatprep.mubr.bf16.mxu0 %v4729
      %5733 = vmatmul.mubr.bf16.gmra.mrb[0].mxu0 %v4997
      %v5734 = vpop.f32.mrb[0].mxu0
      %v5735 = vadd.f32 %v5574, %v5734
      %v5736 = vpop.f32.mrb[0].mxu0
      %v5737 = vpop.f32.mrb[0].mxu0
      %v5738 = vadd.f32 %v5577, %v5737
      %v5739 = vpop.f32.mrb[0].mxu0
      %5740 = vmatprep.mubr.bf16.mxu0 %v4730
      %5741 = vmatmul.mubr.bf16.gmra.mrb[0].mxu0 %v5000
      %v5742 = vpop.f32.mrb[0].mxu0
      %v5743 = vadd.f32 %v5582, %v5742
      %v5744 = vpop.f32.mrb[0].mxu0
      %v5745 = vpop.f32.mrb[0].mxu0
      %v5746 = vadd.f32 %v5585, %v5745
      %v5747 = vpop.f32.mrb[0].mxu0
      %5748 = vmatprep.mubr.bf16.mxu0 %v4731
      %5749 = vmatmul.mubr.bf16.gmra.mrb[0].mxu0 %v5003
      %v5750 = vpop.f32.mrb[0].mxu0
      %v5751 = vadd.f32 %v5590, %v5750
      %v5752 = vpop.f32.mrb[0].mxu0
      %v5753 = vpop.f32.mrb[0].mxu0
      %v5754 = vadd.f32 %v5593, %v5753
      %v5755 = vpop.f32.mrb[0].mxu0
      %5756 = vmatprep.mubr.bf16.mxu0 %v4732
      %5757 = vmatmul.mubr.bf16.gmra.mrb[0].mxu0 %v5006
      %v5758 = vpop.f32.mrb[0].mxu0
      %v5759 = vadd.f32 %v5598, %v5758
      %v5760 = vpop.f32.mrb[0].mxu0
      %v5761 = vpop.f32.mrb[0].mxu0
      %v5762 = vadd.f32 %v5601, %v5761
      %v5763 = vpop.f32.mrb[0].mxu0
      %5764 = vmatprep.mubr.bf16.mxu0 %v4733
      %5765 = vmatmul.mubr.bf16.gmra.mrb[0].mxu0 %v5009
      %v5766 = vpop.f32.mrb[0].mxu0
      %v5767 = vadd.f32 %v5606, %v5766
      %v5768 = vpop.f32.mrb[0].mxu0
      %v5769 = vpop.f32.mrb[0].mxu0
      %v5770 = vadd.f32 %v5609, %v5769
      %v5771 = vpop.f32.mrb[0].mxu0
      %5772 = vmatprep.mubr.bf16.mxu0 %v4734
      %5773 = vmatmul.mubr.bf16.gmra.mrb[0].mxu0 %v5012
      %v5774 = vpop.f32.mrb[0].mxu0
      %v5775 = vadd.f32 %v5614, %v5774
      %v5776 = vpop.f32.mrb[0].mxu0
      %v5777 = vpop.f32.mrb[0].mxu0
      %v5778 = vadd.f32 %v5617, %v5777
      %v5779 = vpop.f32.mrb[0].mxu0
      %5780 = vmatprep.mubr.bf16.mxu0 %v4735
      %5781 = vmatmul.mubr.bf16.gmra.mrb[0].mxu0 %v5015
      %v5782 = vpop.f32.mrb[0].mxu0
      %v5783 = vadd.f32 %v5622, %v5782
      %v5784 = vpop.f32.mrb[0].mxu0
      %v5785 = vpop.f32.mrb[0].mxu0
      %v5786 = vadd.f32 %v5625, %v5785
      %v5787 = vpop.f32.mrb[0].mxu0
      %5788 = vmatprep.mubr.bf16.mxu0 %v4736
      %5789 = vmatmul.mubr.bf16.gmra.mrb[0].mxu0 %v5018
      %v5790 = vpop.f32.mrb[0].mxu0
      %v5791 = vadd.f32 %v5630, %v5790
      %v5792 = vpop.f32.mrb[0].mxu0
      %v5793 = vpop.f32.mrb[0].mxu0
      %v5794 = vadd.f32 %v5633, %v5793
      %v5795 = vpop.f32.mrb[0].mxu0
      %5796 = vmatprep.mubr.bf16.mxu0 %v4737
      %5797 = vmatmul.mubr.bf16.gmra.mrb[0].mxu0 %v5021
      %v5798 = vpop.f32.mrb[0].mxu0
      %v5799 = vadd.f32 %v5638, %v5798
      %v5800 = vpop.f32.mrb[0].mxu0
      %v5801 = vpop.f32.mrb[0].mxu0
      %v5802 = vadd.f32 %v5641, %v5801
      %v5803 = vpop.f32.mrb[0].mxu0
      %5804 = vmatprep.mubr.bf16.mxu0 %v4738
      %5805 = vmatmul.mubr.bf16.gmra.mrb[0].mxu0 %v5024
      %v5806 = vpop.f32.mrb[0].mxu0
      %v5807 = vadd.f32 %v5646, %v5806
      %v5808 = vpop.f32.mrb[0].mxu0
      %v5809 = vpop.f32.mrb[0].mxu0
      %v5810 = vadd.f32 %v5649, %v5809
      %v5811 = vpop.f32.mrb[0].mxu0
      %5812 = vdwg.mxu0
      %5813 = vmatprep.subr.bf16.mxu0 0
      %5814 = vmatpush1.bf16.msra.mxu0 %v5379
      %5815 = vmatprep.subr.bf16.mxu0 0
      %5816 = vmatpush1.bf16.msra.mxu0 %v5380
      %5817 = vmatprep.subr.bf16.mxu0 0
      %5818 = vmatpush1.bf16.msra.mxu0 %v5381
      %5819 = vmatprep.subr.bf16.mxu0 0
      %5820 = vmatpush1.bf16.msra.mxu0 %v5382
      %5821 = vmatprep.subr.bf16.mxu0 0
      %5822 = vmatpush1.bf16.msra.mxu0 %v5383
      %5823 = vmatprep.subr.bf16.mxu0 0
      %5824 = vmatpush1.bf16.msra.mxu0 %v5384
      %5825 = vmatprep.subr.bf16.mxu0 0
      %5826 = vmatpush1.bf16.msra.mxu0 %v5385
      %5827 = vmatprep.subr.bf16.mxu0 0
      %5828 = vmatpush1.bf16.msra.mxu0 %v5386
      %5829 = vmatprep.subr.bf16.mxu0 0
      %5830 = vmatpush1.bf16.msra.mxu0 %v5387
      %5831 = vmatprep.subr.bf16.mxu0 0
      %5832 = vmatpush1.bf16.msra.mxu0 %v5388
      %5833 = vmatprep.subr.bf16.mxu0 0
      %5834 = vmatpush1.bf16.msra.mxu0 %v5389
      %5835 = vmatprep.subr.bf16.mxu0 0
      %5836 = vmatpush1.bf16.msra.mxu0 %v5390
      %5837 = vmatprep.subr.bf16.mxu0 0
      %5838 = vmatpush1.bf16.msra.mxu0 %v5391
      %5839 = vmatprep.subr.bf16.mxu0 0
      %5840 = vmatpush1.bf16.msra.mxu0 %v5392
      %5841 = vmatprep.subr.bf16.mxu0 0
      %5842 = vmatpush1.bf16.msra.mxu0 %v5393
      %5843 = vmatprep.subr.bf16.mxu0 0
      %5844 = vmatpush1.bf16.msra.mxu0 %v5394
      %5845 = vmatprep.mubr.bf16.mxu0 %v4982
      %5846 = vmatmul.mubr.bf16.gmra.mrb[0].mxu0 %v4766
      %v5847 = vpop.f32.mrb[0].mxu0
      %v5848 = vadd.f32 %v5687, %v5847
      %v5849 = vpop.f32.mrb[0].mxu0
      %v5850 = vpop.f32.mrb[0].mxu0
      %v5851 = vadd.f32 %v5690, %v5850
      %v5852 = vpop.f32.mrb[0].mxu0
      %5853 = vmatprep.mubr.bf16.mxu0 %v4985
      %5854 = vmatmul.mubr.bf16.gmra.mrb[0].mxu0 %v4778
      %v5855 = vpop.f32.mrb[0].mxu0
      %v5856 = vadd.f32 %v5695, %v5855
      %v5857 = vpop.f32.mrb[0].mxu0
      %v5858 = vpop.f32.mrb[0].mxu0
      %v5859 = vadd.f32 %v5698, %v5858
      %v5860 = vpop.f32.mrb[0].mxu0
      %5861 = vmatprep.mubr.bf16.mxu0 %v4988
      %5862 = vmatmul.mubr.bf16.gmra.mrb[0].mxu0 %v4790
      %v5863 = vpop.f32.mrb[0].mxu0
      %v5864 = vadd.f32 %v5703, %v5863
      %v5865 = vpop.f32.mrb[0].mxu0
      %v5866 = vpop.f32.mrb[0].mxu0
      %v5867 = vadd.f32 %v5706, %v5866
      %v5868 = vpop.f32.mrb[0].mxu0
      %5869 = vmatprep.mubr.bf16.mxu0 %v4991
      %5870 = vmatmul.mubr.bf16.gmra.mrb[0].mxu0 %v4802
      %v5871 = vpop.f32.mrb[0].mxu0
      %v5872 = vadd.f32 %v5711, %v5871
      %v5873 = vpop.f32.mrb[0].mxu0
      %v5874 = vpop.f32.mrb[0].mxu0
      %v5875 = vadd.f32 %v5714, %v5874
      %v5876 = vpop.f32.mrb[0].mxu0
      %5877 = vmatprep.mubr.bf16.mxu0 %v4994
      %5878 = vmatmul.mubr.bf16.gmra.mrb[0].mxu0 %v4814
      %v5879 = vpop.f32.mrb[0].mxu0
      %v5880 = vadd.f32 %v5719, %v5879
      %v5881 = vpop.f32.mrb[0].mxu0
      %v5882 = vpop.f32.mrb[0].mxu0
      %v5883 = vadd.f32 %v5722, %v5882
      %v5884 = vpop.f32.mrb[0].mxu0
      %5885 = vmatprep.mubr.bf16.mxu0 %v4997
      %5886 = vmatmul.mubr.bf16.gmra.mrb[0].mxu0 %v4826
      %v5887 = vpop.f32.mrb[0].mxu0
      %v5888 = vadd.f32 %v5727, %v5887
      %v5889 = vpop.f32.mrb[0].mxu0
      %v5890 = vpop.f32.mrb[0].mxu0
      %v5891 = vadd.f32 %v5730, %v5890
      %v5892 = vpop.f32.mrb[0].mxu0
      %5893 = vmatprep.mubr.bf16.mxu0 %v5000
      %5894 = vmatmul.mubr.bf16.gmra.mrb[0].mxu0 %v4838
      %v5895 = vpop.f32.mrb[0].mxu0
      %v5896 = vadd.f32 %v5735, %v5895
      %v5897 = vpop.f32.mrb[0].mxu0
      %v5898 = vpop.f32.mrb[0].mxu0
      %v5899 = vadd.f32 %v5738, %v5898
      %v5900 = vpop.f32.mrb[0].mxu0
      %5901 = vmatprep.mubr.bf16.mxu0 %v5003
      %5902 = vmatmul.mubr.bf16.gmra.mrb[0].mxu0 %v4850
      %v5903 = vpop.f32.mrb[0].mxu0
      %v5904 = vadd.f32 %v5743, %v5903
      %v5905 = vpop.f32.mrb[0].mxu0
      %v5906 = vpop.f32.mrb[0].mxu0
      %v5907 = vadd.f32 %v5746, %v5906
      %v5908 = vpop.f32.mrb[0].mxu0
      %5909 = vmatprep.mubr.bf16.mxu0 %v5006
      %5910 = vmatmul.mubr.bf16.gmra.mrb[0].mxu0 %v4862
      %v5911 = vpop.f32.mrb[0].mxu0
      %v5912 = vadd.f32 %v5751, %v5911
      %v5913 = vpop.f32.mrb[0].mxu0
      %v5914 = vpop.f32.mrb[0].mxu0
      %v5915 = vadd.f32 %v5754, %v5914
      %v5916 = vpop.f32.mrb[0].mxu0
      %5917 = vmatprep.mubr.bf16.mxu0 %v5009
      %5918 = vmatmul.mubr.bf16.gmra.mrb[0].mxu0 %v4874
      %v5919 = vpop.f32.mrb[0].mxu0
      %v5920 = vadd.f32 %v5759, %v5919
      %v5921 = vpop.f32.mrb[0].mxu0
      %v5922 = vpop.f32.mrb[0].mxu0
      %v5923 = vadd.f32 %v5762, %v5922
      %v5924 = vpop.f32.mrb[0].mxu0
      %5925 = vmatprep.mubr.bf16.mxu0 %v5012
      %5926 = vmatmul.mubr.bf16.gmra.mrb[0].mxu0 %v4886
      %v5927 = vpop.f32.mrb[0].mxu0
      %v5928 = vadd.f32 %v5767, %v5927
      %v5929 = vpop.f32.mrb[0].mxu0
      %v5930 = vpop.f32.mrb[0].mxu0
      %v5931 = vadd.f32 %v5770, %v5930
      %v5932 = vpop.f32.mrb[0].mxu0
      %5933 = vmatprep.mubr.bf16.mxu0 %v5015
      %5934 = vmatmul.mubr.bf16.gmra.mrb[0].mxu0 %v4898
      %v5935 = vpop.f32.mrb[0].mxu0
      %v5936 = vadd.f32 %v5775, %v5935
      %v5937 = vpop.f32.mrb[0].mxu0
      %v5938 = vpop.f32.mrb[0].mxu0
      %v5939 = vadd.f32 %v5778, %v5938
      %v5940 = vpop.f32.mrb[0].mxu0
      %5941 = vmatprep.mubr.bf16.mxu0 %v5018
      %5942 = vmatmul.mubr.bf16.gmra.mrb[0].mxu0 %v4910
      %v5943 = vpop.f32.mrb[0].mxu0
      %v5944 = vadd.f32 %v5783, %v5943
      %v5945 = vpop.f32.mrb[0].mxu0
      %v5946 = vpop.f32.mrb[0].mxu0
      %v5947 = vadd.f32 %v5786, %v5946
      %v5948 = vpop.f32.mrb[0].mxu0
      %5949 = vmatprep.mubr.bf16.mxu0 %v5021
      %5950 = vmatmul.mubr.bf16.gmra.mrb[0].mxu0 %v4922
      %v5951 = vpop.f32.mrb[0].mxu0
      %v5952 = vadd.f32 %v5791, %v5951
      %v5953 = vpop.f32.mrb[0].mxu0
      %v5954 = vpop.f32.mrb[0].mxu0
      %v5955 = vadd.f32 %v5794, %v5954
      %v5956 = vpop.f32.mrb[0].mxu0
      %5957 = vmatprep.mubr.bf16.mxu0 %v5024
      %5958 = vmatmul.mubr.bf16.gmra.mrb[0].mxu0 %v4934
      %v5959 = vpop.f32.mrb[0].mxu0
      %v5960 = vadd.f32 %v5799, %v5959
      %v5961 = vpop.f32.mrb[0].mxu0
      %v5962 = vpop.f32.mrb[0].mxu0
      %v5963 = vadd.f32 %v5802, %v5962
      %v5964 = vpop.f32.mrb[0].mxu0
      %5965 = vmatprep.mubr.bf16.mxu0 %v5057
      %5966 = vmatmul.mubr.bf16.gmra.mrb[0].mxu0 %v5051
      %v5967 = vpop.f32.mrb[0].mxu0
      %v5968 = vadd.f32 %v5807, %v5967
      %v5969 = vpop.f32.mrb[0].mxu0
      %v5970 = vpop.f32.mrb[0].mxu0
      %v5971 = vadd.f32 %v5810, %v5970
      %v5972 = vpop.f32.mrb[0].mxu0
      %5973 = vdwg.mxu0
      %5974 = vmatprep.subr.bf16.mxu0 0
      %5975 = vmatpush1.bf16.msra.mxu0 %v5395
      %5976 = vmatprep.subr.bf16.mxu0 0
      %5977 = vmatpush1.bf16.msra.mxu0 %v5396
      %5978 = vmatprep.subr.bf16.mxu0 0
      %5979 = vmatpush1.bf16.msra.mxu0 %v5397
      %5980 = vmatprep.subr.bf16.mxu0 0
      %5981 = vmatpush1.bf16.msra.mxu0 %v5398
      %5982 = vmatprep.subr.bf16.mxu0 0
      %5983 = vmatpush1.bf16.msra.mxu0 %v5399
      %5984 = vmatprep.subr.bf16.mxu0 0
      %5985 = vmatpush1.bf16.msra.mxu0 %v5400
      %5986 = vmatprep.subr.bf16.mxu0 0
      %5987 = vmatpush1.bf16.msra.mxu0 %v5401
      %5988 = vmatprep.subr.bf16.mxu0 0
      %5989 = vmatpush1.bf16.msra.mxu0 %v5402
      %5990 = vmatprep.subr.bf16.mxu0 0
      %5991 = vmatpush1.bf16.msra.mxu0 %v5403
      %5992 = vmatprep.subr.bf16.mxu0 0
      %5993 = vmatpush1.bf16.msra.mxu0 %v5404
      %5994 = vmatprep.subr.bf16.mxu0 0
      %5995 = vmatpush1.bf16.msra.mxu0 %v5405
      %5996 = vmatprep.subr.bf16.mxu0 0
      %5997 = vmatpush1.bf16.msra.mxu0 %v5406
      %5998 = vmatprep.subr.bf16.mxu0 0
      %5999 = vmatpush1.bf16.msra.mxu0 %v5407
      %6000 = vmatprep.subr.bf16.mxu0 0
      %6001 = vmatpush1.bf16.msra.mxu0 %v5408
      %6002 = vmatprep.subr.bf16.mxu0 0
      %6003 = vmatpush1.bf16.msra.mxu0 %v5409
      %6004 = vmatprep.subr.bf16.mxu0 0
      %6005 = vmatpush1.bf16.msra.mxu0 %v5410
      %6006 = vmatprep.mubr.bf16.mxu0 %v4778
      %6007 = vmatmul.mubr.bf16.gmra.mrb[0].mxu0 %v4724
      %v6008 = vpop.f32.mrb[0].mxu0
      %v6009 = vadd.f32 %v5848, %v6008
      %v6010 = vpop.f32.mrb[0].mxu0
      %v6011 = vpop.f32.mrb[0].mxu0
      %v6012 = vadd.f32 %v5851, %v6011
      %v6013 = vpop.f32.mrb[0].mxu0
      %6014 = vmatprep.mubr.bf16.mxu0 %v4790
      %6015 = vmatmul.mubr.bf16.gmra.mrb[0].mxu0 %v4725
      %v6016 = vpop.f32.mrb[0].mxu0
      %v6017 = vadd.f32 %v5856, %v6016
      %v6018 = vpop.f32.mrb[0].mxu0
      %v6019 = vpop.f32.mrb[0].mxu0
      %v6020 = vadd.f32 %v5859, %v6019
      %v6021 = vpop.f32.mrb[0].mxu0
      %6022 = vmatprep.mubr.bf16.mxu0 %v4802
      %6023 = vmatmul.mubr.bf16.gmra.mrb[0].mxu0 %v4726
      %v6024 = vpop.f32.mrb[0].mxu0
      %v6025 = vadd.f32 %v5864, %v6024
      %v6026 = vpop.f32.mrb[0].mxu0
      %v6027 = vpop.f32.mrb[0].mxu0
      %v6028 = vadd.f32 %v5867, %v6027
      %v6029 = vpop.f32.mrb[0].mxu0
      %6030 = vmatprep.mubr.bf16.mxu0 %v4814
      %6031 = vmatmul.mubr.bf16.gmra.mrb[0].mxu0 %v4727
      %v6032 = vpop.f32.mrb[0].mxu0
      %v6033 = vadd.f32 %v5872, %v6032
      %v6034 = vpop.f32.mrb[0].mxu0
      %v6035 = vpop.f32.mrb[0].mxu0
      %v6036 = vadd.f32 %v5875, %v6035
      %v6037 = vpop.f32.mrb[0].mxu0
      %6038 = vmatprep.mubr.bf16.mxu0 %v4826
      %6039 = vmatmul.mubr.bf16.gmra.mrb[0].mxu0 %v4728
      %v6040 = vpop.f32.mrb[0].mxu0
      %v6041 = vadd.f32 %v5880, %v6040
      %v6042 = vpop.f32.mrb[0].mxu0
      %v6043 = vpop.f32.mrb[0].mxu0
      %v6044 = vadd.f32 %v5883, %v6043
      %v6045 = vpop.f32.mrb[0].mxu0
      %6046 = vmatprep.mubr.bf16.mxu0 %v4838
      %6047 = vmatmul.mubr.bf16.gmra.mrb[0].mxu0 %v4729
      %v6048 = vpop.f32.mrb[0].mxu0
      %v6049 = vadd.f32 %v5888, %v6048
      %v6050 = vpop.f32.mrb[0].mxu0
      %v6051 = vpop.f32.mrb[0].mxu0
      %v6052 = vadd.f32 %v5891, %v6051
      %v6053 = vpop.f32.mrb[0].mxu0
      %6054 = vmatprep.mubr.bf16.mxu0 %v4850
      %6055 = vmatmul.mubr.bf16.gmra.mrb[0].mxu0 %v4730
      %v6056 = vpop.f32.mrb[0].mxu0
      %v6057 = vadd.f32 %v5896, %v6056
      %v6058 = vpop.f32.mrb[0].mxu0
      %v6059 = vpop.f32.mrb[0].mxu0
      %v6060 = vadd.f32 %v5899, %v6059
      %v6061 = vpop.f32.mrb[0].mxu0
      %6062 = vmatprep.mubr.bf16.mxu0 %v4862
      %6063 = vmatmul.mubr.bf16.gmra.mrb[0].mxu0 %v4731
      %v6064 = vpop.f32.mrb[0].mxu0
      %v6065 = vadd.f32 %v5904, %v6064
      %v6066 = vpop.f32.mrb[0].mxu0
      %v6067 = vpop.f32.mrb[0].mxu0
      %v6068 = vadd.f32 %v5907, %v6067
      %v6069 = vpop.f32.mrb[0].mxu0
      %6070 = vmatprep.mubr.bf16.mxu0 %v4874
      %6071 = vmatmul.mubr.bf16.gmra.mrb[0].mxu0 %v4732
      %v6072 = vpop.f32.mrb[0].mxu0
      %v6073 = vadd.f32 %v5912, %v6072
      %v6074 = vpop.f32.mrb[0].mxu0
      %v6075 = vpop.f32.mrb[0].mxu0
      %v6076 = vadd.f32 %v5915, %v6075
      %v6077 = vpop.f32.mrb[0].mxu0
      %6078 = vmatprep.mubr.bf16.mxu0 %v4886
      %6079 = vmatmul.mubr.bf16.gmra.mrb[0].mxu0 %v4733
      %v6080 = vpop.f32.mrb[0].mxu0
      %v6081 = vadd.f32 %v5920, %v6080
      %v6082 = vpop.f32.mrb[0].mxu0
      %v6083 = vpop.f32.mrb[0].mxu0
      %v6084 = vadd.f32 %v5923, %v6083
      %v6085 = vpop.f32.mrb[0].mxu0
      %6086 = vmatprep.mubr.bf16.mxu0 %v4898
      %6087 = vmatmul.mubr.bf16.gmra.mrb[0].mxu0 %v4734
      %v6088 = vpop.f32.mrb[0].mxu0
      %v6089 = vadd.f32 %v5928, %v6088
      %v6090 = vpop.f32.mrb[0].mxu0
      %v6091 = vpop.f32.mrb[0].mxu0
      %v6092 = vadd.f32 %v5931, %v6091
      %v6093 = vpop.f32.mrb[0].mxu0
      %6094 = vmatprep.mubr.bf16.mxu0 %v4910
      %6095 = vmatmul.mubr.bf16.gmra.mrb[0].mxu0 %v4735
      %v6096 = vpop.f32.mrb[0].mxu0
      %v6097 = vadd.f32 %v5936, %v6096
      %v6098 = vpop.f32.mrb[0].mxu0
      %v6099 = vpop.f32.mrb[0].mxu0
      %v6100 = vadd.f32 %v5939, %v6099
      %v6101 = vpop.f32.mrb[0].mxu0
      %6102 = vmatprep.mubr.bf16.mxu0 %v4922
      %6103 = vmatmul.mubr.bf16.gmra.mrb[0].mxu0 %v4736
      %v6104 = vpop.f32.mrb[0].mxu0
      %v6105 = vadd.f32 %v5944, %v6104
      %v6106 = vpop.f32.mrb[0].mxu0
      %v6107 = vpop.f32.mrb[0].mxu0
      %v6108 = vadd.f32 %v5947, %v6107
      %v6109 = vpop.f32.mrb[0].mxu0
      %6110 = vmatprep.mubr.bf16.mxu0 %v4934
      %6111 = vmatmul.mubr.bf16.gmra.mrb[0].mxu0 %v4737
      %v6112 = vpop.f32.mrb[0].mxu0
      %v6113 = vadd.f32 %v5952, %v6112
      %v6114 = vpop.f32.mrb[0].mxu0
      %v6115 = vpop.f32.mrb[0].mxu0
      %v6116 = vadd.f32 %v5955, %v6115
      %v6117 = vpop.f32.mrb[0].mxu0
      %6118 = vmatprep.mubr.bf16.mxu0 %v5051
      %6119 = vmatmul.mubr.bf16.gmra.mrb[0].mxu0 %v4738
      %v6120 = vpop.f32.mrb[0].mxu0
      %v6121 = vadd.f32 %v5960, %v6120
      %v6122 = vpop.f32.mrb[0].mxu0
      %v6123 = vpop.f32.mrb[0].mxu0
      %v6124 = vadd.f32 %v5963, %v6123
      %v6125 = vpop.f32.mrb[0].mxu0
      %6126 = vmatprep.mubr.bf16.mxu0 %v780
      %6127 = vmatmul.mubr.bf16.gmra.mrb[0].mxu0 %v734
      %v6128 = vpop.f32.mrb[0].mxu0
      %v6129 = vadd.f32 %v5968, %v6128
      %v6130 = vpop.f32.mrb[0].mxu0
      %v6131 = vpop.f32.mrb[0].mxu0
      %v6132 = vadd.f32 %v5971, %v6131
      %v6133 = vpop.f32.mrb[0].mxu0
      %6134 = vdwg.mxu0
      %6135 = vmatprep.subr.bf16.mxu0 0
      %6136 = vmatpush1.bf16.msra.mxu0 %v5411
      %6137 = vmatprep.subr.bf16.mxu0 0
      %6138 = vmatpush1.bf16.msra.mxu0 %v5412
      %6139 = vmatprep.subr.bf16.mxu0 0
      %6140 = vmatpush1.bf16.msra.mxu0 %v5413
      %6141 = vmatprep.subr.bf16.mxu0 0
      %6142 = vmatpush1.bf16.msra.mxu0 %v5414
      %6143 = vmatprep.subr.bf16.mxu0 0
      %6144 = vmatpush1.bf16.msra.mxu0 %v5415
      %6145 = vmatprep.subr.bf16.mxu0 0
      %6146 = vmatpush1.bf16.msra.mxu0 %v5416
      %6147 = vmatprep.subr.bf16.mxu0 0
      %6148 = vmatpush1.bf16.msra.mxu0 %v5417
      %6149 = vmatprep.subr.bf16.mxu0 0
      %6150 = vmatpush1.bf16.msra.mxu0 %v5418
      %6151 = vmatprep.subr.bf16.mxu0 0
      %6152 = vmatpush1.bf16.msra.mxu0 0
      %6153 = vmatprep.subr.bf16.mxu0 0
      %6154 = vmatpush1.bf16.msra.mxu0 0
      %6155 = vmatprep.subr.bf16.mxu0 0
      %6156 = vmatpush1.bf16.msra.mxu0 0
      %6157 = vmatprep.subr.bf16.mxu0 0
      %6158 = vmatpush1.bf16.msra.mxu0 0
      %6159 = vmatprep.subr.bf16.mxu0 0
      %6160 = vmatpush1.bf16.msra.mxu0 0
      %6161 = vmatprep.subr.bf16.mxu0 0
      %6162 = vmatpush1.bf16.msra.mxu0 0
      %6163 = vmatprep.subr.bf16.mxu0 0
      %6164 = vmatpush1.bf16.msra.mxu0 0
      %6165 = vmatprep.subr.bf16.mxu0 0
      %6166 = vmatpush1.bf16.msra.mxu0 0
      %6167 = vmatprep.mubr.bf16.mxu0 0
      %6168 = vmatmul.mubr.bf16.gmra.mrb[0].mxu0 %v4985
      %v6169 = vpop.f32.mrb[0].mxu0
      %v6170 = vadd.f32 %v6009, %v6169
      %v6171 = vpop.f32.mrb[0].mxu0
      %v6172 = vpop.f32.mrb[0].mxu0
      %v6173 = vadd.f32 %v6012, %v6172
      %v6174 = vpop.f32.mrb[0].mxu0
      %6175 = vmatprep.mubr.bf16.mxu0 0
      %6176 = vmatmul.mubr.bf16.gmra.mrb[0].mxu0 %v4988
      %v6177 = vpop.f32.mrb[0].mxu0
      %v6178 = vadd.f32 %v6017, %v6177
      %v6179 = vpop.f32.mrb[0].mxu0
      %v6180 = vpop.f32.mrb[0].mxu0
      %v6181 = vadd.f32 %v6020, %v6180
      %v6182 = vpop.f32.mrb[0].mxu0
      %6183 = vmatprep.mubr.bf16.mxu0 0
      %6184 = vmatmul.mubr.bf16.gmra.mrb[0].mxu0 %v4991
      %v6185 = vpop.f32.mrb[0].mxu0
      %v6186 = vadd.f32 %v6025, %v6185
      %v6187 = vpop.f32.mrb[0].mxu0
      %v6188 = vpop.f32.mrb[0].mxu0
      %v6189 = vadd.f32 %v6028, %v6188
      %v6190 = vpop.f32.mrb[0].mxu0
      %6191 = vmatprep.mubr.bf16.mxu0 0
      %6192 = vmatmul.mubr.bf16.gmra.mrb[0].mxu0 %v4994
      %v6193 = vpop.f32.mrb[0].mxu0
      %v6194 = vadd.f32 %v6033, %v6193
      %v6195 = vpop.f32.mrb[0].mxu0
      %v6196 = vpop.f32.mrb[0].mxu0
      %v6197 = vadd.f32 %v6036, %v6196
      %v6198 = vpop.f32.mrb[0].mxu0
      %6199 = vmatprep.mubr.bf16.mxu0 0
      %6200 = vmatmul.mubr.bf16.gmra.mrb[0].mxu0 %v4997
      %v6201 = vpop.f32.mrb[0].mxu0
      %v6202 = vadd.f32 %v6041, %v6201
      %v6203 = vpop.f32.mrb[0].mxu0
      %v6204 = vpop.f32.mrb[0].mxu0
      %v6205 = vadd.f32 %v6044, %v6204
      %v6206 = vpop.f32.mrb[0].mxu0
      %6207 = vmatprep.mubr.bf16.mxu0 0
      %6208 = vmatmul.mubr.bf16.gmra.mrb[0].mxu0 %v5000
      %v6209 = vpop.f32.mrb[0].mxu0
      %v6210 = vadd.f32 %v6049, %v6209
      %v6211 = vpop.f32.mrb[0].mxu0
      %v6212 = vpop.f32.mrb[0].mxu0
      %v6213 = vadd.f32 %v6052, %v6212
      %v6214 = vpop.f32.mrb[0].mxu0
      %6215 = vmatprep.mubr.bf16.mxu0 0
      %6216 = vmatmul.mubr.bf16.gmra.mrb[0].mxu0 %v5003
      %v6217 = vpop.f32.mrb[0].mxu0
      %v6218 = vadd.f32 %v6057, %v6217
      %v6219 = vpop.f32.mrb[0].mxu0
      %v6220 = vpop.f32.mrb[0].mxu0
      %v6221 = vadd.f32 %v6060, %v6220
      %v6222 = vpop.f32.mrb[0].mxu0
      %6223 = vmatprep.mubr.bf16.mxu0 0
      %6224 = vmatmul.mubr.bf16.gmra.mrb[0].mxu0 %v5006
      %v6225 = vpop.f32.mrb[0].mxu0
      %v6226 = vadd.f32 %v6065, %v6225
      %v6227 = vpop.f32.mrb[0].mxu0
      %v6228 = vpop.f32.mrb[0].mxu0
      %v6229 = vadd.f32 %v6068, %v6228
      %v6230 = vpop.f32.mrb[0].mxu0
      %6231 = vmatprep.mubr.bf16.mxu0 0
      %6232 = vmatmul.mubr.bf16.gmra.mrb[0].mxu0 %v5009
      %v6233 = vpop.f32.mrb[0].mxu0
      %v6234 = vadd.f32 %v6073, %v6233
      %v6235 = vpop.f32.mrb[0].mxu0
      %v6236 = vpop.f32.mrb[0].mxu0
      %v6237 = vadd.f32 %v6076, %v6236
      %v6238 = vpop.f32.mrb[0].mxu0
      %6239 = vmatprep.mubr.bf16.mxu0 0
      %6240 = vmatmul.mubr.bf16.gmra.mrb[0].mxu0 %v5012
      %v6241 = vpop.f32.mrb[0].mxu0
      %v6242 = vadd.f32 %v6081, %v6241
      %v6243 = vpop.f32.mrb[0].mxu0
      %v6244 = vpop.f32.mrb[0].mxu0
      %v6245 = vadd.f32 %v6084, %v6244
      %v6246 = vpop.f32.mrb[0].mxu0
      %6247 = vmatprep.mubr.bf16.mxu0 0
      %6248 = vmatmul.mubr.bf16.gmra.mrb[0].mxu0 %v5015
      %v6249 = vpop.f32.mrb[0].mxu0
      %v6250 = vadd.f32 %v6089, %v6249
      %v6251 = vpop.f32.mrb[0].mxu0
      %v6252 = vpop.f32.mrb[0].mxu0
      %v6253 = vadd.f32 %v6092, %v6252
      %v6254 = vpop.f32.mrb[0].mxu0
      %6255 = vmatprep.mubr.bf16.mxu0 0
      %6256 = vmatmul.mubr.bf16.gmra.mrb[0].mxu0 %v5018
      %v6257 = vpop.f32.mrb[0].mxu0
      %v6258 = vadd.f32 %v6097, %v6257
      %v6259 = vpop.f32.mrb[0].mxu0
      %v6260 = vpop.f32.mrb[0].mxu0
      %v6261 = vadd.f32 %v6100, %v6260
      %v6262 = vpop.f32.mrb[0].mxu0
      %6263 = vmatprep.mubr.bf16.mxu0 0
      %6264 = vmatmul.mubr.bf16.gmra.mrb[0].mxu0 %v5021
      %v6265 = vpop.f32.mrb[0].mxu0
      %v6266 = vadd.f32 %v6105, %v6265
      %v6267 = vpop.f32.mrb[0].mxu0
      %v6268 = vpop.f32.mrb[0].mxu0
      %v6269 = vadd.f32 %v6108, %v6268
      %v6270 = vpop.f32.mrb[0].mxu0
      %6271 = vmatprep.mubr.bf16.mxu0 0
      %6272 = vmatmul.mubr.bf16.gmra.mrb[0].mxu0 %v5024
      %v6273 = vpop.f32.mrb[0].mxu0
      %v6274 = vadd.f32 %v6113, %v6273
      %v6275 = vpop.f32.mrb[0].mxu0
      %v6276 = vpop.f32.mrb[0].mxu0
      %v6277 = vadd.f32 %v6116, %v6276
      %v6278 = vpop.f32.mrb[0].mxu0
      %6279 = vmatprep.mubr.bf16.mxu0 0
      %6280 = vmatmul.mubr.bf16.gmra.mrb[0].mxu0 %v5057
      %v6281 = vpop.f32.mrb[0].mxu0
      %v6282 = vadd.f32 %v6121, %v6281
      %v6283 = vpop.f32.mrb[0].mxu0
      %v6284 = vpop.f32.mrb[0].mxu0
      %v6285 = vadd.f32 %v6124, %v6284
      %v6286 = vpop.f32.mrb[0].mxu0
      %6287 = vmatprep.mubr.bf16.mxu0 0
      %6288 = vmatmul.mubr.bf16.gmra.mrb[0].mxu0 %v1012
      %v6289 = vpop.f32.mrb[0].mxu0
      %v6290 = vadd.f32 %v6129, %v6289
      %v6291 = vpop.f32.mrb[0].mxu0
      %v6292 = vpop.f32.mrb[0].mxu0
      %v6293 = vadd.f32 %v6132, %v6292
      %v6294 = vpop.f32.mrb[0].mxu0
      %6295 = vdwg.mxu0
      %v6296 = vld [vmem:[%s1 + $0x2] sm:$0x1]
      %v6297 = vlaneseq
      %v6298 = vshrl.u32 %v6297, 7
      %v6299 = vsub.s32 0, %v6298
      %v6300 = vrot.slane %v6296, %v6299
      %v6301 = vmul.f32 %v280, %v6300
      %v6302 = vmul.f32 %v281, %v6300
      %v6303 = vmul.f32 %v282, %v6300
      %v6304 = vmul.f32 %v283, %v6300
      %v6305 = vmul.f32 %v284, %v6300
      %v6306 = vmul.f32 %v285, %v6300
      %v6307 = vmul.f32 %v286, %v6300
      %v6308 = vmul.f32 %v287, %v6300
      %v6309 = vmul.f32 %v288, %v6300
      %v6310 = vmul.f32 %v289, %v6300
      %v6311 = vmul.f32 %v290, %v6300
      %v6312 = vmul.f32 %v291, %v6300
      %v6313 = vmul.f32 %v292, %v6300
      %v6314 = vmul.f32 %v293, %v6300
      %v6315 = vmul.f32 %v294, %v6300
      %v6316 = vmul.f32 %v295, %v6300
      %v6317 = vmul.f32 %v296, %v6300
      %v6318 = vmul.f32 %v297, %v6300
      %v6319 = vmul.f32 %v298, %v6300
      %v6320 = vmul.f32 %v299, %v6300
      %v6321 = vmul.f32 %v300, %v6300
      %v6322 = vmul.f32 %v301, %v6300
      %v6323 = vmul.f32 %v302, %v6300
      %v6324 = vmul.f32 %v303, %v6300
      %v6325 = vmul.f32 %v304, %v6300
      %v6326 = vmul.f32 %v305, %v6300
      %v6327 = vmul.f32 %v306, %v6300
      %v6328 = vmul.f32 %v307, %v6300
      %v6329 = vmul.f32 %v308, %v6300
      %v6330 = vmul.f32 %v309, %v6300
      %v6331 = vmul.f32 %v310, %v6300
      %v6332 = vmul.f32 %v311, %v6300
      %v6333 = vld [vmem:[%s1 + $0x3] sm:$0x1]
      %v6334 = vlaneseq
      %v6335 = vshrl.u32 %v6334, 7
      %v6336 = vsub.s32 0, %v6335
      %v6337 = vrot.slane %v6333, %v6336
      %v6338 = vadd.f32 %v6301, %v6337
      %v6339 = vadd.f32 %v6302, %v6337
      %v6340 = vadd.f32 %v6303, %v6337
      %v6341 = vadd.f32 %v6304, %v6337
      %v6342 = vadd.f32 %v6305, %v6337
      %v6343 = vadd.f32 %v6306, %v6337
      %v6344 = vadd.f32 %v6307, %v6337
      %v6345 = vadd.f32 %v6308, %v6337
      %v6346 = vadd.f32 %v6309, %v6337
      %v6347 = vadd.f32 %v6310, %v6337
      %v6348 = vadd.f32 %v6311, %v6337
      %v6349 = vadd.f32 %v6312, %v6337
      %v6350 = vadd.f32 %v6313, %v6337
      %v6351 = vadd.f32 %v6314, %v6337
      %v6352 = vadd.f32 %v6315, %v6337
      %v6353 = vadd.f32 %v6316, %v6337
      %v6354 = vadd.f32 %v6317, %v6337
      %v6355 = vadd.f32 %v6318, %v6337
      %v6356 = vadd.f32 %v6319, %v6337
      %v6357 = vadd.f32 %v6320, %v6337
      %v6358 = vadd.f32 %v6321, %v6337
      %v6359 = vadd.f32 %v6322, %v6337
      %v6360 = vadd.f32 %v6323, %v6337
      %v6361 = vadd.f32 %v6324, %v6337
      %v6362 = vadd.f32 %v6325, %v6337
      %v6363 = vadd.f32 %v6326, %v6337
      %v6364 = vadd.f32 %v6327, %v6337
      %v6365 = vadd.f32 %v6328, %v6337
      %v6366 = vadd.f32 %v6329, %v6337
      %v6367 = vadd.f32 %v6330, %v6337
      %v6368 = vadd.f32 %v6331, %v6337
      %v6369 = vadd.f32 %v6332, %v6337
      %v6370 = vmax.f32 %v6338, 0.0
      %v6371 = vmax.f32 %v6339, 0.0
      %v6372 = vmax.f32 %v6340, 0.0
      %v6373 = vmax.f32 %v6341, 0.0
      %v6374 = vmax.f32 %v6342, 0.0
      %v6375 = vmax.f32 %v6343, 0.0
      %v6376 = vmax.f32 %v6344, 0.0
      %v6377 = vmax.f32 %v6345, 0.0
      %v6378 = vmax.f32 %v6346, 0.0
      %v6379 = vmax.f32 %v6347, 0.0
      %v6380 = vmax.f32 %v6348, 0.0
      %v6381 = vmax.f32 %v6349, 0.0
      %v6382 = vmax.f32 %v6350, 0.0
      %v6383 = vmax.f32 %v6351, 0.0
      %v6384 = vmax.f32 %v6352, 0.0
      %v6385 = vmax.f32 %v6353, 0.0
      %v6386 = vmax.f32 %v6354, 0.0
      %v6387 = vmax.f32 %v6355, 0.0
      %v6388 = vmax.f32 %v6356, 0.0
      %v6389 = vmax.f32 %v6357, 0.0
      %v6390 = vmax.f32 %v6358, 0.0
      %v6391 = vmax.f32 %v6359, 0.0
      %v6392 = vmax.f32 %v6360, 0.0
      %v6393 = vmax.f32 %v6361, 0.0
      %v6394 = vmax.f32 %v6362, 0.0
      %v6395 = vmax.f32 %v6363, 0.0
      %v6396 = vmax.f32 %v6364, 0.0
      %v6397 = vmax.f32 %v6365, 0.0
      %v6398 = vmax.f32 %v6366, 0.0
      %v6399 = vmax.f32 %v6367, 0.0
      %v6400 = vmax.f32 %v6368, 0.0
      %v6401 = vmax.f32 %v6369, 0.0
      %v6402 = vpack.c.bf16 %v6371, %v6370
      %v6403 = vpack.c.bf16 %v6373, %v6372
      %v6404 = vpack.c.bf16 %v6375, %v6374
      %v6405 = vpack.c.bf16 %v6377, %v6376
      %v6406 = vpack.c.bf16 %v6379, %v6378
      %v6407 = vpack.c.bf16 %v6381, %v6380
      %v6408 = vpack.c.bf16 %v6383, %v6382
      %v6409 = vpack.c.bf16 %v6385, %v6384
      %v6410 = vpack.c.bf16 %v6387, %v6386
      %v6411 = vpack.c.bf16 %v6389, %v6388
      %v6412 = vpack.c.bf16 %v6391, %v6390
      %v6413 = vpack.c.bf16 %v6393, %v6392
      %v6414 = vpack.c.bf16 %v6395, %v6394
      %v6415 = vpack.c.bf16 %v6397, %v6396
      %v6416 = vpack.c.bf16 %v6399, %v6398
      %v6417 = vpack.c.bf16 %v6401, %v6400
      %v6418 = vld [vmem:[%s6] sm:$0xf]
      %v6419 = vld [vmem:[%s6 + $0x4] sm:$0xf]
      %v6420 = vld [vmem:[%s6 + $0x8] sm:$0xf]
      %v6421 = vld [vmem:[%s6 + $0xc] sm:$0xf]
      %v6422 = vld [vmem:[%s6 + $0x10] sm:$0xf]
      %v6423 = vld [vmem:[%s6 + $0x14] sm:$0xf]
      %v6424 = vld [vmem:[%s6 + $0x18] sm:$0xf]
      %v6425 = vld [vmem:[%s6 + $0x1c] sm:$0xf]
      %v6426 = vld [vmem:[%s6 + $0x20] sm:$0xf]
      %v6427 = vld [vmem:[%s6 + $0x24] sm:$0xf]
      %v6428 = vld [vmem:[%s6 + $0x28] sm:$0xf]
      %v6429 = vld [vmem:[%s6 + $0x2c] sm:$0xf]
      %v6430 = vld [vmem:[%s6 + $0x30] sm:$0xf]
      %v6431 = vld [vmem:[%s6 + $0x34] sm:$0xf]
      %v6432 = vld [vmem:[%s6 + $0x38] sm:$0xf]
      %v6433 = vld [vmem:[%s6 + $0x3c] sm:$0xf]
      %v6450 = vunpack.c.l.b16 %v6418
      %v6451 = vunpack.c.l.b16 %v6419
      %v6452 = vunpack.c.l.b16 %v6420
      %v6453 = vunpack.c.l.b16 %v6421
      %v6454 = vunpack.c.l.b16 %v6422
      %v6455 = vunpack.c.l.b16 %v6423
      %v6456 = vunpack.c.l.b16 %v6424
      %v6457 = vunpack.c.l.b16 %v6425
      %v6458 = vunpack.c.l.b16 %v6426
      %v6459 = vunpack.c.l.b16 %v6427
      %v6460 = vunpack.c.l.b16 %v6428
      %v6461 = vunpack.c.l.b16 %v6429
      %v6462 = vunpack.c.l.b16 %v6430
      %v6463 = vunpack.c.l.b16 %v6431
      %v6464 = vunpack.c.l.b16 %v6432
      %v6465 = vunpack.c.l.b16 %v6433
      %v6466 = vpack.c.b16 %v6451, %v6450
      %v6467 = vpack.c.b16 %v6453, %v6452
      %v6468 = vpack.c.b16 %v6455, %v6454
      %v6469 = vpack.c.b16 %v6457, %v6456
      %v6470 = vpack.c.b16 %v6459, %v6458
      %v6471 = vpack.c.b16 %v6461, %v6460
      %v6472 = vpack.c.b16 %v6463, %v6462
      %v6473 = vpack.c.b16 %v6465, %v6464
      %6482 = vmatprep.subr.bf16.mxu0 0
      %6483 = vmatpush1.bf16.msra.mxu0 %v6466
      %6484 = vmatprep.subr.bf16.mxu0 0
      %6485 = vmatpush1.bf16.msra.mxu0 %v6467
      %6486 = vmatprep.subr.bf16.mxu0 0
      %6487 = vmatpush1.bf16.msra.mxu0 %v6468
      %6488 = vmatprep.subr.bf16.mxu0 0
      %6489 = vmatpush1.bf16.msra.mxu0 %v6469
      %6490 = vmatprep.subr.bf16.mxu0 0
      %6491 = vmatpush1.bf16.msra.mxu0 %v6470
      %6492 = vmatprep.subr.bf16.mxu0 0
      %6493 = vmatpush1.bf16.msra.mxu0 %v6471
      %6494 = vmatprep.subr.bf16.mxu0 0
      %6495 = vmatpush1.bf16.msra.mxu0 %v6472
      %6496 = vmatprep.subr.bf16.mxu0 0
      %6497 = vmatpush1.bf16.msra.mxu0 %v6473
      %6498 = vmatprep.subr.bf16.mxu0 0
      %6499 = vmatpush1.bf16.msra.mxu0 0
      %6500 = vmatprep.subr.bf16.mxu0 0
      %6501 = vmatpush1.bf16.msra.mxu0 0
      %6502 = vmatprep.subr.bf16.mxu0 0
      %6503 = vmatpush1.bf16.msra.mxu0 0
      %6504 = vmatprep.subr.bf16.mxu0 0
      %6505 = vmatpush1.bf16.msra.mxu0 0
      %6506 = vmatprep.subr.bf16.mxu0 0
      %6507 = vmatpush1.bf16.msra.mxu0 0
      %6508 = vmatprep.subr.bf16.mxu0 0
      %6509 = vmatpush1.bf16.msra.mxu0 0
      %6510 = vmatprep.subr.bf16.mxu0 0
      %6511 = vmatpush1.bf16.msra.mxu0 0
      %6512 = vmatprep.subr.bf16.mxu0 0
      %6513 = vmatpush1.bf16.msra.mxu0 0
      %6514 = vmatprep.mubr.bf16.mxu0 0
      %6515 = vmatmul.mubr.bf16.gmra.mrb[0].mxu0 %v6402
      %v6516 = vpop.f32.mrb[0].mxu0
      %v6517 = vadd.f32 0.0, %v6516
      %v6518 = vpop.f32.mrb[0].mxu0
      %v6519 = vpop.f32.mrb[0].mxu0
      %v6520 = vadd.f32 0.0, %v6519
      %v6521 = vpop.f32.mrb[0].mxu0
      %6522 = vmatprep.mubr.bf16.mxu0 0
      %6523 = vmatmul.mubr.bf16.gmra.mrb[0].mxu0 %v6403
      %v6524 = vpop.f32.mrb[0].mxu0
      %v6525 = vadd.f32 0.0, %v6524
      %v6526 = vpop.f32.mrb[0].mxu0
      %v6527 = vpop.f32.mrb[0].mxu0
      %v6528 = vadd.f32 0.0, %v6527
      %v6529 = vpop.f32.mrb[0].mxu0
      %6530 = vmatprep.mubr.bf16.mxu0 0
      %6531 = vmatmul.mubr.bf16.gmra.mrb[0].mxu0 %v6404
      %v6532 = vpop.f32.mrb[0].mxu0
      %v6533 = vadd.f32 0.0, %v6532
      %v6534 = vpop.f32.mrb[0].mxu0
      %v6535 = vpop.f32.mrb[0].mxu0
      %v6536 = vadd.f32 0.0, %v6535
      %v6537 = vpop.f32.mrb[0].mxu0
      %6538 = vmatprep.mubr.bf16.mxu0 0
      %6539 = vmatmul.mubr.bf16.gmra.mrb[0].mxu0 %v6405
      %v6540 = vpop.f32.mrb[0].mxu0
      %v6541 = vadd.f32 0.0, %v6540
      %v6542 = vpop.f32.mrb[0].mxu0
      %v6543 = vpop.f32.mrb[0].mxu0
      %v6544 = vadd.f32 0.0, %v6543
      %v6545 = vpop.f32.mrb[0].mxu0
      %6546 = vmatprep.mubr.bf16.mxu0 0
      %6547 = vmatmul.mubr.bf16.gmra.mrb[0].mxu0 %v6406
      %v6548 = vpop.f32.mrb[0].mxu0
      %v6549 = vadd.f32 0.0, %v6548
      %v6550 = vpop.f32.mrb[0].mxu0
      %v6551 = vpop.f32.mrb[0].mxu0
      %v6552 = vadd.f32 0.0, %v6551
      %v6553 = vpop.f32.mrb[0].mxu0
      %6554 = vmatprep.mubr.bf16.mxu0 0
      %6555 = vmatmul.mubr.bf16.gmra.mrb[0].mxu0 %v6407
      %v6556 = vpop.f32.mrb[0].mxu0
      %v6557 = vadd.f32 0.0, %v6556
      %v6558 = vpop.f32.mrb[0].mxu0
      %v6559 = vpop.f32.mrb[0].mxu0
      %v6560 = vadd.f32 0.0, %v6559
      %v6561 = vpop.f32.mrb[0].mxu0
      %6562 = vmatprep.mubr.bf16.mxu0 0
      %6563 = vmatmul.mubr.bf16.gmra.mrb[0].mxu0 %v6408
      %v6564 = vpop.f32.mrb[0].mxu0
      %v6565 = vadd.f32 0.0, %v6564
      %v6566 = vpop.f32.mrb[0].mxu0
      %v6567 = vpop.f32.mrb[0].mxu0
      %v6568 = vadd.f32 0.0, %v6567
      %v6569 = vpop.f32.mrb[0].mxu0
      %6570 = vmatprep.mubr.bf16.mxu0 0
      %6571 = vmatmul.mubr.bf16.gmra.mrb[0].mxu0 %v6409
      %v6572 = vpop.f32.mrb[0].mxu0
      %v6573 = vadd.f32 0.0, %v6572
      %v6574 = vpop.f32.mrb[0].mxu0
      %v6575 = vpop.f32.mrb[0].mxu0
      %v6576 = vadd.f32 0.0, %v6575
      %v6577 = vpop.f32.mrb[0].mxu0
      %6578 = vmatprep.mubr.bf16.mxu0 0
      %6579 = vmatmul.mubr.bf16.gmra.mrb[0].mxu0 %v6410
      %v6580 = vpop.f32.mrb[0].mxu0
      %v6581 = vadd.f32 0.0, %v6580
      %v6582 = vpop.f32.mrb[0].mxu0
      %v6583 = vpop.f32.mrb[0].mxu0
      %v6584 = vadd.f32 0.0, %v6583
      %v6585 = vpop.f32.mrb[0].mxu0
      %6586 = vmatprep.mubr.bf16.mxu0 0
      %6587 = vmatmul.mubr.bf16.gmra.mrb[0].mxu0 %v6411
      %v6588 = vpop.f32.mrb[0].mxu0
      %v6589 = vadd.f32 0.0, %v6588
      %v6590 = vpop.f32.mrb[0].mxu0
      %v6591 = vpop.f32.mrb[0].mxu0
      %v6592 = vadd.f32 0.0, %v6591
      %v6593 = vpop.f32.mrb[0].mxu0
      %6594 = vmatprep.mubr.bf16.mxu0 0
      %6595 = vmatmul.mubr.bf16.gmra.mrb[0].mxu0 %v6412
      %v6596 = vpop.f32.mrb[0].mxu0
      %v6597 = vadd.f32 0.0, %v6596
      %v6598 = vpop.f32.mrb[0].mxu0
      %v6599 = vpop.f32.mrb[0].mxu0
      %v6600 = vadd.f32 0.0, %v6599
      %v6601 = vpop.f32.mrb[0].mxu0
      %6602 = vmatprep.mubr.bf16.mxu0 0
      %6603 = vmatmul.mubr.bf16.gmra.mrb[0].mxu0 %v6413
      %v6604 = vpop.f32.mrb[0].mxu0
      %v6605 = vadd.f32 0.0, %v6604
      %v6606 = vpop.f32.mrb[0].mxu0
      %v6607 = vpop.f32.mrb[0].mxu0
      %v6608 = vadd.f32 0.0, %v6607
      %v6609 = vpop.f32.mrb[0].mxu0
      %6610 = vmatprep.mubr.bf16.mxu0 0
      %6611 = vmatmul.mubr.bf16.gmra.mrb[0].mxu0 %v6414
      %v6612 = vpop.f32.mrb[0].mxu0
      %v6613 = vadd.f32 0.0, %v6612
      %v6614 = vpop.f32.mrb[0].mxu0
      %v6615 = vpop.f32.mrb[0].mxu0
      %v6616 = vadd.f32 0.0, %v6615
      %v6617 = vpop.f32.mrb[0].mxu0
      %6618 = vmatprep.mubr.bf16.mxu0 0
      %6619 = vmatmul.mubr.bf16.gmra.mrb[0].mxu0 %v6415
      %v6620 = vpop.f32.mrb[0].mxu0
      %v6621 = vadd.f32 0.0, %v6620
      %v6622 = vpop.f32.mrb[0].mxu0
      %v6623 = vpop.f32.mrb[0].mxu0
      %v6624 = vadd.f32 0.0, %v6623
      %v6625 = vpop.f32.mrb[0].mxu0
      %6626 = vmatprep.mubr.bf16.mxu0 0
      %6627 = vmatmul.mubr.bf16.gmra.mrb[0].mxu0 %v6416
      %v6628 = vpop.f32.mrb[0].mxu0
      %v6629 = vadd.f32 0.0, %v6628
      %v6630 = vpop.f32.mrb[0].mxu0
      %v6631 = vpop.f32.mrb[0].mxu0
      %v6632 = vadd.f32 0.0, %v6631
      %v6633 = vpop.f32.mrb[0].mxu0
      %6634 = vmatprep.mubr.bf16.mxu0 0
      %6635 = vmatmul.mubr.bf16.gmra.mrb[0].mxu0 %v6417
      %v6636 = vpop.f32.mrb[0].mxu0
      %v6637 = vadd.f32 0.0, %v6636
      %v6638 = vpop.f32.mrb[0].mxu0
      %v6639 = vpop.f32.mrb[0].mxu0
      %v6640 = vadd.f32 0.0, %v6639
      %v6641 = vpop.f32.mrb[0].mxu0
      %6642 = vdwg.mxu0
      %v6643 = vadd.f32 %v2204, %v4187
      %v6644 = vadd.f32 %v2207, %v4190
      %v6645 = vadd.f32 %v2212, %v4195
      %v6646 = vadd.f32 %v2215, %v4198
      %v6647 = vadd.f32 %v2220, %v4203
      %v6648 = vadd.f32 %v2223, %v4206
      %v6649 = vadd.f32 %v2228, %v4211
      %v6650 = vadd.f32 %v2231, %v4214
      %v6651 = vadd.f32 %v2236, %v4219
      %v6652 = vadd.f32 %v2239, %v4222
      %v6653 = vadd.f32 %v2244, %v4227
      %v6654 = vadd.f32 %v2247, %v4230
      %v6655 = vadd.f32 %v2252, %v4235
      %v6656 = vadd.f32 %v2255, %v4238
      %v6657 = vadd.f32 %v2260, %v4243
      %v6658 = vadd.f32 %v2263, %v4246
      %v6659 = vadd.f32 %v2268, %v4251
      %v6660 = vadd.f32 %v2271, %v4254
      %v6661 = vadd.f32 %v2276, %v4259
      %v6662 = vadd.f32 %v2279, %v4262
      %v6663 = vadd.f32 %v2284, %v4267
      %v6664 = vadd.f32 %v2287, %v4270
      %v6665 = vadd.f32 %v2292, %v4275
      %v6666 = vadd.f32 %v2295, %v4278
      %v6667 = vadd.f32 %v2300, %v4283
      %v6668 = vadd.f32 %v2303, %v4286
      %v6669 = vadd.f32 %v2308, %v4291
      %v6670 = vadd.f32 %v2311, %v4294
      %v6671 = vadd.f32 %v2316, %v4299
      %v6672 = vadd.f32 %v2319, %v4302
      %v6673 = vadd.f32 %v2324, %v4307
      %v6674 = vadd.f32 %v2327, %v4310
      %v6675 = vadd.f32 %v6643, %v6170
      %v6676 = vadd.f32 %v6644, %v6173
      %v6677 = vadd.f32 %v6645, %v6178
      %v6678 = vadd.f32 %v6646, %v6181
      %v6679 = vadd.f32 %v6647, %v6186
      %v6680 = vadd.f32 %v6648, %v6189
      %v6681 = vadd.f32 %v6649, %v6194
      %v6682 = vadd.f32 %v6650, %v6197
      %v6683 = vadd.f32 %v6651, %v6202
      %v6684 = vadd.f32 %v6652, %v6205
      %v6685 = vadd.f32 %v6653, %v6210
      %v6686 = vadd.f32 %v6654, %v6213
      %v6687 = vadd.f32 %v6655, %v6218
      %v6688 = vadd.f32 %v6656, %v6221
      %v6689 = vadd.f32 %v6657, %v6226
      %v6690 = vadd.f32 %v6658, %v6229
      %v6691 = vadd.f32 %v6659, %v6234
      %v6692 = vadd.f32 %v6660, %v6237
      %v6693 = vadd.f32 %v6661, %v6242
      %v6694 = vadd.f32 %v6662, %v6245
      %v6695 = vadd.f32 %v6663, %v6250
      %v6696 = vadd.f32 %v6664, %v6253
      %v6697 = vadd.f32 %v6665, %v6258
      %v6698 = vadd.f32 %v6666, %v6261
      %v6699 = vadd.f32 %v6667, %v6266
      %v6700 = vadd.f32 %v6668, %v6269
      %v6701 = vadd.f32 %v6669, %v6274
      %v6702 = vadd.f32 %v6670, %v6277
      %v6703 = vadd.f32 %v6671, %v6282
      %v6704 = vadd.f32 %v6672, %v6285
      %v6705 = vadd.f32 %v6673, %v6290
      %v6706 = vadd.f32 %v6674, %v6293
      %v6707 = vadd.f32 %v6675, %v6517
      %v6708 = vadd.f32 %v6676, %v6520
      %v6709 = vadd.f32 %v6677, %v6525
      %v6710 = vadd.f32 %v6678, %v6528
      %v6711 = vadd.f32 %v6679, %v6533
      %v6712 = vadd.f32 %v6680, %v6536
      %v6713 = vadd.f32 %v6681, %v6541
      %v6714 = vadd.f32 %v6682, %v6544
      %v6715 = vadd.f32 %v6683, %v6549
      %v6716 = vadd.f32 %v6684, %v6552
      %v6717 = vadd.f32 %v6685, %v6557
      %v6718 = vadd.f32 %v6686, %v6560
      %v6719 = vadd.f32 %v6687, %v6565
      %v6720 = vadd.f32 %v6688, %v6568
      %v6721 = vadd.f32 %v6689, %v6573
      %v6722 = vadd.f32 %v6690, %v6576
      %v6723 = vadd.f32 %v6691, %v6581
      %v6724 = vadd.f32 %v6692, %v6584
      %v6725 = vadd.f32 %v6693, %v6589
      %v6726 = vadd.f32 %v6694, %v6592
      %v6727 = vadd.f32 %v6695, %v6597
      %v6728 = vadd.f32 %v6696, %v6600
      %v6729 = vadd.f32 %v6697, %v6605
      %v6730 = vadd.f32 %v6698, %v6608
      %v6731 = vadd.f32 %v6699, %v6613
      %v6732 = vadd.f32 %v6700, %v6616
      %v6733 = vadd.f32 %v6701, %v6621
      %v6734 = vadd.f32 %v6702, %v6624
      %v6735 = vadd.f32 %v6703, %v6629
      %v6736 = vadd.f32 %v6704, %v6632
      %v6737 = vadd.f32 %v6705, %v6637
      %v6738 = vadd.f32 %v6706, %v6640
      %6739 = vst [vmem:[%s278] sm:$0xff] %v6707
      %6740 = vst [vmem:[%s278 + $0x8] sm:$0xff] %v6708
      %6741 = vst [vmem:[%s278 + $0x10] sm:$0xff] %v6709
      %6742 = vst [vmem:[%s278 + $0x18] sm:$0xff] %v6710
      %6743 = vst [vmem:[%s278 + $0x20] sm:$0xff] %v6711
      %6744 = vst [vmem:[%s278 + $0x28] sm:$0xff] %v6712
      %6745 = vst [vmem:[%s278 + $0x30] sm:$0xff] %v6713
      %6746 = vst [vmem:[%s278 + $0x38] sm:$0xff] %v6714
      %6747 = vst [vmem:[%s278 + $0x40] sm:$0xff] %v6715
      %6748 = vst [vmem:[%s278 + $0x48] sm:$0xff] %v6716
      %6749 = vst [vmem:[%s278 + $0x50] sm:$0xff] %v6717
      %6750 = vst [vmem:[%s278 + $0x58] sm:$0xff] %v6718
      %6751 = vst [vmem:[%s278 + $0x60] sm:$0xff] %v6719
      %6752 = vst [vmem:[%s278 + $0x68] sm:$0xff] %v6720
      %6753 = vst [vmem:[%s278 + $0x70] sm:$0xff] %v6721
      %6754 = vst [vmem:[%s278 + $0x78] sm:$0xff] %v6722
      %6755 = vst [vmem:[%s278 + $0x80] sm:$0xff] %v6723
      %6756 = vst [vmem:[%s278 + $0x88] sm:$0xff] %v6724
      %6757 = vst [vmem:[%s278 + $0x90] sm:$0xff] %v6725
      %6758 = vst [vmem:[%s278 + $0x98] sm:$0xff] %v6726
      %6759 = vst [vmem:[%s278 + $0xa0] sm:$0xff] %v6727
      %6760 = vst [vmem:[%s278 + $0xa8] sm:$0xff] %v6728
      %6761 = vst [vmem:[%s278 + $0xb0] sm:$0xff] %v6729
      %6762 = vst [vmem:[%s278 + $0xb8] sm:$0xff] %v6730
      %6763 = vst [vmem:[%s278 + $0xc0] sm:$0xff] %v6731
      %6764 = vst [vmem:[%s278 + $0xc8] sm:$0xff] %v6732
      %6765 = vst [vmem:[%s278 + $0xd0] sm:$0xff] %v6733
      %6766 = vst [vmem:[%s278 + $0xd8] sm:$0xff] %v6734
      %6767 = vst [vmem:[%s278 + $0xe0] sm:$0xff] %v6735
      %6768 = vst [vmem:[%s278 + $0xe8] sm:$0xff] %v6736
      %6769 = vst [vmem:[%s278 + $0xf0] sm:$0xff] %v6737
      %6770 = vst [vmem:[%s278 + $0xf8] sm:$0xff] %v6738
      %p6771 = scmp.lt.s32.totalorder %s18, 1
      %s6772 = scalar_select %p6771, %s18, 1
      %s6773 = smul.addr %s6772, 32
      %s6774 = smul.addr %s6773, 8
      %s6775 = scalar_lea.vmem %s7, %s6774
      // Predicated region
      $region49: #{convblock_forward.1} parent=47 // pred_check
        %p6776 = pneg %p188
      $region50: #{convblock_forward.1} parent=47 // pred_check_branch
        %6778 = sbr.rel (%p6776) target = $region52
      $region51: #{convblock_forward.1} parent=47 // pred_region
        _
      $region52: #{convblock_forward.1} parent=47 // pred_fallthru
        _
    $region48: #{convblock_forward.1} parent=5 // pred_fallthru
      _
    %p6779 = scmp.le.s32.totalorder 2, %s13
    // Predicated region
    $region53: #{convblock_forward.1} parent=5 // pred_check
      %p6780 = pneg %p6779
    $region54: #{convblock_forward.1} parent=5 // pred_check_branch
      %6782 = sbr.rel (%p6780) target = $region56
    $region55: #{convblock_forward.1} parent=5 // pred_region
      %s6783 = ssub.s32 %s13, 2
      // Predicated region
      $region57: #{convblock_forward.1} parent=55 // pred_check
        %p6784 = pneg %p194
      $region58: #{convblock_forward.1} parent=55 // pred_check_branch
        %6786 = sbr.rel (%p6784) target = $region60
      $region59: #{convblock_forward.1} parent=55 // pred_region
        %p6787 = scmp.lt.s32.totalorder %s19, 1
        %s6788 = scalar_select %p6787, %s19, 1
        %s6789 = smul.addr %s6788, 32
        %s6790 = smul.addr %s6789, 8
        %s6791 = scalar_lea.vmem %s7, %s6790
      $region60: #{convblock_forward.1} parent=55 // pred_fallthru
        _
    $region56: #{convblock_forward.1} parent=5 // pred_fallthru
      _
  $region6: #{convblock_forward.1} parent=0 // loop_footer
    %s17 = sadd.s32 1, %s13
  $region7: #{convblock_forward.1} parent=0 // loop_footer_branch
    %12 = sbr.rel target = $region3
  $region8: #{convblock_forward.1} parent=0 // loop_exit
    _

</llo_original>
